<compile_context>
chip_gen: v7x
topology: tpu7x:2x2x1
jax: 0.10.0
libtpu: 0.0.40
codegen_flags: <defaults>
</compile_context>

<pallas_src>
import functools

import jax
import jax.numpy as jnp
from jax.experimental import pallas as pl
from jax.experimental.pallas import tpu as pltpu


# ---------------------------------------------------------------------------
# Config (synthetic stand-in for the torch cfg object)
# ---------------------------------------------------------------------------
class Cfg:
    feat_dim = 32
    num_correspodances = 64
    pointcloud_source = "joint"
    algorithm = "weighted_procrustes"
    base_weight = "nn_ratio"


def _pick_tile(n, candidates=(16384, 8192, 4096, 2048, 1024, 512, 256, 128)):
    for c in candidates:
        if n % c == 0:
            return c
    return n  # fall back to a full-extent block (always a legal BlockSpec)


_VMEM_LIMIT = 48 * 1024 * 1024  # explicit scoped-VMEM budget (tiny usage at test sizes)


# ---------------------------------------------------------------------------
# Kernel 1: fused two-layer 3x3 conv (encoder / decoder), no im2col in HBM
# ---------------------------------------------------------------------------
def _conv2_fused_kernel(x_ref, w1_ref, b1_ref, w2_ref, b2_ref, o_ref, s_ref,
                        *, H, W, act2):
    # x_ref : (1, R_pad, Cin)  row-flattened zero-padded image ((H+3) x Wp grid)
    # w1_ref: (9*Cin, Cmid) bf16     w2_ref: (9*Cmid, Cout) bf16
    # o_ref : (1, Cout, M)  channel-first, lane-dense (M = H*Wp; wrap columns are
    #         sliced off by the wrapper)
    # s_ref : (R_pad, Cmid) f32 scratch staging the inter-layer activation in VMEM
    Wp = W + 2
    M = H * Wp
    R_pad = x_ref.shape[1]
    Cmid = w1_ref.shape[-1]

    # ---- layer 1: single K = 9*Cin MXU matmul (taps gathered on the K axis) ----
    xb = x_ref[0].astype(jnp.bfloat16)                        # cast padded input once
    x9 = jnp.concatenate(
        [xb[dy * Wp + dx: dy * Wp + dx + M, :]
         for dy in range(3) for dx in range(3)], axis=1)      # (M, 9*Cin)
    h = jnp.dot(x9, w1_ref[...], preferred_element_type=jnp.float32) + b1_ref[...]
    h = jnp.maximum(h, 0.0)

    # wrap-around columns double as layer 2's left/right zero padding
    col = jax.lax.broadcasted_iota(jnp.int32, (M, 1), 0) % Wp
    h = jnp.where(col < W, h, 0.0)

    # ---- stage intermediate in the flat-padded layout (zero halo rows only) ----
    top = Wp + 1
    tail = R_pad - top - M                                    # == 2*Wp - 1 > 0
    s_ref[pl.ds(0, top), :] = jnp.zeros((top, Cmid), jnp.float32)
    s_ref[pl.ds(top + M, tail), :] = jnp.zeros((tail, Cmid), jnp.float32)
    s_ref[pl.ds(top, M), :] = h

    # ---- layer 2: single K = 9*Cmid MXU matmul, intermediate never leaves VMEM ----
    sb = s_ref[...].astype(jnp.bfloat16)                      # cast intermediate once
    h9 = jnp.concatenate(
        [sb[dy * Wp + dx: dy * Wp + dx + M, :]
         for dy in range(3) for dx in range(3)], axis=1)      # (M, 9*Cmid)
    y = jnp.dot(h9, w2_ref[...], preferred_element_type=jnp.float32) + b2_ref[...]
    if act2 == "relu":
        y = jnp.maximum(y, 0.0)
    else:
        y = jnp.tanh(y)
    o_ref[0] = jnp.transpose(y)                               # (Cout, M) lane-dense


def _conv_pair(x_nhwc, w1, b1, w2, b2, act2):
    # TODO(synk): for large H, add a row-tile "parallel" grid axis with a 2-row halo
    # (needed for v7x's 64 MiB VMEM and its 2 TensorCores); at these image sizes a
    # per-image block is well under VMEM.
    B, H, W, Cin = x_nhwc.shape
    Wp = W + 2
    M = H * Wp
    R_pad = (H + 3) * Wp
    Cmid = w1.shape[-1]
    Cout = w2.shape[-1]
    # single fused pad: 1-px spatial halo + one extra bottom image row for tap over-read
    xp = jnp.pad(x_nhwc, ((0, 0), (1, 2), (1, 1), (0, 0))).reshape(B, R_pad, Cin)
    w1f = w1.reshape(9 * w1.shape[1], Cmid).astype(jnp.bfloat16)
    w2f = w2.reshape(9 * w2.shape[1], Cout).astype(jnp.bfloat16)
    y = pl.pallas_call(
        functools.partial(_conv2_fused_kernel, H=H, W=W, act2=act2),
        out_shape=jax.ShapeDtypeStruct((B, Cout, M), jnp.float32),
        grid=(B,),
        in_specs=[pl.BlockSpec((1, R_pad, Cin), lambda b: (b, 0, 0)),
                  pl.BlockSpec((9 * Cin, Cmid), lambda b: (0, 0)),
                  pl.BlockSpec((1, Cmid), lambda b: (0, 0)),
                  pl.BlockSpec((9 * Cmid, Cout), lambda b: (0, 0)),
                  pl.BlockSpec((1, Cout), lambda b: (0, 0))],
        out_specs=pl.BlockSpec((1, Cout, M), lambda b: (b, 0, 0)),
        scratch_shapes=[pltpu.VMEM((R_pad, Cmid), jnp.float32)],
        compiler_params=pltpu.CompilerParams(
            dimension_semantics=("parallel",),
            vmem_limit_bytes=_VMEM_LIMIT),
    )(xp, w1f, b1, w2f, b2)
    return y.reshape(B, Cout, H, Wp)[:, :, :, :W]     # NCHW, wrap columns dropped


# ---------------------------------------------------------------------------
# Kernel 2: streaming 2-nearest-neighbour over feature sets (no NxN matrix)
# ---------------------------------------------------------------------------
def _nn2_kernel(f1_ref, f2_ref, d1_ref, d2_ref, i1_ref,
                best_ref, second_ref, idx_ref, *, tile_n2):
    kv = pl.program_id(2)

    @pl.when(kv == 0)
    def _():
        best_ref[...] = jnp.full(best_ref.shape, -1e30, jnp.float32)
        second_ref[...] = jnp.full(second_ref.shape, -1e30, jnp.float32)
        idx_ref[...] = jnp.zeros(idx_ref.shape, jnp.int32)

    # Gram similarity of pre-normalized features; bf16 operands, f32 accumulation.
    # f1 is point-major (T1, C), f2 channel-first (C, T2): no in-kernel transpose.
    g = jnp.dot(f1_ref[0], f2_ref[0], preferred_element_type=jnp.float32)   # (T1,T2)

    # within-tile best / argbest / second-best in SIMILARITY space (bigger = closer)
    s1 = jnp.max(g, axis=-1, keepdims=True)                                 # (T1,1)
    col = jax.lax.broadcasted_iota(jnp.int32, g.shape, 1)
    ti_loc = jnp.min(jnp.where(g >= s1, col, tile_n2), axis=-1, keepdims=True)
    s2 = jnp.max(jnp.where(col == ti_loc, jnp.float32(-1e30), g),
                 axis=-1, keepdims=True)
    ti = ti_loc + kv * tile_n2                                  # global candidate idx

    b1, b2, bi = best_ref[...], second_ref[...], idx_ref[...]
    best_ref[...] = jnp.maximum(b1, s1)
    idx_ref[...] = jnp.where(s1 > b1, ti, bi)                   # ties keep earlier idx
    second_ref[...] = jnp.maximum(jnp.minimum(b1, s1), jnp.maximum(b2, s2))

    @pl.when(kv == pl.num_programs(2) - 1)
    def _():
        # convert to squared L2 of unit-norm features; lane-dense (1, T1) stores
        d1_ref[0] = jnp.transpose(jnp.maximum(2.0 - 2.0 * best_ref[...], 0.0))
        d2_ref[0] = jnp.transpose(jnp.maximum(2.0 - 2.0 * second_ref[...], 0.0))
        i1_ref[0] = jnp.transpose(idx_ref[...])


def pallas_nn2(F1, F2cf):
    # F1: (B, N1, C) point-major queries; F2cf: (B, C, N2) channel-first candidates.
    B, N1, C = F1.shape
    _, _, N2 = F2cf.shape
    # L2-normalize ONCE (hoisted out of the kv loop) and cast to bf16 for the MXU.
    F1n = (F1 * jax.lax.rsqrt(jnp.sum(F1 * F1, axis=-1, keepdims=True) + 1e-12)
           ).astype(jnp.bfloat16)
    F2n = (F2cf * jax.lax.rsqrt(jnp.sum(F2cf * F2cf, axis=1, keepdims=True) + 1e-12)
           ).astype(jnp.bfloat16)
    T1 = _pick_tile(N1, (256, 128))        # modest T1 keeps (T1,T2) temporaries small
    T2 = _pick_tile(N2, (512, 256, 128))
    d1, d2, i1 = pl.pallas_call(
        functools.partial(_nn2_kernel, tile_n2=T2),
        out_shape=(jax.ShapeDtypeStruct((B, 1, N1), jnp.float32),
                   jax.ShapeDtypeStruct((B, 1, N1), jnp.float32),
                   jax.ShapeDtypeStruct((B, 1, N1), jnp.int32)),
        grid=(B, N1 // T1, N2 // T2),
        in_specs=[pl.BlockSpec((1, T1, C), lambda b, i, k: (b, i, 0)),
                  pl.BlockSpec((1, C, T2), lambda b, i, k: (b, 0, k))],
        out_specs=(pl.BlockSpec((1, 1, T1), lambda b, i, k: (b, 0, i)),
                   pl.BlockSpec((1, 1, T1), lambda b, i, k: (b, 0, i)),
                   pl.BlockSpec((1, 1, T1), lambda b, i, k: (b, 0, i))),
        scratch_shapes=[pltpu.VMEM((T1, 1), jnp.float32),
                        pltpu.VMEM((T1, 1), jnp.float32),
                        pltpu.VMEM((T1, 1), jnp.int32)],
        compiler_params=pltpu.CompilerParams(
            dimension_semantics=("parallel", "parallel", "arbitrary"),
            vmem_limit_bytes=_VMEM_LIMIT),
    )(F1n, F2n)
    return d1[:, 0, :], d2[:, 0, :], i1[:, 0, :]


# ---------------------------------------------------------------------------
# Kernel 3: fused affine point-cloud op, channel-first (lane dim = N)
#           out = M @ (scale * pts) + c, optionally followed by NDC projection
# ---------------------------------------------------------------------------
def _pts_affine_kernel(*refs, do_ndc, has_scale, H, W):
    if has_scale:
        m_ref, c_ref, s_ref, p_ref, o_ref = refs
    else:
        m_ref, c_ref, p_ref, o_ref = refs
    b = pl.program_id(0)
    p = p_ref[0]                                              # (3, TN)
    if has_scale:
        p = p * s_ref[0]                                      # (1, TN) broadcast
    x, y, z = p[0:1, :], p[1:2, :], p[2:3, :]
    # 3x3 affine as 9 scalar (SMEM) broadcast multiply-adds -- no MXU push for a
    # 3-row matmul in a purely HBM-bound kernel.
    rows = [m_ref[b, 3 * i + 0] * x + m_ref[b, 3 * i + 1] * y
            + m_ref[b, 3 * i + 2] * z + c_ref[b, i] for i in range(3)]
    if do_ndc:
        zz = rows[2]
        inv = pl.reciprocal(zz + 1e-8, approx=True)           # EUP, off the VPU slot
        xn = (2.0 / W) * (rows[0] * inv) - 1.0
        yn = (2.0 / H) * (rows[1] * inv) - 1.0
        out = jnp.concatenate([xn, yn, zz], axis=0)
    else:
        out = jnp.concatenate(rows, axis=0)
    o_ref[0] = out


def pallas_pts_affine(m, c, p, scale=None, do_ndc=False, size=(1, 1)):
    # m: (B,3,3), c: (B,3) are read as SMEM scalars; p (and optional scale) are the
    # only blocked HBM streams, so the kernel is a lane-dense bandwidth pass.
    B, _, N = p.shape
    TN = _pick_tile(N)
    has_scale = scale is not None
    in_specs = [pl.BlockSpec(memory_space=pltpu.MemorySpace.SMEM),
                pl.BlockSpec(memory_space=pltpu.MemorySpace.SMEM)]
    args = [m.reshape(B, 9).astype(jnp.float32), c.astype(jnp.float32)]
    if has_scale:
        in_specs.append(pl.BlockSpec((1, 1, TN), lambda b, n: (b, 0, n)))
        args.append(scale)
    in_specs.append(pl.BlockSpec((1, 3, TN), lambda b, n: (b, 0, n)))
    args.append(p)
    return pl.pallas_call(
        functools.partial(_pts_affine_kernel, do_ndc=do_ndc,
                          has_scale=has_scale, H=size[0], W=size[1]),
        out_shape=jax.ShapeDtypeStruct((B, 3, N), jnp.float32),
        grid=(B, N // TN),
        in_specs=in_specs,
        out_specs=pl.BlockSpec((1, 3, TN), lambda b, n: (b, 0, n)),
        compiler_params=pltpu.CompilerParams(
            dimension_semantics=("parallel", "parallel"),
            vmem_limit_bytes=_VMEM_LIMIT),
    )(*args)


# ---------------------------------------------------------------------------
# Model pieces (wrappers / glue)
# ---------------------------------------------------------------------------
# TODO(synk): the real ResNetEncoder / ResNetDecoder (pretrained ResNet blocks with
# BN) are replaced by deterministic fused 2-layer 3x3 conv stacks.
def encode(params, rgb_nchw):
    x = jnp.transpose(rgb_nchw, (0, 2, 3, 1))                      # NHWC for MXU lhs
    return _conv_pair(x, params["e_w1"], params["e_b1"],
                      params["e_w2"], params["e_b2"], "relu")      # (B,feat,H,W) NCHW


def decode(params, feat_nchw):
    x = jnp.transpose(feat_nchw, (0, 2, 3, 1))
    return _conv_pair(x, params["d_w1"], params["d_b1"],
                      params["d_w2"], params["d_b2"], "tanh")      # (B,3,H,W) NCHW


def get_grid(B, H, W):
    # homogeneous pixel grid (u, v, 1), pixel centers at +0.5, channel-first
    u = jnp.arange(W, dtype=jnp.float32) + 0.5
    v = jnp.arange(H, dtype=jnp.float32) + 0.5
    uu, vv = jnp.meshgrid(u, v, indexing="xy")
    g = jnp.stack([uu, vv, jnp.ones_like(uu)], axis=0).reshape(3, H * W)
    return jnp.broadcast_to(g[None], (B, 3, H * W))


def grid_to_pointcloud(K_inv, dep_flat, feats_pm, grid):
    # fused backprojection: pts = K_inv @ (depth * [u v 1]^T), channel-first (B,3,N)
    B = grid.shape[0]
    zero_t = jnp.zeros((B, 3), jnp.float32)
    pts = pallas_pts_affine(K_inv, zero_t, grid, scale=dep_flat)
    return pts, feats_pm


def get_correspondences(P1, P2cf, P1_X, P2_X, num_corres, ratio_test):
    eps = 1e-8
    d1sq, d2sq, idx_nn = pallas_nn2(P1, P2cf)       # streaming 2-NN (no NxN matrix)
    d1 = jnp.sqrt(d1sq + eps)
    d2 = jnp.sqrt(d2sq + eps)
    if ratio_test:
        w = jnp.clip(1.0 - d1 / (d2 + eps), 0.0, None)   # Lowe-style ratio weight
    else:
        w = 1.0 / (1.0 + d1)
    w_top, idx1 = jax.lax.top_k(w, num_corres)      # (B, k)
    idx2 = jnp.take_along_axis(idx_nn, idx1, axis=1)
    return idx1, idx2, w_top


def align(corr, X1, X2):
    # weighted Procrustes (3x3 SVD kept in XLA); X1, X2 are channel-first (B,3,N)
    idx1, idx2, w = corr
    eps = 1e-8
    x1 = jnp.transpose(jnp.take_along_axis(X1, idx1[:, None, :], axis=2), (0, 2, 1))
    x2 = jnp.transpose(jnp.take_along_axis(X2, idx2[:, None, :], axis=2), (0, 2, 1))
    w = w + eps
    wsum = jnp.sum(w, axis=1, keepdims=True)
    c1 = jnp.sum(w[..., None] * x1, axis=1) / wsum
    c2 = jnp.sum(w[..., None] * x2, axis=1) / wsum
    p = x1 - c1[:, None]
    q = x2 - c2[:, None]
    Hc = jnp.einsum("bk,bki,bkj->bij", w, p, q)              # (B, 3, 3)
    U, _, Vh = jnp.linalg.svd(Hc)
    V = jnp.swapaxes(Vh, -1, -2)
    det = jnp.linalg.det(jnp.einsum("bij,bkj->bik", V, U))   # det(V U^T)
    D = jnp.stack([jnp.ones_like(det), jnp.ones_like(det), det], axis=-1)
    R = jnp.einsum("bij,bj,bkj->bik", V, D, U)               # V diag(D) U^T
    t = c2 - jnp.einsum("bij,bj->bi", R, c1)
    Rt = jnp.concatenate([R, t[..., None]], axis=-1)         # (B, 3, 4)
    x1_t = jnp.einsum("bij,bkj->bki", R, x1) + t[:, None]
    res = jnp.linalg.norm(x1_t - x2, axis=-1)
    cor_loss = jnp.mean(jnp.sum(w * res, axis=1) / wsum[:, 0])
    return Rt, cor_loss


def transform_points_Rt(points_cf, Rt, inverse=False):
    # points_cf: (B, 3, N) channel-first
    R = Rt[:, :, :3]
    t = Rt[:, :, 3]
    if inverse:
        M = jnp.swapaxes(R, -1, -2)                     # R^T
        c = -jnp.einsum("bji,bj->bi", R, t)             # -R^T t
    else:
        M = R
        c = t
    return pallas_pts_affine(M, c, points_cf)


def transform_project_ndc(points_cf, Rt, K, size):
    # fused (optional rigid transform) -> K projection -> NDC, channel-first in/out
    H, W = size
    if Rt is None:
        M = K
        c = jnp.zeros((K.shape[0], 3), jnp.float32)
    else:
        R = Rt[:, :, :3]
        t = Rt[:, :, 3]
        M = jnp.einsum("bij,bjk->bik", K, R)
        c = jnp.einsum("bij,bj->bi", K, t)
    return pallas_pts_affine(M, c, points_cf, do_ndc=True, size=(H, W))


# TODO(synk): pytorch3d PointsRenderer replaced by a nearest-pixel z-buffer splat
# via JAX scatter-min (data-dependent scatter has no clean Pallas TPU equivalent).
def render_points(ndc_points_cf, feats, size):
    H, W = size

    def one(xyz, f):
        x, y, z = xyz[0], xyz[1], xyz[2]
        u = (x + 1.0) * 0.5 * W
        v = (y + 1.0) * 0.5 * H
        px = jnp.floor(u).astype(jnp.int32)
        py = jnp.floor(v).astype(jnp.int32)
        valid = (px >= 0) & (px < W) & (py >= 0) & (py < H) & (z > 1e-5)
        pix = jnp.where(valid, py * W + px, 0)
        P = x.shape[0]
        zkey = jnp.where(valid, z, jnp.inf)
        zbuf = jnp.full((H * W,), jnp.inf, jnp.float32).at[pix].min(zkey)
        winner = valid & (zkey <= zbuf[pix])
        idx_cand = jnp.where(winner, jnp.arange(P, dtype=jnp.int32), P)
        idx_buf = jnp.full((H * W,), P, jnp.int32).at[pix].min(idx_cand)
        mask = idx_buf < P
        idx_safe = jnp.minimum(idx_buf, P - 1)
        fr = jnp.where(mask[:, None], f[idx_safe], 0.0)      # (HW, C)
        dr = jnp.where(mask, zbuf, 0.0)
        return (jnp.transpose(fr).reshape(-1, H, W),
                dr.reshape(1, H, W),
                mask.reshape(H, W))

    feats_img, depth_img, mask_img = jax.vmap(one)(ndc_points_cf, feats)
    return {"feats": feats_img, "depth": depth_img, "mask": mask_img}


# ---------------------------------------------------------------------------
# PCReg forward
# ---------------------------------------------------------------------------
def pcreg_forward(params, cfg, rgbs, K, deps, vps=None):
    n_views = len(rgbs)
    output = {}
    feats = [encode(params, rgbs[i]) for i in range(n_views)]   # NCHW (B,C,H,W)
    B, Cf, H, W = feats[0].shape
    assert feats[0].shape[-1] == deps[0].shape[-1], "Same size"
    assert feats[0].shape[-2] == deps[0].shape[-2], "Same size"
    N = H * W
    grid = get_grid(B, H, W)
    K_inv = jnp.linalg.inv(K)

    pcs_Fcf = [feats[i].reshape(B, Cf, N) for i in range(n_views)]   # (B,C,N) lane-dense
    pcs_F = [jnp.transpose(f, (0, 2, 1)) for f in pcs_Fcf]           # (B,N,C) point-major
    pcs_X = []
    for i in range(n_views):
        pts, _ = grid_to_pointcloud(K_inv, deps[i].reshape(B, 1, N), pcs_F[i], grid)
        pcs_X.append(pts)     # (B, 3, N) channel-first

    cor_loss = []
    if vps is not None:
        vps = vps[1:]
        cor_loss = [jnp.zeros(())]
    elif cfg.algorithm == "weighted_procrustes":
        vps = []
        for i in range(1, n_views):
            corr_i = get_correspondences(
                P1=pcs_F[0], P2cf=pcs_Fcf[i], P1_X=pcs_X[0], P2_X=pcs_X[i],
                num_corres=cfg.num_correspodances,
                ratio_test=(cfg.base_weight == "nn_ratio"))
            Rt_i, cor_loss_i = align(corr_i, pcs_X[0], pcs_X[i])
            vps.append(Rt_i)
            cor_loss.append(cor_loss_i)
            output[f"corres_0{i}"] = corr_i
            output[f"vp_{i}"] = Rt_i
    else:
        raise ValueError(f"How to align using {cfg.algorithm}?")

    output["corr_loss"] = sum(cor_loss)

    pcs_X_rot = [transform_points_Rt(pcs_X[i + 1], vps[i], inverse=True)
                 for i in range(n_views - 1)]
    pcs_X = pcs_X[0:1] + pcs_X_rot
    output["joint_pointcloud"] = jnp.transpose(
        jnp.concatenate(pcs_X, axis=2), (0, 2, 1))              # (B, nV*N, 3)

    pcs_rgb = [jnp.transpose(r.reshape(B, 3, N), (0, 2, 1)) for r in rgbs]

    if cfg.pointcloud_source == "joint":
        pcs_X_joint = jnp.concatenate(pcs_X, axis=2)
        pcs_F_joint = jnp.concatenate(pcs_F, axis=1)
        pcs_RGB_joint = jnp.concatenate(pcs_rgb, axis=1)
        pcs_FRGB_joint = jnp.concatenate((pcs_F_joint, pcs_RGB_joint), axis=2)

    projs = []
    for i in range(n_views):
        if cfg.pointcloud_source == "other":
            pcs_X_joint = jnp.concatenate(pcs_X[0:i] + pcs_X[i + 1:n_views], axis=2)
            pcs_F_joint = jnp.concatenate(pcs_F[0:i] + pcs_F[i + 1:n_views], axis=1)
            pcs_RGB_joint = jnp.concatenate(pcs_rgb[0:i] + pcs_rgb[i + 1:n_views], axis=1)
            pcs_FRGB_joint = jnp.concatenate((pcs_F_joint, pcs_RGB_joint), axis=2)
        Rt_i = vps[i - 1] if i > 0 else None
        rot_joint_ndc = transform_project_ndc(pcs_X_joint, Rt_i, K, (H, W))
        projs.append(render_points(rot_joint_ndc, pcs_FRGB_joint, (H, W)))

    for i in range(n_views):
        proj_FRGB_i = projs[i]["feats"]
        proj_RGB_i = proj_FRGB_i[:, -3:]
        proj_F_i = proj_FRGB_i[:, :-3]
        output[f"rgb_decode_{i}"] = decode(params, proj_F_i)
        output[f"rgb_render_{i}"] = proj_RGB_i
        output[f"ras_depth_{i}"] = projs[i]["depth"]
        output[f"cover_{i}"] = projs[i]["mask"][:, None].astype(jnp.float32)
    return output


def init_params(key, feat_dim):
    ks = jax.random.split(key, 4)

    def w(k, shape, scale):
        return scale * jax.random.normal(k, shape, jnp.float32)

    # conv weights stored as (9 taps, Cin, Cout); tap index k = 3*dy + dx
    return {
        "e_w1": w(ks[0], (9, 3, feat_dim), 0.10),
        "e_b1": jnp.zeros((1, feat_dim), jnp.float32),
        "e_w2": w(ks[1], (9, feat_dim, feat_dim), 0.05),
        "e_b2": jnp.zeros((1, feat_dim), jnp.float32),
        "d_w1": w(ks[2], (9, feat_dim, feat_dim), 0.05),
        "d_b1": jnp.zeros((1, feat_dim), jnp.float32),
        "d_w2": w(ks[3], (9, feat_dim, 3), 0.05),
        "d_b2": jnp.zeros((1, 3), jnp.float32),
    }


if __name__ == "__main__":
    cfg = Cfg()
    B, H, W = 2, 16, 16
    key = jax.random.PRNGKey(0)
    k_r0, k_r1, k_d0, k_d1, k_par = jax.random.split(key, 5)
    rgbs = [jax.random.uniform(k_r0, (B, 3, H, W), jnp.float32),
            jax.random.uniform(k_r1, (B, 3, H, W), jnp.float32)]
    deps = [1.0 + 2.0 * jax.random.uniform(k_d0, (B, 1, H, W), jnp.float32),
            1.0 + 2.0 * jax.random.uniform(k_d1, (B, 1, H, W), jnp.float32)]
    fx = fy = float(W)
    K_single = jnp.array([[fx, 0.0, W / 2.0],
                          [0.0, fy, H / 2.0],
                          [0.0, 0.0, 1.0]], jnp.float32)
    K = jnp.broadcast_to(K_single, (B, 3, 3))

    params = init_params(k_par, cfg.feat_dim)
    out = pcreg_forward(params, cfg, rgbs, K, deps)
    jax.block_until_ready(out)
    print("KERNEL_OK")
</pallas_src>

<mosaic_0001>
module attributes {stable_mosaic.version = 11 : i64} {
  func.func @_conv2_fused_kernel(%arg0: i32, %arg1: memref<1x342x3xf32, #tpu.memory_space<vmem>>, %arg2: memref<27x32xbf16, #tpu.memory_space<vmem>>, %arg3: memref<1x32xf32, #tpu.memory_space<vmem>>, %arg4: memref<288x32xbf16, #tpu.memory_space<vmem>>, %arg5: memref<1x32xf32, #tpu.memory_space<vmem>>, %arg6: memref<1x32x288xf32, #tpu.memory_space<vmem>>, %arg7: memref<342x32xf32, #tpu.memory_space<vmem>>) attributes {dimension_semantics = [#tpu.dimension_semantics<parallel>], iteration_bounds = array<i64: 2>, scalar_prefetch = 0 : i64, scratch_operands = 1 : i64, tpu.core_type = #tpu.core_type<tc>, window_params = [{transform_indices = @transform_0, window_bounds = array<i64: 1, 342, 3>}, {pipeline_mode = #tpu.pipeline_mode<synchronous>, transform_indices = @transform_1, window_bounds = array<i64: 27, 32>}, {pipeline_mode = #tpu.pipeline_mode<synchronous>, transform_indices = @transform_2, window_bounds = array<i64: 1, 32>}, {pipeline_mode = #tpu.pipeline_mode<synchronous>, transform_indices = @transform_3, window_bounds = array<i64: 288, 32>}, {pipeline_mode = #tpu.pipeline_mode<synchronous>, transform_indices = @transform_4, window_bounds = array<i64: 1, 32>}, {transform_indices = @transform_5, window_bounds = array<i64: 1, 32, 288>}]} {
    %c0 = arith.constant 0 : index
    %c0_0 = arith.constant 0 : index
    %c0_1 = arith.constant 0 : index
    %0 = vector.load %arg1[%c0, %c0_0, %c0_1] : memref<1x342x3xf32, #tpu.memory_space<vmem>>, vector<1x342x3xf32>
    %1 = vector.shape_cast %0 : vector<1x342x3xf32> to vector<342x3xf32>
    %2 = arith.truncf %1 : vector<342x3xf32> to vector<342x3xbf16>
    %3 = vector.extract_strided_slice %2 {offsets = [0, 0], sizes = [288, 3], strides = [1, 1]} : vector<342x3xbf16> to vector<288x3xbf16>
    %4 = vector.extract_strided_slice %2 {offsets = [1, 0], sizes = [288, 3], strides = [1, 1]} : vector<342x3xbf16> to vector<288x3xbf16>
    %5 = vector.extract_strided_slice %2 {offsets = [2, 0], sizes = [288, 3], strides = [1, 1]} : vector<342x3xbf16> to vector<288x3xbf16>
    %6 = vector.extract_strided_slice %2 {offsets = [18, 0], sizes = [288, 3], strides = [1, 1]} : vector<342x3xbf16> to vector<288x3xbf16>
    %7 = vector.extract_strided_slice %2 {offsets = [19, 0], sizes = [288, 3], strides = [1, 1]} : vector<342x3xbf16> to vector<288x3xbf16>
    %8 = vector.extract_strided_slice %2 {offsets = [20, 0], sizes = [288, 3], strides = [1, 1]} : vector<342x3xbf16> to vector<288x3xbf16>
    %9 = vector.extract_strided_slice %2 {offsets = [36, 0], sizes = [288, 3], strides = [1, 1]} : vector<342x3xbf16> to vector<288x3xbf16>
    %10 = vector.extract_strided_slice %2 {offsets = [37, 0], sizes = [288, 3], strides = [1, 1]} : vector<342x3xbf16> to vector<288x3xbf16>
    %11 = vector.extract_strided_slice %2 {offsets = [38, 0], sizes = [288, 3], strides = [1, 1]} : vector<342x3xbf16> to vector<288x3xbf16>
    %12 = tpu.concatenate %3, %4, %5, %6, %7, %8, %9, %10, %11 in 1 : vector<288x3xbf16>, vector<288x3xbf16>, vector<288x3xbf16>, vector<288x3xbf16>, vector<288x3xbf16>, vector<288x3xbf16>, vector<288x3xbf16>, vector<288x3xbf16>, vector<288x3xbf16> -> vector<288x27xbf16>
    %c0_2 = arith.constant 0 : index
    %c0_3 = arith.constant 0 : index
    %13 = vector.load %arg2[%c0_2, %c0_3] : memref<27x32xbf16, #tpu.memory_space<vmem>>, vector<27x32xbf16>
    %cst = arith.constant dense<0.000000e+00> : vector<288x32xf32>
    %14 = tpu.matmul %12, %13, %cst {dimension_numbers = #tpu.dot_dimension_numbers<[1], [0], [0], [1], [0, 0, 1, 1], [], []>} : vector<288x27xbf16>, vector<27x32xbf16>, vector<288x32xf32> -> vector<288x32xf32>
    %c0_4 = arith.constant 0 : index
    %c0_5 = arith.constant 0 : index
    %15 = vector.load %arg3[%c0_4, %c0_5] : memref<1x32xf32, #tpu.memory_space<vmem>>, vector<1x32xf32>
    %16 = vector.broadcast %15 : vector<1x32xf32> to vector<288x32xf32>
    %17 = arith.addf %14, %16 : vector<288x32xf32>
    %cst_6 = arith.constant 0.000000e+00 : f32
    %18 = vector.broadcast %cst_6 : f32 to vector<288x32xf32>
    %19 = arith.maximumf %17, %18 : vector<288x32xf32>
    %20 = tpu.iota {dimensions = array<i32: 0>} : vector<288x1xi32>
    %c18_i32 = arith.constant 18 : i32
    %c0_i32 = arith.constant 0 : i32
    %21 = arith.cmpi eq, %c18_i32, %c0_i32 : i32
    %c1_i32 = arith.constant 1 : i32
    %22 = arith.select %21, %c1_i32, %c18_i32 : i32
    %23 = vector.broadcast %22 : i32 to vector<288x1xi32>
    %24 = arith.remsi %20, %23 : vector<288x1xi32>
    %c0_i32_7 = arith.constant 0 : i32
    %25 = vector.broadcast %c0_i32_7 : i32 to vector<288x1xi32>
    %26 = arith.cmpi ne, %24, %25 : vector<288x1xi32>
    %c0_i32_8 = arith.constant 0 : i32
    %27 = vector.broadcast %c0_i32_8 : i32 to vector<288x1xi32>
    %28 = arith.cmpi slt, %24, %27 : vector<288x1xi32>
    %c0_i32_9 = arith.constant 0 : i32
    %29 = arith.cmpi slt, %22, %c0_i32_9 : i32
    %30 = vector.broadcast %29 : i1 to vector<288x1xi1>
    %31 = vector.broadcast %30 : vector<288x1xi1> to vector<288x1xi1>
    %32 = arith.xori %28, %31 : vector<288x1xi1>
    %33 = arith.andi %32, %26 : vector<288x1xi1>
    %34 = vector.broadcast %22 : i32 to vector<288x1xi32>
    %35 = arith.addi %24, %34 : vector<288x1xi32>
    %36 = arith.select %33, %35, %24 : vector<288x1xi1>, vector<288x1xi32>
    %c16_i32 = arith.constant 16 : i32
    %37 = vector.broadcast %c16_i32 : i32 to vector<288x1xi32>
    %38 = arith.cmpi slt, %36, %37 : vector<288x1xi32>
    %cst_10 = arith.constant 0.000000e+00 : f32
    %39 = vector.shape_cast %38 : vector<288x1xi1> to vector<288x1xi1>
    %40 = vector.broadcast %39 : vector<288x1xi1> to vector<288x32xi1>
    %41 = vector.broadcast %cst_10 : f32 to vector<288x32xf32>
    %42 = arith.select %40, %19, %41 : vector<288x32xi1>, vector<288x32xf32>
    %cst_11 = arith.constant 0.000000e+00 : f32
    %43 = vector.broadcast %cst_11 : f32 to vector<19x32xf32>
    %c0_12 = arith.constant 0 : index
    %c0_13 = arith.constant 0 : index
    %44 = vector.load %arg7[%c0_12, %c0_13] : memref<342x32xf32, #tpu.memory_space<vmem>>, vector<19x32xf32>
    tpu.vector_store %arg7[%c0_12, %c0_13], %43 {strides = array<i32>} : memref<342x32xf32, #tpu.memory_space<vmem>>, vector<19x32xf32>,
    %cst_14 = arith.constant 0.000000e+00 : f32
    %45 = vector.broadcast %cst_14 : f32 to vector<35x32xf32>
    %c307 = arith.constant 307 : index
    %c0_15 = arith.constant 0 : index
    %46 = vector.load %arg7[%c307, %c0_15] : memref<342x32xf32, #tpu.memory_space<vmem>>, vector<35x32xf32>
    tpu.vector_store %arg7[%c307, %c0_15], %45 {strides = array<i32>} : memref<342x32xf32, #tpu.memory_space<vmem>>, vector<35x32xf32>,
    %c19 = arith.constant 19 : index
    %c0_16 = arith.constant 0 : index
    %47 = vector.load %arg7[%c19, %c0_16] : memref<342x32xf32, #tpu.memory_space<vmem>>, vector<288x32xf32>
    tpu.vector_store %arg7[%c19, %c0_16], %42 {strides = array<i32>} : memref<342x32xf32, #tpu.memory_space<vmem>>, vector<288x32xf32>,
    %c0_17 = arith.constant 0 : index
    %c0_18 = arith.constant 0 : index
    %48 = vector.load %arg7[%c0_17, %c0_18] : memref<342x32xf32, #tpu.memory_space<vmem>>, vector<342x32xf32>
    %49 = arith.truncf %48 : vector<342x32xf32> to vector<342x32xbf16>
    %50 = vector.extract_strided_slice %49 {offsets = [0, 0], sizes = [288, 32], strides = [1, 1]} : vector<342x32xbf16> to vector<288x32xbf16>
    %51 = vector.extract_strided_slice %49 {offsets = [1, 0], sizes = [288, 32], strides = [1, 1]} : vector<342x32xbf16> to vector<288x32xbf16>
    %52 = vector.extract_strided_slice %49 {offsets = [2, 0], sizes = [288, 32], strides = [1, 1]} : vector<342x32xbf16> to vector<288x32xbf16>
    %53 = vector.extract_strided_slice %49 {offsets = [18, 0], sizes = [288, 32], strides = [1, 1]} : vector<342x32xbf16> to vector<288x32xbf16>
    %54 = vector.extract_strided_slice %49 {offsets = [19, 0], sizes = [288, 32], strides = [1, 1]} : vector<342x32xbf16> to vector<288x32xbf16>
    %55 = vector.extract_strided_slice %49 {offsets = [20, 0], sizes = [288, 32], strides = [1, 1]} : vector<342x32xbf16> to vector<288x32xbf16>
    %56 = vector.extract_strided_slice %49 {offsets = [36, 0], sizes = [288, 32], strides = [1, 1]} : vector<342x32xbf16> to vector<288x32xbf16>
    %57 = vector.extract_strided_slice %49 {offsets = [37, 0], sizes = [288, 32], strides = [1, 1]} : vector<342x32xbf16> to vector<288x32xbf16>
    %58 = vector.extract_strided_slice %49 {offsets = [38, 0], sizes = [288, 32], strides = [1, 1]} : vector<342x32xbf16> to vector<288x32xbf16>
    %59 = tpu.concatenate %50, %51, %52, %53, %54, %55, %56, %57, %58 in 1 : vector<288x32xbf16>, vector<288x32xbf16>, vector<288x32xbf16>, vector<288x32xbf16>, vector<288x32xbf16>, vector<288x32xbf16>, vector<288x32xbf16>, vector<288x32xbf16>, vector<288x32xbf16> -> vector<288x288xbf16>
    %c0_19 = arith.constant 0 : index
    %c0_20 = arith.constant 0 : index
    %60 = vector.load %arg4[%c0_19, %c0_20] : memref<288x32xbf16, #tpu.memory_space<vmem>>, vector<288x32xbf16>
    %cst_21 = arith.constant dense<0.000000e+00> : vector<288x32xf32>
    %61 = tpu.matmul %59, %60, %cst_21 {dimension_numbers = #tpu.dot_dimension_numbers<[1], [0], [0], [1], [0, 0, 1, 1], [], []>} : vector<288x288xbf16>, vector<288x32xbf16>, vector<288x32xf32> -> vector<288x32xf32>
    %c0_22 = arith.constant 0 : index
    %c0_23 = arith.constant 0 : index
    %62 = vector.load %arg5[%c0_22, %c0_23] : memref<1x32xf32, #tpu.memory_space<vmem>>, vector<1x32xf32>
    %63 = vector.broadcast %62 : vector<1x32xf32> to vector<288x32xf32>
    %64 = arith.addf %61, %63 : vector<288x32xf32>
    %cst_24 = arith.constant 0.000000e+00 : f32
    %65 = vector.broadcast %cst_24 : f32 to vector<288x32xf32>
    %66 = arith.maximumf %64, %65 : vector<288x32xf32>
    %67 = tpu.transpose %66, [1, 0] : vector<288x32xf32> -> vector<32x288xf32>
    %c0_25 = arith.constant 0 : index
    %c0_26 = arith.constant 0 : index
    %c0_27 = arith.constant 0 : index
    %68 = vector.load %arg6[%c0_25, %c0_26, %c0_27] : memref<1x32x288xf32, #tpu.memory_space<vmem>>, vector<1x32x288xf32>
    %69 = vector.shape_cast %68 : vector<1x32x288xf32> to vector<32x288xf32>
    %70 = vector.shape_cast %67 : vector<32x288xf32> to vector<1x32x288xf32>
    tpu.vector_store %arg6[%c0_25, %c0_26, %c0_27], %70 {strides = array<i32>} : memref<1x32x288xf32, #tpu.memory_space<vmem>>, vector<1x32x288xf32>,
    return
  }
  func.func @transform_0(%arg0: i32) -> (i32, i32, i32) {
    %c0_i32 = arith.constant 0 : i32
    %c0_i32_0 = arith.constant 0 : i32
    %c0_i32_1 = arith.constant 0 : i32
    return %arg0, %c0_i32, %c0_i32_0 : i32, i32, i32
  }
  func.func @transform_1(%arg0: i32) -> (i32, i32) {
    %c0_i32 = arith.constant 0 : i32
    %c0_i32_0 = arith.constant 0 : i32
    %c0_i32_1 = arith.constant 0 : i32
    return %c0_i32, %c0_i32_0 : i32, i32
  }
  func.func @transform_2(%arg0: i32) -> (i32, i32) {
    %c0_i32 = arith.constant 0 : i32
    %c0_i32_0 = arith.constant 0 : i32
    %c0_i32_1 = arith.constant 0 : i32
    return %c0_i32, %c0_i32_0 : i32, i32
  }
  func.func @transform_3(%arg0: i32) -> (i32, i32) {
    %c0_i32 = arith.constant 0 : i32
    %c0_i32_0 = arith.constant 0 : i32
    %c0_i32_1 = arith.constant 0 : i32
    return %c0_i32, %c0_i32_0 : i32, i32
  }
  func.func @transform_4(%arg0: i32) -> (i32, i32) {
    %c0_i32 = arith.constant 0 : i32
    %c0_i32_0 = arith.constant 0 : i32
    %c0_i32_1 = arith.constant 0 : i32
    return %c0_i32, %c0_i32_0 : i32, i32
  }
  func.func @transform_5(%arg0: i32) -> (i32, i32, i32) {
    %c0_i32 = arith.constant 0 : i32
    %c0_i32_0 = arith.constant 0 : i32
    %c0_i32_1 = arith.constant 0 : i32
    return %arg0, %c0_i32, %c0_i32_0 : i32, i32, i32
  }
}

</mosaic_0001>

<llo_original>
// kernel: tpu_custom_call.1
$region0: #{tpu_custom_call.1}
  #allocation0 [shape = 'u32[]', space=smem, size = 0x4, offset = 0x4, fixed_abs, tag = 'smem constant byte address 0x4 - core index']
  #allocation1 [shape = 'u32[144,128]{1,0:T(1,128)}', space=vmem, size = 0x12000, scoped, tag = 'internal scratch']
  #allocation2 [shape = 'f32[342,32]{1,0:T(8,128)}', space=vmem, size = 0x2b000, scoped, tag = 'scratch operand']
  %s0 = inlined_call_operand.vmem [shape: f32[2,342,3], index: 0, kind: input, shape index: {}]
  %s1 = inlined_call_operand.vmem [shape: bf16[27,32], index: 1, kind: input, shape index: {}]
  %s2 = inlined_call_operand.vmem [shape: f32[1,32], index: 2, kind: input, shape index: {}]
  %s3 = inlined_call_operand.vmem [shape: bf16[288,32], index: 3, kind: input, shape index: {}]
  %s4 = inlined_call_operand.vmem [shape: f32[1,32], index: 4, kind: input, shape index: {}]
  %s5 = inlined_call_operand.hbm [shape: f32[2,32,288], index: 5, kind: output, shape index: {}]
  %s6 = sld [smem:[#allocation0]]
  $region53: #{tpu_custom_call.1} parent=0
    _
  %s8 = ssub.s32 1, %s6
  %s9 = scalar_select 0, %s8, %s6
  $region1: #{tpu_custom_call.1} parent=0
    #allocation3 [shape = 'u8[98304]{0}', space=vmem, size = 0x18000, scoped, tag = 'output window, operand 0']
    #allocation4 [shape = 's32[2]{0}', space=sflag, size = 0x8, scoped, tag = 'scoped memory for tpu_custom_call.1']
    %10 = vsyncpa [#allocation4], 0
    %s11 = scalar_lea.sflag [#allocation4], 1
    %12 = vsyncpa %s11, 0
    loop: start=0, step=1, limit=4
    $region2: #{tpu_custom_call.1} parent=1 // loop_pre_header
      _
    $region3: #{tpu_custom_call.1} parent=1 // loop_header
      %s14 = sphi 0, %s18
      %p15 = scmp.ge.s32.totalorder %s14, 4
      %s24 = sphi 0, %s26
      %s27 = sphi 0, %s24
      %s28 = sphi 0, %s27
      %s44 = sphi 0, %s28
      %s48 = sphi 0, %s48
      %s50 = sphi 0, %s48
      %s51 = sphi 0, %s50
      %s65 = sphi 0, %s51
      %s69 = sphi 0, %s69
      %s71 = sphi 0, %s69
      %s72 = sphi 0, %s71
      %s86 = sphi 0, %s72
      %s90 = sphi 0, %s90
      %s92 = sphi 0, %s90
      %s93 = sphi 0, %s92
      %s107 = sphi 0, %s93
      %s111 = sphi 0, %s111
      %s113 = sphi 0, %s111
      %s114 = sphi 0, %s113
      %s128 = sphi 0, %s114
      %s134 = sphi 0, %s136
      %s137 = sphi 0, %s134
      %s138 = sphi 0, %s137
      %s154 = sphi 0, %s138
    $region4: #{tpu_custom_call.1} parent=1 // loop_header_branch
      %17 = sbr.rel (%p15) target = $region8
    $region5: #{tpu_custom_call.1} parent=1 // loop_body
      %s19 = ssub.s32 %s14, 1
      %s20 = ssub.s32 %s14, 2
      %s21 = sadd.s32 %s14, 1
      %s22 = ssub.s32 %s14, %s21
      %p23 = scmp.eq.s32.totalorder %s22, 0
      %s25 = sadd.s32 %s24, 1
      %s26 = scalar_select %p23, %s24, %s25
      %p29 = pneg %p23
      %p30 = scmp.eq.s32.totalorder %s14, 1
      %p31 = por %p29, %p30
      %p32 = scmp.ne.s32.totalorder %s24, %s27
      %p33 = scmp.eq.s32.totalorder %s14, 0
      %p34 = por %p32, %p33
      %p35 = scmp.ne.s32.totalorder %s24, %s27
      %p36 = scmp.eq.s32.totalorder %s19, 1
      %p37 = por %p35, %p36
      %p38 = scmp.ne.s32.totalorder %s27, %s28
      %p39 = scmp.eq.s32.totalorder %s19, 0
      %p40 = por %p38, %p39
      %p41 = scmp.ne.s32.totalorder %s27, %s28
      %p42 = scmp.eq.s32.totalorder %s20, 1
      %p43 = por %p41, %p42
      %p45 = scmp.ne.s32.totalorder %s28, %s44
      %p46 = scmp.eq.s32.totalorder %s20, 0
      %p47 = por %p45, %p46
      %s49 = sadd.s32 %s48, 1
      %p52 = scmp.eq.s32.totalorder %s14, 1
      %p53 = scmp.ne.s32.totalorder %s48, %s50
      %p54 = scmp.eq.s32.totalorder %s14, 0
      %p55 = por %p53, %p54
      %p56 = scmp.ne.s32.totalorder %s48, %s50
      %p57 = scmp.eq.s32.totalorder %s19, 1
      %p58 = por %p56, %p57
      %p59 = scmp.ne.s32.totalorder %s50, %s51
      %p60 = scmp.eq.s32.totalorder %s19, 0
      %p61 = por %p59, %p60
      %p62 = scmp.ne.s32.totalorder %s50, %s51
      %p63 = scmp.eq.s32.totalorder %s20, 1
      %p64 = por %p62, %p63
      %p66 = scmp.ne.s32.totalorder %s51, %s65
      %p67 = scmp.eq.s32.totalorder %s20, 0
      %p68 = por %p66, %p67
      %s70 = sadd.s32 %s69, 1
      %p73 = scmp.eq.s32.totalorder %s14, 1
      %p74 = scmp.ne.s32.totalorder %s69, %s71
      %p75 = scmp.eq.s32.totalorder %s14, 0
      %p76 = por %p74, %p75
      %p77 = scmp.ne.s32.totalorder %s69, %s71
      %p78 = scmp.eq.s32.totalorder %s19, 1
      %p79 = por %p77, %p78
      %p80 = scmp.ne.s32.totalorder %s71, %s72
      %p81 = scmp.eq.s32.totalorder %s19, 0
      %p82 = por %p80, %p81
      %p83 = scmp.ne.s32.totalorder %s71, %s72
      %p84 = scmp.eq.s32.totalorder %s20, 1
      %p85 = por %p83, %p84
      %p87 = scmp.ne.s32.totalorder %s72, %s86
      %p88 = scmp.eq.s32.totalorder %s20, 0
      %p89 = por %p87, %p88
      %s91 = sadd.s32 %s90, 1
      %p94 = scmp.eq.s32.totalorder %s14, 1
      %p95 = scmp.ne.s32.totalorder %s90, %s92
      %p96 = scmp.eq.s32.totalorder %s14, 0
      %p97 = por %p95, %p96
      %p98 = scmp.ne.s32.totalorder %s90, %s92
      %p99 = scmp.eq.s32.totalorder %s19, 1
      %p100 = por %p98, %p99
      %p101 = scmp.ne.s32.totalorder %s92, %s93
      %p102 = scmp.eq.s32.totalorder %s19, 0
      %p103 = por %p101, %p102
      %p104 = scmp.ne.s32.totalorder %s92, %s93
      %p105 = scmp.eq.s32.totalorder %s20, 1
      %p106 = por %p104, %p105
      %p108 = scmp.ne.s32.totalorder %s93, %s107
      %p109 = scmp.eq.s32.totalorder %s20, 0
      %p110 = por %p108, %p109
      %s112 = sadd.s32 %s111, 1
      %p115 = scmp.eq.s32.totalorder %s14, 1
      %p116 = scmp.ne.s32.totalorder %s111, %s113
      %p117 = scmp.eq.s32.totalorder %s14, 0
      %p118 = por %p116, %p117
      %p119 = scmp.ne.s32.totalorder %s111, %s113
      %p120 = scmp.eq.s32.totalorder %s19, 1
      %p121 = por %p119, %p120
      %p122 = scmp.ne.s32.totalorder %s113, %s114
      %p123 = scmp.eq.s32.totalorder %s19, 0
      %p124 = por %p122, %p123
      %p125 = scmp.ne.s32.totalorder %s113, %s114
      %p126 = scmp.eq.s32.totalorder %s20, 1
      %p127 = por %p125, %p126
      %p129 = scmp.ne.s32.totalorder %s114, %s128
      %p130 = scmp.eq.s32.totalorder %s20, 0
      %p131 = por %p129, %p130
      %s132 = ssub.s32 %s14, %s21
      %p133 = scmp.eq.s32.totalorder %s132, 0
      %s135 = sadd.s32 %s134, 1
      %s136 = scalar_select %p133, %s134, %s135
      %p139 = pneg %p133
      %p140 = scmp.eq.s32.totalorder %s14, 1
      %p141 = por %p139, %p140
      %p142 = scmp.ne.s32.totalorder %s134, %s137
      %p143 = scmp.eq.s32.totalorder %s14, 0
      %p144 = por %p142, %p143
      %p145 = scmp.ne.s32.totalorder %s134, %s137
      %p146 = scmp.eq.s32.totalorder %s19, 1
      %p147 = por %p145, %p146
      %p148 = scmp.ne.s32.totalorder %s137, %s138
      %p149 = scmp.eq.s32.totalorder %s19, 0
      %p150 = por %p148, %p149
      %p151 = scmp.ne.s32.totalorder %s137, %s138
      %p152 = scmp.eq.s32.totalorder %s20, 1
      %p153 = por %p151, %p152
      %p155 = scmp.ne.s32.totalorder %s138, %s154
      %p156 = scmp.eq.s32.totalorder %s20, 0
      %p157 = por %p155, %p156
      %p158 = scmp.le.s32.totalorder 1, %s14
      %p159 = scmp.lt.s32.totalorder %s14, 3
      %p160 = pnand %p158, %p159
      %p161 = pneg %p160
      // Predicated region
      $region9: #{tpu_custom_call.1} parent=5 // pred_check
        _
      $region10: #{tpu_custom_call.1} parent=5 // pred_check_branch
        %163 = sbr.rel (%p160) target = $region12
      $region11: #{tpu_custom_call.1} parent=5 // pred_region
        %s164 = ssub.s32 %s14, 1
        // Predicated region
        $region13: #{tpu_custom_call.1} parent=11 // pred_check
          %p165 = pneg %p61
        $region14: #{tpu_custom_call.1} parent=11 // pred_check_branch
          %167 = sbr.rel (%p165) target = $region16
        $region15: #{tpu_custom_call.1} parent=11 // pred_region
          _
        $region16: #{tpu_custom_call.1} parent=11 // pred_fallthru
          _
        // Predicated region
        $region17: #{tpu_custom_call.1} parent=11 // pred_check
          %p168 = pneg %p82
        $region18: #{tpu_custom_call.1} parent=11 // pred_check_branch
          %170 = sbr.rel (%p168) target = $region20
        $region19: #{tpu_custom_call.1} parent=11 // pred_region
          _
        $region20: #{tpu_custom_call.1} parent=11 // pred_fallthru
          _
        // Predicated region
        $region21: #{tpu_custom_call.1} parent=11 // pred_check
          %p171 = pneg %p103
        $region22: #{tpu_custom_call.1} parent=11 // pred_check_branch
          %173 = sbr.rel (%p171) target = $region24
        $region23: #{tpu_custom_call.1} parent=11 // pred_region
          _
        $region24: #{tpu_custom_call.1} parent=11 // pred_fallthru
          _
        // Predicated region
        $region25: #{tpu_custom_call.1} parent=11 // pred_check
          %p174 = pneg %p124
        $region26: #{tpu_custom_call.1} parent=11 // pred_check_branch
          %176 = sbr.rel (%p174) target = $region28
        $region27: #{tpu_custom_call.1} parent=11 // pred_region
          _
        $region28: #{tpu_custom_call.1} parent=11 // pred_fallthru
          _
      $region12: #{tpu_custom_call.1} parent=5 // pred_fallthru
        _
      %p177 = scmp.lt.s32.totalorder %s14, 2
      // Predicated region
      $region29: #{tpu_custom_call.1} parent=5 // pred_check
        %p178 = pneg %p177
      $region30: #{tpu_custom_call.1} parent=5 // pred_check_branch
        %180 = sbr.rel (%p178) target = $region32
      $region31: #{tpu_custom_call.1} parent=5 // pred_region
        // Predicated region
        $region33: #{tpu_custom_call.1} parent=31 // pred_check
          %p181 = pneg %p34
        $region34: #{tpu_custom_call.1} parent=31 // pred_check_branch
          %183 = sbr.rel (%p181) target = $region36
        $region35: #{tpu_custom_call.1} parent=31 // pred_region
          %p184 = scmp.lt.s32.totalorder %s14, 1
          %s185 = scalar_select %p184, %s14, 1
          %s186 = smul.addr %s185, 43
          %s187 = smul.addr %s186, 8
          %s188 = scalar_lea.vmem %s0, %s187
        $region36: #{tpu_custom_call.1} parent=31 // pred_fallthru
          _
      $region32: #{tpu_custom_call.1} parent=5 // pred_fallthru
        _
      %p189 = scmp.le.s32.totalorder 1, %s14
      %p190 = scmp.lt.s32.totalorder %s14, 3
      %p191 = pnand %p189, %p190
      %p192 = pneg %p191
      // Predicated region
      $region37: #{tpu_custom_call.1} parent=5 // pred_check
        _
      $region38: #{tpu_custom_call.1} parent=5 // pred_check_branch
        %194 = sbr.rel (%p191) target = $region40
      $region39: #{tpu_custom_call.1} parent=5 // pred_region
        %s195 = ssub.s32 %s14, 1
        %p196 = scmp.lt.s32.totalorder %s19, 1
        %s197 = scalar_select %p196, %s19, 1
        %s198 = smul.addr %s197, 43
        %s199 = smul.addr %s198, 8
        %s200 = scalar_lea.vmem %s0, %s199
        %p201 = pneg %p40
        %p202 = pneg %p37
        %p203 = pneg %p61
        %p204 = pneg %p58
        %p205 = pneg %p82
        %p206 = pneg %p79
        %p207 = pneg %p103
        %p208 = pneg %p100
        %p209 = pneg %p124
        %p210 = pneg %p121
        %p211 = pneg %p150
        %p212 = pneg %p147
        %s213 = sand.u32 %s137, 1
        %s214 = scalar_lea.sflag [#allocation4], %s213
        %s215 = sand.u32 %s137, 1
        %s216 = smul.addr %s215, 96
        %s217 = scalar_lea.vmem [#allocation3], %s216
        %p218 = scmp.lt.s32.totalorder %s19, 1
        %s219 = scalar_select %p218, %s19, 1
        %s220 = smul.addr %s219, 43
        %s221 = smul.addr %s220, 8
        %s222 = scalar_lea.vmem %s0, %s221
        %v224 = vld [vmem:[%s222] sm:$0xff]
        %v225 = vld [vmem:[%s222 + $0x8] sm:$0xff]
        %v226 = vld [vmem:[%s222 + $0x10] sm:$0xff]
        %v227 = vld [vmem:[%s222 + $0x18] sm:$0xff]
        %v228 = vld [vmem:[%s222 + $0x20] sm:$0xff]
        %v229 = vld [vmem:[%s222 + $0x28] sm:$0xff]
        %v230 = vld [vmem:[%s222 + $0x30] sm:$0xff]
        %v231 = vld [vmem:[%s222 + $0x38] sm:$0xff]
        %v232 = vld [vmem:[%s222 + $0x40] sm:$0xff]
        %v233 = vld [vmem:[%s222 + $0x48] sm:$0xff]
        %v234 = vld [vmem:[%s222 + $0x50] sm:$0xff]
        %v235 = vld [vmem:[%s222 + $0x58] sm:$0xff]
        %v236 = vld [vmem:[%s222 + $0x60] sm:$0xff]
        %v237 = vld [vmem:[%s222 + $0x68] sm:$0xff]
        %v238 = vld [vmem:[%s222 + $0x70] sm:$0xff]
        %v239 = vld [vmem:[%s222 + $0x78] sm:$0xff]
        %v240 = vld [vmem:[%s222 + $0x80] sm:$0xff]
        %v241 = vld [vmem:[%s222 + $0x88] sm:$0xff]
        %v242 = vld [vmem:[%s222 + $0x90] sm:$0xff]
        %v243 = vld [vmem:[%s222 + $0x98] sm:$0xff]
        %v244 = vld [vmem:[%s222 + $0xa0] sm:$0xff]
        %v245 = vld [vmem:[%s222 + $0xa8] sm:$0xff]
        %v246 = vld [vmem:[%s222 + $0xb0] sm:$0xff]
        %v247 = vld [vmem:[%s222 + $0xb8] sm:$0xff]
        %v248 = vld [vmem:[%s222 + $0xc0] sm:$0xff]
        %v249 = vld [vmem:[%s222 + $0xc8] sm:$0xff]
        %v250 = vld [vmem:[%s222 + $0xd0] sm:$0xff]
        %v251 = vld [vmem:[%s222 + $0xd8] sm:$0xff]
        %v252 = vld [vmem:[%s222 + $0xe0] sm:$0xff]
        %v253 = vld [vmem:[%s222 + $0xe8] sm:$0xff]
        %v254 = vld [vmem:[%s222 + $0xf0] sm:$0xff]
        %v255 = vld [vmem:[%s222 + $0xf8] sm:$0xff]
        %v256 = vld [vmem:[%s222 + $0x100] sm:$0xff]
        %v257 = vld [vmem:[%s222 + $0x108] sm:$0xff]
        %v258 = vld [vmem:[%s222 + $0x110] sm:$0xff]
        %v259 = vld [vmem:[%s222 + $0x118] sm:$0xff]
        %v260 = vld [vmem:[%s222 + $0x120] sm:$0xff]
        %v261 = vld [vmem:[%s222 + $0x128] sm:$0xff]
        %v262 = vld [vmem:[%s222 + $0x130] sm:$0xff]
        %v263 = vld [vmem:[%s222 + $0x138] sm:$0xff]
        %v264 = vld [vmem:[%s222 + $0x140] sm:$0xff]
        %v265 = vld [vmem:[%s222 + $0x148] sm:$0xff]
        %v266 = vpack.c.bf16 %v225, %v224
        %v267 = vpack.c.bf16 %v227, %v226
        %v268 = vpack.c.bf16 %v229, %v228
        %v269 = vpack.c.bf16 %v231, %v230
        %v270 = vpack.c.bf16 %v233, %v232
        %v271 = vpack.c.bf16 %v235, %v234
        %v272 = vpack.c.bf16 %v237, %v236
        %v273 = vpack.c.bf16 %v239, %v238
        %v274 = vpack.c.bf16 %v241, %v240
        %v275 = vpack.c.bf16 %v243, %v242
        %v276 = vpack.c.bf16 %v245, %v244
        %v277 = vpack.c.bf16 %v247, %v246
        %v278 = vpack.c.bf16 %v249, %v248
        %v279 = vpack.c.bf16 %v251, %v250
        %v280 = vpack.c.bf16 %v253, %v252
        %v281 = vpack.c.bf16 %v255, %v254
        %v282 = vpack.c.bf16 %v257, %v256
        %v283 = vpack.c.bf16 %v259, %v258
        %v284 = vpack.c.bf16 %v261, %v260
        %v285 = vpack.c.bf16 %v263, %v262
        %v286 = vpack.c.bf16 %v265, %v264
        %vm287 = vsmask.f32 7424
        %v289 = vshrl.u32 %v266, 16
        %v291 = vshll.u32 %v266, 16
        %v293 = vrot.slane %v291, 1
        %v294 = vor.u32 %v289, %v293
        %v296 = vshll.u32 %v267, 16
        %v298 = vrot.slane %v296, 1
        %v299 = vsel %vm287, %v294, %v298
        %v300 = vshrl.u32 %v267, 16
        %v302 = vor.u32 %v300, %v298
        %v304 = vshll.u32 %v268, 16
        %v306 = vrot.slane %v304, 1
        %v307 = vsel %vm287, %v302, %v306
        %v308 = vshrl.u32 %v268, 16
        %v310 = vor.u32 %v308, %v306
        %v312 = vshll.u32 %v269, 16
        %v314 = vrot.slane %v312, 1
        %v315 = vsel %vm287, %v310, %v314
        %v316 = vshrl.u32 %v269, 16
        %v318 = vor.u32 %v316, %v314
        %v320 = vshll.u32 %v270, 16
        %v322 = vrot.slane %v320, 1
        %v323 = vsel %vm287, %v318, %v322
        %v324 = vshrl.u32 %v270, 16
        %v326 = vor.u32 %v324, %v322
        %v328 = vshll.u32 %v271, 16
        %v330 = vrot.slane %v328, 1
        %v331 = vsel %vm287, %v326, %v330
        %v332 = vshrl.u32 %v271, 16
        %v334 = vor.u32 %v332, %v330
        %v336 = vshll.u32 %v272, 16
        %v338 = vrot.slane %v336, 1
        %v339 = vsel %vm287, %v334, %v338
        %v340 = vshrl.u32 %v272, 16
        %v342 = vor.u32 %v340, %v338
        %v344 = vshll.u32 %v273, 16
        %v346 = vrot.slane %v344, 1
        %v347 = vsel %vm287, %v342, %v346
        %v348 = vshrl.u32 %v273, 16
        %v350 = vor.u32 %v348, %v346
        %v352 = vshll.u32 %v274, 16
        %v354 = vrot.slane %v352, 1
        %v355 = vsel %vm287, %v350, %v354
        %v356 = vshrl.u32 %v274, 16
        %v358 = vor.u32 %v356, %v354
        %v360 = vshll.u32 %v275, 16
        %v362 = vrot.slane %v360, 1
        %v363 = vsel %vm287, %v358, %v362
        %v364 = vshrl.u32 %v275, 16
        %v366 = vor.u32 %v364, %v362
        %v368 = vshll.u32 %v276, 16
        %v370 = vrot.slane %v368, 1
        %v371 = vsel %vm287, %v366, %v370
        %v372 = vshrl.u32 %v276, 16
        %v374 = vor.u32 %v372, %v370
        %v376 = vshll.u32 %v277, 16
        %v378 = vrot.slane %v376, 1
        %v379 = vsel %vm287, %v374, %v378
        %v380 = vshrl.u32 %v277, 16
        %v382 = vor.u32 %v380, %v378
        %v384 = vshll.u32 %v278, 16
        %v386 = vrot.slane %v384, 1
        %v387 = vsel %vm287, %v382, %v386
        %v388 = vshrl.u32 %v278, 16
        %v390 = vor.u32 %v388, %v386
        %v392 = vshll.u32 %v279, 16
        %v394 = vrot.slane %v392, 1
        %v395 = vsel %vm287, %v390, %v394
        %v396 = vshrl.u32 %v279, 16
        %v398 = vor.u32 %v396, %v394
        %v400 = vshll.u32 %v280, 16
        %v402 = vrot.slane %v400, 1
        %v403 = vsel %vm287, %v398, %v402
        %v404 = vshrl.u32 %v280, 16
        %v406 = vor.u32 %v404, %v402
        %v408 = vshll.u32 %v281, 16
        %v410 = vrot.slane %v408, 1
        %v411 = vsel %vm287, %v406, %v410
        %v412 = vshrl.u32 %v281, 16
        %v414 = vor.u32 %v412, %v410
        %v416 = vshll.u32 %v282, 16
        %v418 = vrot.slane %v416, 1
        %v419 = vsel %vm287, %v414, %v418
        %v420 = vshrl.u32 %v282, 16
        %v422 = vor.u32 %v420, %v418
        %v424 = vshll.u32 %v283, 16
        %v426 = vrot.slane %v424, 1
        %v427 = vsel %vm287, %v422, %v426
        %v428 = vshrl.u32 %v283, 16
        %v430 = vor.u32 %v428, %v426
        %v432 = vshll.u32 %v284, 16
        %v434 = vrot.slane %v432, 1
        %v435 = vsel %vm287, %v430, %v434
        %436 = vrot.lane.b32.xlu0 %v299, 3
        %v437 = vpop.permute.xlu0 %436
        %438 = vrot.lane.b32.xlu0 %v307, 3
        %v439 = vpop.permute.xlu0 %438
        %440 = vrot.lane.b32.xlu0 %v315, 3
        %v441 = vpop.permute.xlu0 %440
        %442 = vrot.lane.b32.xlu0 %v323, 3
        %v443 = vpop.permute.xlu0 %442
        %444 = vrot.lane.b32.xlu0 %v331, 3
        %v445 = vpop.permute.xlu0 %444
        %446 = vrot.lane.b32.xlu0 %v339, 3
        %v447 = vpop.permute.xlu0 %446
        %448 = vrot.lane.b32.xlu0 %v347, 3
        %v449 = vpop.permute.xlu0 %448
        %450 = vrot.lane.b32.xlu0 %v355, 3
        %v451 = vpop.permute.xlu0 %450
        %452 = vrot.lane.b32.xlu0 %v363, 3
        %v453 = vpop.permute.xlu0 %452
        %454 = vrot.lane.b32.xlu0 %v371, 3
        %v455 = vpop.permute.xlu0 %454
        %456 = vrot.lane.b32.xlu0 %v379, 3
        %v457 = vpop.permute.xlu0 %456
        %458 = vrot.lane.b32.xlu0 %v387, 3
        %v459 = vpop.permute.xlu0 %458
        %460 = vrot.lane.b32.xlu0 %v395, 3
        %v461 = vpop.permute.xlu0 %460
        %462 = vrot.lane.b32.xlu0 %v403, 3
        %v463 = vpop.permute.xlu0 %462
        %464 = vrot.lane.b32.xlu0 %v411, 3
        %v465 = vpop.permute.xlu0 %464
        %466 = vrot.lane.b32.xlu0 %v419, 3
        %v467 = vpop.permute.xlu0 %466
        %468 = vrot.lane.b32.xlu0 %v427, 3
        %v469 = vpop.permute.xlu0 %468
        %470 = vrot.lane.b32.xlu0 %v435, 3
        %v471 = vpop.permute.xlu0 %470
        %vm491 = vcmask 1046528
        %v492 = vrot.slane %v266, 1
        %v493 = vrot.slane %v267, 1
        %v494 = vsel %vm491, %v492, %v493
        %v495 = vrot.slane %v268, 1
        %v496 = vsel %vm491, %v493, %v495
        %v497 = vrot.slane %v269, 1
        %v498 = vsel %vm491, %v495, %v497
        %v499 = vrot.slane %v270, 1
        %v500 = vsel %vm491, %v497, %v499
        %v501 = vrot.slane %v271, 1
        %v502 = vsel %vm491, %v499, %v501
        %v503 = vrot.slane %v272, 1
        %v504 = vsel %vm491, %v501, %v503
        %v505 = vrot.slane %v273, 1
        %v506 = vsel %vm491, %v503, %v505
        %v507 = vrot.slane %v274, 1
        %v508 = vsel %vm491, %v505, %v507
        %v509 = vrot.slane %v275, 1
        %v510 = vsel %vm491, %v507, %v509
        %v511 = vrot.slane %v276, 1
        %v512 = vsel %vm491, %v509, %v511
        %v513 = vrot.slane %v277, 1
        %v514 = vsel %vm491, %v511, %v513
        %v515 = vrot.slane %v278, 1
        %v516 = vsel %vm491, %v513, %v515
        %v517 = vrot.slane %v279, 1
        %v518 = vsel %vm491, %v515, %v517
        %v519 = vrot.slane %v280, 1
        %v520 = vsel %vm491, %v517, %v519
        %v521 = vrot.slane %v281, 1
        %v522 = vsel %vm491, %v519, %v521
        %v523 = vrot.slane %v282, 1
        %v524 = vsel %vm491, %v521, %v523
        %v525 = vrot.slane %v283, 1
        %v526 = vsel %vm491, %v523, %v525
        %v527 = vrot.slane %v284, 1
        %v528 = vsel %vm491, %v525, %v527
        %529 = vrot.lane.b32.xlu0 %v494, 6
        %v530 = vpop.permute.xlu0 %529
        %531 = vrot.lane.b32.xlu0 %v496, 6
        %v532 = vpop.permute.xlu0 %531
        %533 = vrot.lane.b32.xlu0 %v498, 6
        %v534 = vpop.permute.xlu0 %533
        %535 = vrot.lane.b32.xlu0 %v500, 6
        %v536 = vpop.permute.xlu0 %535
        %537 = vrot.lane.b32.xlu0 %v502, 6
        %v538 = vpop.permute.xlu0 %537
        %539 = vrot.lane.b32.xlu0 %v504, 6
        %v540 = vpop.permute.xlu0 %539
        %541 = vrot.lane.b32.xlu0 %v506, 6
        %v542 = vpop.permute.xlu0 %541
        %543 = vrot.lane.b32.xlu0 %v508, 6
        %v544 = vpop.permute.xlu0 %543
        %545 = vrot.lane.b32.xlu0 %v510, 6
        %v546 = vpop.permute.xlu0 %545
        %547 = vrot.lane.b32.xlu0 %v512, 6
        %v548 = vpop.permute.xlu0 %547
        %549 = vrot.lane.b32.xlu0 %v514, 6
        %v550 = vpop.permute.xlu0 %549
        %551 = vrot.lane.b32.xlu0 %v516, 6
        %v552 = vpop.permute.xlu0 %551
        %553 = vrot.lane.b32.xlu0 %v518, 6
        %v554 = vpop.permute.xlu0 %553
        %555 = vrot.lane.b32.xlu0 %v520, 6
        %v556 = vpop.permute.xlu0 %555
        %557 = vrot.lane.b32.xlu0 %v522, 6
        %v558 = vpop.permute.xlu0 %557
        %559 = vrot.lane.b32.xlu0 %v524, 6
        %v560 = vpop.permute.xlu0 %559
        %561 = vrot.lane.b32.xlu0 %v526, 6
        %v562 = vpop.permute.xlu0 %561
        %563 = vrot.lane.b32.xlu0 %v528, 6
        %v564 = vpop.permute.xlu0 %563
        %v566 = vrot.slane %v285, 1
        %v567 = vsel %vm491, %v527, %v566
        %568 = vrot.lane.b32.xlu0 %v496, 9
        %v569 = vpop.permute.xlu0 %568
        %570 = vrot.lane.b32.xlu0 %v498, 9
        %v571 = vpop.permute.xlu0 %570
        %572 = vrot.lane.b32.xlu0 %v500, 9
        %v573 = vpop.permute.xlu0 %572
        %574 = vrot.lane.b32.xlu0 %v502, 9
        %v575 = vpop.permute.xlu0 %574
        %576 = vrot.lane.b32.xlu0 %v504, 9
        %v577 = vpop.permute.xlu0 %576
        %578 = vrot.lane.b32.xlu0 %v506, 9
        %v579 = vpop.permute.xlu0 %578
        %580 = vrot.lane.b32.xlu0 %v508, 9
        %v581 = vpop.permute.xlu0 %580
        %582 = vrot.lane.b32.xlu0 %v510, 9
        %v583 = vpop.permute.xlu0 %582
        %584 = vrot.lane.b32.xlu0 %v512, 9
        %v585 = vpop.permute.xlu0 %584
        %586 = vrot.lane.b32.xlu0 %v514, 9
        %v587 = vpop.permute.xlu0 %586
        %588 = vrot.lane.b32.xlu0 %v516, 9
        %v589 = vpop.permute.xlu0 %588
        %590 = vrot.lane.b32.xlu0 %v518, 9
        %v591 = vpop.permute.xlu0 %590
        %592 = vrot.lane.b32.xlu0 %v520, 9
        %v593 = vpop.permute.xlu0 %592
        %594 = vrot.lane.b32.xlu0 %v522, 9
        %v595 = vpop.permute.xlu0 %594
        %596 = vrot.lane.b32.xlu0 %v524, 9
        %v597 = vpop.permute.xlu0 %596
        %598 = vrot.lane.b32.xlu0 %v526, 9
        %v599 = vpop.permute.xlu0 %598
        %600 = vrot.lane.b32.xlu0 %v528, 9
        %v601 = vpop.permute.xlu0 %600
        %602 = vrot.lane.b32.xlu0 %v567, 9
        %v603 = vpop.permute.xlu0 %602
        %vm604 = vsmask.f32 6400
        %v605 = vrot.slane %v300, 1
        %v606 = vrot.slane %v296, 2
        %v607 = vor.u32 %v605, %v606
        %v608 = vrot.slane %v308, 1
        %v609 = vrot.slane %v304, 2
        %v610 = vor.u32 %v608, %v609
        %v611 = vsel %vm604, %v607, %v610
        %v612 = vrot.slane %v316, 1
        %v613 = vrot.slane %v312, 2
        %v614 = vor.u32 %v612, %v613
        %v615 = vsel %vm604, %v610, %v614
        %v616 = vrot.slane %v324, 1
        %v617 = vrot.slane %v320, 2
        %v618 = vor.u32 %v616, %v617
        %v619 = vsel %vm604, %v614, %v618
        %v620 = vrot.slane %v332, 1
        %v621 = vrot.slane %v328, 2
        %v622 = vor.u32 %v620, %v621
        %v623 = vsel %vm604, %v618, %v622
        %v624 = vrot.slane %v340, 1
        %v625 = vrot.slane %v336, 2
        %v626 = vor.u32 %v624, %v625
        %v627 = vsel %vm604, %v622, %v626
        %v628 = vrot.slane %v348, 1
        %v629 = vrot.slane %v344, 2
        %v630 = vor.u32 %v628, %v629
        %v631 = vsel %vm604, %v626, %v630
        %v632 = vrot.slane %v356, 1
        %v633 = vrot.slane %v352, 2
        %v634 = vor.u32 %v632, %v633
        %v635 = vsel %vm604, %v630, %v634
        %v636 = vrot.slane %v364, 1
        %v637 = vrot.slane %v360, 2
        %v638 = vor.u32 %v636, %v637
        %v639 = vsel %vm604, %v634, %v638
        %v640 = vrot.slane %v372, 1
        %v641 = vrot.slane %v368, 2
        %v642 = vor.u32 %v640, %v641
        %v643 = vsel %vm604, %v638, %v642
        %v644 = vrot.slane %v380, 1
        %v645 = vrot.slane %v376, 2
        %v646 = vor.u32 %v644, %v645
        %v647 = vsel %vm604, %v642, %v646
        %v648 = vrot.slane %v388, 1
        %v649 = vrot.slane %v384, 2
        %v650 = vor.u32 %v648, %v649
        %v651 = vsel %vm604, %v646, %v650
        %v652 = vrot.slane %v396, 1
        %v653 = vrot.slane %v392, 2
        %v654 = vor.u32 %v652, %v653
        %v655 = vsel %vm604, %v650, %v654
        %v656 = vrot.slane %v404, 1
        %v657 = vrot.slane %v400, 2
        %v658 = vor.u32 %v656, %v657
        %v659 = vsel %vm604, %v654, %v658
        %v660 = vrot.slane %v412, 1
        %v661 = vrot.slane %v408, 2
        %v662 = vor.u32 %v660, %v661
        %v663 = vsel %vm604, %v658, %v662
        %v664 = vrot.slane %v420, 1
        %v665 = vrot.slane %v416, 2
        %v666 = vor.u32 %v664, %v665
        %v667 = vsel %vm604, %v662, %v666
        %v668 = vrot.slane %v428, 1
        %v669 = vrot.slane %v424, 2
        %v670 = vor.u32 %v668, %v669
        %v671 = vsel %vm604, %v666, %v670
        %v672 = vshrl.u32 %v284, 16
        %v674 = vrot.slane %v672, 1
        %v675 = vrot.slane %v432, 2
        %v676 = vor.u32 %v674, %v675
        %v677 = vsel %vm604, %v670, %v676
        %v679 = vshrl.u32 %v285, 16
        %v681 = vrot.slane %v679, 1
        %v682 = vshll.u32 %v285, 16
        %v684 = vrot.slane %v682, 2
        %v685 = vor.u32 %v681, %v684
        %v686 = vsel %vm604, %v676, %v685
        %687 = vrot.lane.b32.xlu0 %v611, 12
        %v688 = vpop.permute.xlu0 %687
        %689 = vrot.lane.b32.xlu0 %v615, 12
        %v690 = vpop.permute.xlu0 %689
        %691 = vrot.lane.b32.xlu0 %v619, 12
        %v692 = vpop.permute.xlu0 %691
        %693 = vrot.lane.b32.xlu0 %v623, 12
        %v694 = vpop.permute.xlu0 %693
        %695 = vrot.lane.b32.xlu0 %v627, 12
        %v696 = vpop.permute.xlu0 %695
        %697 = vrot.lane.b32.xlu0 %v631, 12
        %v698 = vpop.permute.xlu0 %697
        %699 = vrot.lane.b32.xlu0 %v635, 12
        %v700 = vpop.permute.xlu0 %699
        %701 = vrot.lane.b32.xlu0 %v639, 12
        %v702 = vpop.permute.xlu0 %701
        %703 = vrot.lane.b32.xlu0 %v643, 12
        %v704 = vpop.permute.xlu0 %703
        %705 = vrot.lane.b32.xlu0 %v647, 12
        %v706 = vpop.permute.xlu0 %705
        %707 = vrot.lane.b32.xlu0 %v651, 12
        %v708 = vpop.permute.xlu0 %707
        %709 = vrot.lane.b32.xlu0 %v655, 12
        %v710 = vpop.permute.xlu0 %709
        %711 = vrot.lane.b32.xlu0 %v659, 12
        %v712 = vpop.permute.xlu0 %711
        %713 = vrot.lane.b32.xlu0 %v663, 12
        %v714 = vpop.permute.xlu0 %713
        %715 = vrot.lane.b32.xlu0 %v667, 12
        %v716 = vpop.permute.xlu0 %715
        %717 = vrot.lane.b32.xlu0 %v671, 12
        %v718 = vpop.permute.xlu0 %717
        %719 = vrot.lane.b32.xlu0 %v677, 12
        %v720 = vpop.permute.xlu0 %719
        %721 = vrot.lane.b32.xlu0 %v686, 12
        %v722 = vpop.permute.xlu0 %721
        %vm723 = vcmask 1045504
        %v724 = vrot.slane %v267, 2
        %v725 = vrot.slane %v268, 2
        %v726 = vsel %vm723, %v724, %v725
        %v727 = vrot.slane %v269, 2
        %v728 = vsel %vm723, %v725, %v727
        %v729 = vrot.slane %v270, 2
        %v730 = vsel %vm723, %v727, %v729
        %v731 = vrot.slane %v271, 2
        %v732 = vsel %vm723, %v729, %v731
        %v733 = vrot.slane %v272, 2
        %v734 = vsel %vm723, %v731, %v733
        %v735 = vrot.slane %v273, 2
        %v736 = vsel %vm723, %v733, %v735
        %v737 = vrot.slane %v274, 2
        %v738 = vsel %vm723, %v735, %v737
        %v739 = vrot.slane %v275, 2
        %v740 = vsel %vm723, %v737, %v739
        %v741 = vrot.slane %v276, 2
        %v742 = vsel %vm723, %v739, %v741
        %v743 = vrot.slane %v277, 2
        %v744 = vsel %vm723, %v741, %v743
        %v745 = vrot.slane %v278, 2
        %v746 = vsel %vm723, %v743, %v745
        %v747 = vrot.slane %v279, 2
        %v748 = vsel %vm723, %v745, %v747
        %v749 = vrot.slane %v280, 2
        %v750 = vsel %vm723, %v747, %v749
        %v751 = vrot.slane %v281, 2
        %v752 = vsel %vm723, %v749, %v751
        %v753 = vrot.slane %v282, 2
        %v754 = vsel %vm723, %v751, %v753
        %v755 = vrot.slane %v283, 2
        %v756 = vsel %vm723, %v753, %v755
        %v757 = vrot.slane %v284, 2
        %v758 = vsel %vm723, %v755, %v757
        %v759 = vrot.slane %v285, 2
        %v760 = vsel %vm723, %v757, %v759
        %761 = vrot.lane.b32.xlu0 %v726, 15
        %v762 = vpop.permute.xlu0 %761
        %763 = vrot.lane.b32.xlu0 %v728, 15
        %v764 = vpop.permute.xlu0 %763
        %765 = vrot.lane.b32.xlu0 %v730, 15
        %v766 = vpop.permute.xlu0 %765
        %767 = vrot.lane.b32.xlu0 %v732, 15
        %v768 = vpop.permute.xlu0 %767
        %769 = vrot.lane.b32.xlu0 %v734, 15
        %v770 = vpop.permute.xlu0 %769
        %771 = vrot.lane.b32.xlu0 %v736, 15
        %v772 = vpop.permute.xlu0 %771
        %773 = vrot.lane.b32.xlu0 %v738, 15
        %v774 = vpop.permute.xlu0 %773
        %775 = vrot.lane.b32.xlu0 %v740, 15
        %v776 = vpop.permute.xlu0 %775
        %777 = vrot.lane.b32.xlu0 %v742, 15
        %v778 = vpop.permute.xlu0 %777
        %779 = vrot.lane.b32.xlu0 %v744, 15
        %v780 = vpop.permute.xlu0 %779
        %781 = vrot.lane.b32.xlu0 %v746, 15
        %v782 = vpop.permute.xlu0 %781
        %783 = vrot.lane.b32.xlu0 %v748, 15
        %v784 = vpop.permute.xlu0 %783
        %785 = vrot.lane.b32.xlu0 %v750, 15
        %v786 = vpop.permute.xlu0 %785
        %787 = vrot.lane.b32.xlu0 %v752, 15
        %v788 = vpop.permute.xlu0 %787
        %789 = vrot.lane.b32.xlu0 %v754, 15
        %v790 = vpop.permute.xlu0 %789
        %791 = vrot.lane.b32.xlu0 %v756, 15
        %v792 = vpop.permute.xlu0 %791
        %793 = vrot.lane.b32.xlu0 %v758, 15
        %v794 = vpop.permute.xlu0 %793
        %795 = vrot.lane.b32.xlu0 %v760, 15
        %v796 = vpop.permute.xlu0 %795
        %v798 = vrot.slane %v286, 2
        %v799 = vsel %vm723, %v759, %v798
        %800 = vrot.lane.b32.xlu0 %v728, 18
        %v801 = vpop.permute.xlu0 %800
        %802 = vrot.lane.b32.xlu0 %v730, 18
        %v803 = vpop.permute.xlu0 %802
        %804 = vrot.lane.b32.xlu0 %v732, 18
        %v805 = vpop.permute.xlu0 %804
        %806 = vrot.lane.b32.xlu0 %v734, 18
        %v807 = vpop.permute.xlu0 %806
        %808 = vrot.lane.b32.xlu0 %v736, 18
        %v809 = vpop.permute.xlu0 %808
        %810 = vrot.lane.b32.xlu0 %v738, 18
        %v811 = vpop.permute.xlu0 %810
        %812 = vrot.lane.b32.xlu0 %v740, 18
        %v813 = vpop.permute.xlu0 %812
        %814 = vrot.lane.b32.xlu0 %v742, 18
        %v815 = vpop.permute.xlu0 %814
        %816 = vrot.lane.b32.xlu0 %v744, 18
        %v817 = vpop.permute.xlu0 %816
        %818 = vrot.lane.b32.xlu0 %v746, 18
        %v819 = vpop.permute.xlu0 %818
        %820 = vrot.lane.b32.xlu0 %v748, 18
        %v821 = vpop.permute.xlu0 %820
        %822 = vrot.lane.b32.xlu0 %v750, 18
        %v823 = vpop.permute.xlu0 %822
        %824 = vrot.lane.b32.xlu0 %v752, 18
        %v825 = vpop.permute.xlu0 %824
        %826 = vrot.lane.b32.xlu0 %v754, 18
        %v827 = vpop.permute.xlu0 %826
        %828 = vrot.lane.b32.xlu0 %v756, 18
        %v829 = vpop.permute.xlu0 %828
        %830 = vrot.lane.b32.xlu0 %v758, 18
        %v831 = vpop.permute.xlu0 %830
        %832 = vrot.lane.b32.xlu0 %v760, 18
        %v833 = vpop.permute.xlu0 %832
        %834 = vrot.lane.b32.xlu0 %v799, 18
        %v835 = vpop.permute.xlu0 %834
        %vm836 = vsmask.f32 5376
        %v837 = vrot.slane %v308, 2
        %v838 = vrot.slane %v304, 3
        %v839 = vor.u32 %v837, %v838
        %v840 = vrot.slane %v316, 2
        %v841 = vrot.slane %v312, 3
        %v842 = vor.u32 %v840, %v841
        %v843 = vsel %vm836, %v839, %v842
        %v844 = vrot.slane %v324, 2
        %v845 = vrot.slane %v320, 3
        %v846 = vor.u32 %v844, %v845
        %v847 = vsel %vm836, %v842, %v846
        %v848 = vrot.slane %v332, 2
        %v849 = vrot.slane %v328, 3
        %v850 = vor.u32 %v848, %v849
        %v851 = vsel %vm836, %v846, %v850
        %v852 = vrot.slane %v340, 2
        %v853 = vrot.slane %v336, 3
        %v854 = vor.u32 %v852, %v853
        %v855 = vsel %vm836, %v850, %v854
        %v856 = vrot.slane %v348, 2
        %v857 = vrot.slane %v344, 3
        %v858 = vor.u32 %v856, %v857
        %v859 = vsel %vm836, %v854, %v858
        %v860 = vrot.slane %v356, 2
        %v861 = vrot.slane %v352, 3
        %v862 = vor.u32 %v860, %v861
        %v863 = vsel %vm836, %v858, %v862
        %v864 = vrot.slane %v364, 2
        %v865 = vrot.slane %v360, 3
        %v866 = vor.u32 %v864, %v865
        %v867 = vsel %vm836, %v862, %v866
        %v868 = vrot.slane %v372, 2
        %v869 = vrot.slane %v368, 3
        %v870 = vor.u32 %v868, %v869
        %v871 = vsel %vm836, %v866, %v870
        %v872 = vrot.slane %v380, 2
        %v873 = vrot.slane %v376, 3
        %v874 = vor.u32 %v872, %v873
        %v875 = vsel %vm836, %v870, %v874
        %v876 = vrot.slane %v388, 2
        %v877 = vrot.slane %v384, 3
        %v878 = vor.u32 %v876, %v877
        %v879 = vsel %vm836, %v874, %v878
        %v880 = vrot.slane %v396, 2
        %v881 = vrot.slane %v392, 3
        %v882 = vor.u32 %v880, %v881
        %v883 = vsel %vm836, %v878, %v882
        %v884 = vrot.slane %v404, 2
        %v885 = vrot.slane %v400, 3
        %v886 = vor.u32 %v884, %v885
        %v887 = vsel %vm836, %v882, %v886
        %v888 = vrot.slane %v412, 2
        %v889 = vrot.slane %v408, 3
        %v890 = vor.u32 %v888, %v889
        %v891 = vsel %vm836, %v886, %v890
        %v892 = vrot.slane %v420, 2
        %v893 = vrot.slane %v416, 3
        %v894 = vor.u32 %v892, %v893
        %v895 = vsel %vm836, %v890, %v894
        %v896 = vrot.slane %v428, 2
        %v897 = vrot.slane %v424, 3
        %v898 = vor.u32 %v896, %v897
        %v899 = vsel %vm836, %v894, %v898
        %v900 = vrot.slane %v672, 2
        %v901 = vrot.slane %v432, 3
        %v902 = vor.u32 %v900, %v901
        %v903 = vsel %vm836, %v898, %v902
        %v904 = vrot.slane %v679, 2
        %v905 = vrot.slane %v682, 3
        %v906 = vor.u32 %v904, %v905
        %v907 = vsel %vm836, %v902, %v906
        %v909 = vshrl.u32 %v286, 16
        %v911 = vrot.slane %v909, 2
        %v912 = vshll.u32 %v286, 16
        %v914 = vrot.slane %v912, 3
        %v915 = vor.u32 %v911, %v914
        %v916 = vsel %vm836, %v906, %v915
        %917 = vrot.lane.b32.xlu0 %v843, 21
        %v918 = vpop.permute.xlu0 %917
        %919 = vrot.lane.b32.xlu0 %v847, 21
        %v920 = vpop.permute.xlu0 %919
        %921 = vrot.lane.b32.xlu0 %v851, 21
        %v922 = vpop.permute.xlu0 %921
        %923 = vrot.lane.b32.xlu0 %v855, 21
        %v924 = vpop.permute.xlu0 %923
        %925 = vrot.lane.b32.xlu0 %v859, 21
        %v926 = vpop.permute.xlu0 %925
        %927 = vrot.lane.b32.xlu0 %v863, 21
        %v928 = vpop.permute.xlu0 %927
        %929 = vrot.lane.b32.xlu0 %v867, 21
        %v930 = vpop.permute.xlu0 %929
        %931 = vrot.lane.b32.xlu0 %v871, 21
        %v932 = vpop.permute.xlu0 %931
        %933 = vrot.lane.b32.xlu0 %v875, 21
        %v934 = vpop.permute.xlu0 %933
        %935 = vrot.lane.b32.xlu0 %v879, 21
        %v936 = vpop.permute.xlu0 %935
        %937 = vrot.lane.b32.xlu0 %v883, 21
        %v938 = vpop.permute.xlu0 %937
        %939 = vrot.lane.b32.xlu0 %v887, 21
        %v940 = vpop.permute.xlu0 %939
        %941 = vrot.lane.b32.xlu0 %v891, 21
        %v942 = vpop.permute.xlu0 %941
        %943 = vrot.lane.b32.xlu0 %v895, 21
        %v944 = vpop.permute.xlu0 %943
        %945 = vrot.lane.b32.xlu0 %v899, 21
        %v946 = vpop.permute.xlu0 %945
        %947 = vrot.lane.b32.xlu0 %v903, 21
        %v948 = vpop.permute.xlu0 %947
        %949 = vrot.lane.b32.xlu0 %v907, 21
        %v950 = vpop.permute.xlu0 %949
        %951 = vrot.lane.b32.xlu0 %v916, 21
        %v952 = vpop.permute.xlu0 %951
        %vm953 = vcmask 1044480
        %v954 = vrot.slane %v268, 3
        %v955 = vrot.slane %v269, 3
        %v956 = vsel %vm953, %v954, %v955
        %v957 = vrot.slane %v270, 3
        %v958 = vsel %vm953, %v955, %v957
        %v959 = vrot.slane %v271, 3
        %v960 = vsel %vm953, %v957, %v959
        %v961 = vrot.slane %v272, 3
        %v962 = vsel %vm953, %v959, %v961
        %v963 = vrot.slane %v273, 3
        %v964 = vsel %vm953, %v961, %v963
        %v965 = vrot.slane %v274, 3
        %v966 = vsel %vm953, %v963, %v965
        %v967 = vrot.slane %v275, 3
        %v968 = vsel %vm953, %v965, %v967
        %v969 = vrot.slane %v276, 3
        %v970 = vsel %vm953, %v967, %v969
        %v971 = vrot.slane %v277, 3
        %v972 = vsel %vm953, %v969, %v971
        %v973 = vrot.slane %v278, 3
        %v974 = vsel %vm953, %v971, %v973
        %v975 = vrot.slane %v279, 3
        %v976 = vsel %vm953, %v973, %v975
        %v977 = vrot.slane %v280, 3
        %v978 = vsel %vm953, %v975, %v977
        %v979 = vrot.slane %v281, 3
        %v980 = vsel %vm953, %v977, %v979
        %v981 = vrot.slane %v282, 3
        %v982 = vsel %vm953, %v979, %v981
        %v983 = vrot.slane %v283, 3
        %v984 = vsel %vm953, %v981, %v983
        %v985 = vrot.slane %v284, 3
        %v986 = vsel %vm953, %v983, %v985
        %v987 = vrot.slane %v285, 3
        %v988 = vsel %vm953, %v985, %v987
        %v989 = vrot.slane %v286, 3
        %v990 = vsel %vm953, %v987, %v989
        %991 = vrot.lane.b32.xlu0 %v956, 24
        %v992 = vpop.permute.xlu0 %991
        %993 = vrot.lane.b32.xlu0 %v958, 24
        %v994 = vpop.permute.xlu0 %993
        %995 = vrot.lane.b32.xlu0 %v960, 24
        %v996 = vpop.permute.xlu0 %995
        %997 = vrot.lane.b32.xlu0 %v962, 24
        %v998 = vpop.permute.xlu0 %997
        %999 = vrot.lane.b32.xlu0 %v964, 24
        %v1000 = vpop.permute.xlu0 %999
        %1001 = vrot.lane.b32.xlu0 %v966, 24
        %v1002 = vpop.permute.xlu0 %1001
        %1003 = vrot.lane.b32.xlu0 %v968, 24
        %v1004 = vpop.permute.xlu0 %1003
        %1005 = vrot.lane.b32.xlu0 %v970, 24
        %v1006 = vpop.permute.xlu0 %1005
        %1007 = vrot.lane.b32.xlu0 %v972, 24
        %v1008 = vpop.permute.xlu0 %1007
        %1009 = vrot.lane.b32.xlu0 %v974, 24
        %v1010 = vpop.permute.xlu0 %1009
        %1011 = vrot.lane.b32.xlu0 %v976, 24
        %v1012 = vpop.permute.xlu0 %1011
        %1013 = vrot.lane.b32.xlu0 %v978, 24
        %v1014 = vpop.permute.xlu0 %1013
        %1015 = vrot.lane.b32.xlu0 %v980, 24
        %v1016 = vpop.permute.xlu0 %1015
        %1017 = vrot.lane.b32.xlu0 %v982, 24
        %v1018 = vpop.permute.xlu0 %1017
        %1019 = vrot.lane.b32.xlu0 %v984, 24
        %v1020 = vpop.permute.xlu0 %1019
        %1021 = vrot.lane.b32.xlu0 %v986, 24
        %v1022 = vpop.permute.xlu0 %1021
        %1023 = vrot.lane.b32.xlu0 %v988, 24
        %v1024 = vpop.permute.xlu0 %1023
        %1025 = vrot.lane.b32.xlu0 %v990, 24
        %v1026 = vpop.permute.xlu0 %1025
        %vm1027 = vcmask 23552
        %v1029 = vsel %vm1027, %v266, %v437
        %v1031 = vsel %vm1027, %v267, %v439
        %v1033 = vsel %vm1027, %v268, %v441
        %v1035 = vsel %vm1027, %v269, %v443
        %v1037 = vsel %vm1027, %v270, %v445
        %v1039 = vsel %vm1027, %v271, %v447
        %v1041 = vsel %vm1027, %v272, %v449
        %v1043 = vsel %vm1027, %v273, %v451
        %v1045 = vsel %vm1027, %v274, %v453
        %v1047 = vsel %vm1027, %v275, %v455
        %v1049 = vsel %vm1027, %v276, %v457
        %v1051 = vsel %vm1027, %v277, %v459
        %v1053 = vsel %vm1027, %v278, %v461
        %v1055 = vsel %vm1027, %v279, %v463
        %v1057 = vsel %vm1027, %v280, %v465
        %v1059 = vsel %vm1027, %v281, %v467
        %v1061 = vsel %vm1027, %v282, %v469
        %v1063 = vsel %vm1027, %v283, %v471
        %vm1064 = vcmask 48128
        %v1066 = vsel %vm1064, %v1029, %v530
        %v1068 = vsel %vm1064, %v1031, %v532
        %v1070 = vsel %vm1064, %v1033, %v534
        %v1072 = vsel %vm1064, %v1035, %v536
        %v1074 = vsel %vm1064, %v1037, %v538
        %v1076 = vsel %vm1064, %v1039, %v540
        %v1078 = vsel %vm1064, %v1041, %v542
        %v1080 = vsel %vm1064, %v1043, %v544
        %v1082 = vsel %vm1064, %v1045, %v546
        %v1084 = vsel %vm1064, %v1047, %v548
        %v1086 = vsel %vm1064, %v1049, %v550
        %v1088 = vsel %vm1064, %v1051, %v552
        %v1090 = vsel %vm1064, %v1053, %v554
        %v1092 = vsel %vm1064, %v1055, %v556
        %v1094 = vsel %vm1064, %v1057, %v558
        %v1096 = vsel %vm1064, %v1059, %v560
        %v1098 = vsel %vm1064, %v1061, %v562
        %v1100 = vsel %vm1064, %v1063, %v564
        %vm1101 = vcmask 72704
        %v1103 = vsel %vm1101, %v1066, %v569
        %v1105 = vsel %vm1101, %v1068, %v571
        %v1107 = vsel %vm1101, %v1070, %v573
        %v1109 = vsel %vm1101, %v1072, %v575
        %v1111 = vsel %vm1101, %v1074, %v577
        %v1113 = vsel %vm1101, %v1076, %v579
        %v1115 = vsel %vm1101, %v1078, %v581
        %v1117 = vsel %vm1101, %v1080, %v583
        %v1119 = vsel %vm1101, %v1082, %v585
        %v1121 = vsel %vm1101, %v1084, %v587
        %v1123 = vsel %vm1101, %v1086, %v589
        %v1125 = vsel %vm1101, %v1088, %v591
        %v1127 = vsel %vm1101, %v1090, %v593
        %v1129 = vsel %vm1101, %v1092, %v595
        %v1131 = vsel %vm1101, %v1094, %v597
        %v1133 = vsel %vm1101, %v1096, %v599
        %v1135 = vsel %vm1101, %v1098, %v601
        %v1137 = vsel %vm1101, %v1100, %v603
        %vm1138 = vcmask 97280
        %v1140 = vsel %vm1138, %v1103, %v688
        %v1142 = vsel %vm1138, %v1105, %v690
        %v1144 = vsel %vm1138, %v1107, %v692
        %v1146 = vsel %vm1138, %v1109, %v694
        %v1148 = vsel %vm1138, %v1111, %v696
        %v1150 = vsel %vm1138, %v1113, %v698
        %v1152 = vsel %vm1138, %v1115, %v700
        %v1154 = vsel %vm1138, %v1117, %v702
        %v1156 = vsel %vm1138, %v1119, %v704
        %v1158 = vsel %vm1138, %v1121, %v706
        %v1160 = vsel %vm1138, %v1123, %v708
        %v1162 = vsel %vm1138, %v1125, %v710
        %v1164 = vsel %vm1138, %v1127, %v712
        %v1166 = vsel %vm1138, %v1129, %v714
        %v1168 = vsel %vm1138, %v1131, %v716
        %v1170 = vsel %vm1138, %v1133, %v718
        %v1172 = vsel %vm1138, %v1135, %v720
        %v1174 = vsel %vm1138, %v1137, %v722
        %vm1175 = vcmask 121856
        %v1177 = vsel %vm1175, %v1140, %v762
        %v1179 = vsel %vm1175, %v1142, %v764
        %v1181 = vsel %vm1175, %v1144, %v766
        %v1183 = vsel %vm1175, %v1146, %v768
        %v1185 = vsel %vm1175, %v1148, %v770
        %v1187 = vsel %vm1175, %v1150, %v772
        %v1189 = vsel %vm1175, %v1152, %v774
        %v1191 = vsel %vm1175, %v1154, %v776
        %v1193 = vsel %vm1175, %v1156, %v778
        %v1195 = vsel %vm1175, %v1158, %v780
        %v1197 = vsel %vm1175, %v1160, %v782
        %v1199 = vsel %vm1175, %v1162, %v784
        %v1201 = vsel %vm1175, %v1164, %v786
        %v1203 = vsel %vm1175, %v1166, %v788
        %v1205 = vsel %vm1175, %v1168, %v790
        %v1207 = vsel %vm1175, %v1170, %v792
        %v1209 = vsel %vm1175, %v1172, %v794
        %v1211 = vsel %vm1175, %v1174, %v796
        %vm1212 = vcmask 146432
        %v1214 = vsel %vm1212, %v1177, %v801
        %v1216 = vsel %vm1212, %v1179, %v803
        %v1218 = vsel %vm1212, %v1181, %v805
        %v1220 = vsel %vm1212, %v1183, %v807
        %v1222 = vsel %vm1212, %v1185, %v809
        %v1224 = vsel %vm1212, %v1187, %v811
        %v1226 = vsel %vm1212, %v1189, %v813
        %v1228 = vsel %vm1212, %v1191, %v815
        %v1230 = vsel %vm1212, %v1193, %v817
        %v1232 = vsel %vm1212, %v1195, %v819
        %v1234 = vsel %vm1212, %v1197, %v821
        %v1236 = vsel %vm1212, %v1199, %v823
        %v1238 = vsel %vm1212, %v1201, %v825
        %v1240 = vsel %vm1212, %v1203, %v827
        %v1242 = vsel %vm1212, %v1205, %v829
        %v1244 = vsel %vm1212, %v1207, %v831
        %v1246 = vsel %vm1212, %v1209, %v833
        %v1248 = vsel %vm1212, %v1211, %v835
        %vm1249 = vcmask 171008
        %v1251 = vsel %vm1249, %v1214, %v918
        %v1253 = vsel %vm1249, %v1216, %v920
        %v1255 = vsel %vm1249, %v1218, %v922
        %v1257 = vsel %vm1249, %v1220, %v924
        %v1259 = vsel %vm1249, %v1222, %v926
        %v1261 = vsel %vm1249, %v1224, %v928
        %v1263 = vsel %vm1249, %v1226, %v930
        %v1265 = vsel %vm1249, %v1228, %v932
        %v1267 = vsel %vm1249, %v1230, %v934
        %v1269 = vsel %vm1249, %v1232, %v936
        %v1271 = vsel %vm1249, %v1234, %v938
        %v1273 = vsel %vm1249, %v1236, %v940
        %v1275 = vsel %vm1249, %v1238, %v942
        %v1277 = vsel %vm1249, %v1240, %v944
        %v1279 = vsel %vm1249, %v1242, %v946
        %v1281 = vsel %vm1249, %v1244, %v948
        %v1283 = vsel %vm1249, %v1246, %v950
        %v1285 = vsel %vm1249, %v1248, %v952
        %vm1286 = vcmask 195584
        %v1288 = vsel %vm1286, %v1251, %v992
        %v1290 = vsel %vm1286, %v1253, %v994
        %v1292 = vsel %vm1286, %v1255, %v996
        %v1294 = vsel %vm1286, %v1257, %v998
        %v1296 = vsel %vm1286, %v1259, %v1000
        %v1298 = vsel %vm1286, %v1261, %v1002
        %v1300 = vsel %vm1286, %v1263, %v1004
        %v1302 = vsel %vm1286, %v1265, %v1006
        %v1304 = vsel %vm1286, %v1267, %v1008
        %v1306 = vsel %vm1286, %v1269, %v1010
        %v1308 = vsel %vm1286, %v1271, %v1012
        %v1310 = vsel %vm1286, %v1273, %v1014
        %v1312 = vsel %vm1286, %v1275, %v1016
        %v1314 = vsel %vm1286, %v1277, %v1018
        %v1316 = vsel %vm1286, %v1279, %v1020
        %v1318 = vsel %vm1286, %v1281, %v1022
        %v1320 = vsel %vm1286, %v1283, %v1024
        %v1322 = vsel %vm1286, %v1285, %v1026
        %v1323 = vld [vmem:[%s1] sm:$0xf]
        %v1324 = vld [vmem:[%s1 + $0x4] sm:$0xf]
        %v1325 = vld [vmem:[%s1 + $0x8] sm:$0xf]
        %v1326 = vld [vmem:[%s1 + $0xc] sm:$0x3]
        %v1327 = vld [vmem:[%s2] sm:$0x1]
        %v1329 = vlaneseq
        %v1330 = vshrl.u32 %v1329, 7
        %v1331 = vsub.s32 0, %v1330
        %v1332 = vrot.slane %v1327, %v1331
        %v1338 = vunpack.c.l.b16 %v1323
        %v1339 = vunpack.c.l.b16 %v1324
        %v1340 = vunpack.c.l.b16 %v1325
        %v1341 = vunpack.c.l.b16 %v1326
        %v1342 = vpack.c.b16 %v1339, %v1338
        %v1343 = vpack.c.b16 %v1341, %v1340
        %vm1345 = vcmask 220160
        %v1346 = vsel %vm1345, %v1288, 0
        %v1348 = vsel %vm1345, %v1290, 0
        %v1350 = vsel %vm1345, %v1292, 0
        %v1352 = vsel %vm1345, %v1294, 0
        %v1354 = vsel %vm1345, %v1296, 0
        %v1356 = vsel %vm1345, %v1298, 0
        %v1358 = vsel %vm1345, %v1300, 0
        %v1360 = vsel %vm1345, %v1302, 0
        %v1362 = vsel %vm1345, %v1304, 0
        %v1364 = vsel %vm1345, %v1306, 0
        %v1366 = vsel %vm1345, %v1308, 0
        %v1368 = vsel %vm1345, %v1310, 0
        %v1370 = vsel %vm1345, %v1312, 0
        %v1372 = vsel %vm1345, %v1314, 0
        %v1374 = vsel %vm1345, %v1316, 0
        %v1376 = vsel %vm1345, %v1318, 0
        %v1378 = vsel %vm1345, %v1320, 0
        %v1380 = vsel %vm1345, %v1322, 0
        %vm1382 = vcmask 1044480
        %vm1383 = vcmask 1045504
        %v1384 = vsel %vm1382, 4294967295, 65535
        %v1385 = vsel %vm1383, %v1384, 0
        %v1387 = vand.u32 %v1343, %v1385
        %1389 = vmatprep.subr.bf16.mxu0 0
        %1390 = vmatpush1.bf16.msra.mxu0 %v1342
        %1391 = vmatprep.subr.bf16.mxu0 0
        %1392 = vmatpush1.bf16.msra.mxu0 %v1387
        %1393 = vmatprep.subr.bf16.mxu0 0
        %1394 = vmatpush1.bf16.msra.mxu0 0
        %1395 = vmatprep.subr.bf16.mxu0 0
        %1396 = vmatpush1.bf16.msra.mxu0 0
        %1397 = vmatprep.subr.bf16.mxu0 0
        %1398 = vmatpush1.bf16.msra.mxu0 0
        %1399 = vmatprep.subr.bf16.mxu0 0
        %1400 = vmatpush1.bf16.msra.mxu0 0
        %1401 = vmatprep.subr.bf16.mxu0 0
        %1402 = vmatpush1.bf16.msra.mxu0 0
        %1403 = vmatprep.subr.bf16.mxu0 0
        %1404 = vmatpush1.bf16.msra.mxu0 0
        %1405 = vmatprep.subr.bf16.mxu0 0
        %1406 = vmatpush1.bf16.msra.mxu0 0
        %1407 = vmatprep.subr.bf16.mxu0 0
        %1408 = vmatpush1.bf16.msra.mxu0 0
        %1409 = vmatprep.subr.bf16.mxu0 0
        %1410 = vmatpush1.bf16.msra.mxu0 0
        %1411 = vmatprep.subr.bf16.mxu0 0
        %1412 = vmatpush1.bf16.msra.mxu0 0
        %1413 = vmatprep.subr.bf16.mxu0 0
        %1414 = vmatpush1.bf16.msra.mxu0 0
        %1415 = vmatprep.subr.bf16.mxu0 0
        %1416 = vmatpush1.bf16.msra.mxu0 0
        %1417 = vmatprep.subr.bf16.mxu0 0
        %1418 = vmatpush1.bf16.msra.mxu0 0
        %1419 = vmatprep.subr.bf16.mxu0 0
        %1420 = vmatpush1.bf16.msra.mxu0 0
        %1421 = vmatprep.mubr.bf16.mxu0 0
        %1422 = vmatmul.mubr.bf16.gmra.mrb[0].mxu0 %v1346
        %v1423 = vpop.f32.mrb[0].mxu0
        %v1424 = vadd.f32 %v1332, %v1423
        %v1425 = vpop.f32.mrb[0].mxu0
        %v1426 = vpop.f32.mrb[0].mxu0
        %v1427 = vadd.f32 %v1332, %v1426
        %v1428 = vpop.f32.mrb[0].mxu0
        %1429 = vmatprep.mubr.bf16.mxu0 0
        %1430 = vmatmul.mubr.bf16.gmra.mrb[0].mxu0 %v1348
        %v1431 = vpop.f32.mrb[0].mxu0
        %v1432 = vadd.f32 %v1332, %v1431
        %v1433 = vpop.f32.mrb[0].mxu0
        %v1434 = vpop.f32.mrb[0].mxu0
        %v1435 = vadd.f32 %v1332, %v1434
        %v1436 = vpop.f32.mrb[0].mxu0
        %1437 = vmatprep.mubr.bf16.mxu0 0
        %1438 = vmatmul.mubr.bf16.gmra.mrb[0].mxu0 %v1350
        %v1439 = vpop.f32.mrb[0].mxu0
        %v1440 = vadd.f32 %v1332, %v1439
        %v1441 = vpop.f32.mrb[0].mxu0
        %v1442 = vpop.f32.mrb[0].mxu0
        %v1443 = vadd.f32 %v1332, %v1442
        %v1444 = vpop.f32.mrb[0].mxu0
        %1445 = vmatprep.mubr.bf16.mxu0 0
        %1446 = vmatmul.mubr.bf16.gmra.mrb[0].mxu0 %v1352
        %v1447 = vpop.f32.mrb[0].mxu0
        %v1448 = vadd.f32 %v1332, %v1447
        %v1449 = vpop.f32.mrb[0].mxu0
        %v1450 = vpop.f32.mrb[0].mxu0
        %v1451 = vadd.f32 %v1332, %v1450
        %v1452 = vpop.f32.mrb[0].mxu0
        %1453 = vmatprep.mubr.bf16.mxu0 0
        %1454 = vmatmul.mubr.bf16.gmra.mrb[0].mxu0 %v1354
        %v1455 = vpop.f32.mrb[0].mxu0
        %v1456 = vadd.f32 %v1332, %v1455
        %v1457 = vpop.f32.mrb[0].mxu0
        %v1458 = vpop.f32.mrb[0].mxu0
        %v1459 = vadd.f32 %v1332, %v1458
        %v1460 = vpop.f32.mrb[0].mxu0
        %1461 = vmatprep.mubr.bf16.mxu0 0
        %1462 = vmatmul.mubr.bf16.gmra.mrb[0].mxu0 %v1356
        %v1463 = vpop.f32.mrb[0].mxu0
        %v1464 = vadd.f32 %v1332, %v1463
        %v1465 = vpop.f32.mrb[0].mxu0
        %v1466 = vpop.f32.mrb[0].mxu0
        %v1467 = vadd.f32 %v1332, %v1466
        %v1468 = vpop.f32.mrb[0].mxu0
        %1469 = vmatprep.mubr.bf16.mxu0 0
        %1470 = vmatmul.mubr.bf16.gmra.mrb[0].mxu0 %v1358
        %v1471 = vpop.f32.mrb[0].mxu0
        %v1472 = vadd.f32 %v1332, %v1471
        %v1473 = vpop.f32.mrb[0].mxu0
        %v1474 = vpop.f32.mrb[0].mxu0
        %v1475 = vadd.f32 %v1332, %v1474
        %v1476 = vpop.f32.mrb[0].mxu0
        %1477 = vmatprep.mubr.bf16.mxu0 0
        %1478 = vmatmul.mubr.bf16.gmra.mrb[0].mxu0 %v1360
        %v1479 = vpop.f32.mrb[0].mxu0
        %v1480 = vadd.f32 %v1332, %v1479
        %v1481 = vpop.f32.mrb[0].mxu0
        %v1482 = vpop.f32.mrb[0].mxu0
        %v1483 = vadd.f32 %v1332, %v1482
        %v1484 = vpop.f32.mrb[0].mxu0
        %1485 = vmatprep.mubr.bf16.mxu0 0
        %1486 = vmatmul.mubr.bf16.gmra.mrb[0].mxu0 %v1362
        %v1487 = vpop.f32.mrb[0].mxu0
        %v1488 = vadd.f32 %v1332, %v1487
        %v1489 = vpop.f32.mrb[0].mxu0
        %v1490 = vpop.f32.mrb[0].mxu0
        %v1491 = vadd.f32 %v1332, %v1490
        %v1492 = vpop.f32.mrb[0].mxu0
        %1493 = vmatprep.mubr.bf16.mxu0 0
        %1494 = vmatmul.mubr.bf16.gmra.mrb[0].mxu0 %v1364
        %v1495 = vpop.f32.mrb[0].mxu0
        %v1496 = vadd.f32 %v1332, %v1495
        %v1497 = vpop.f32.mrb[0].mxu0
        %v1498 = vpop.f32.mrb[0].mxu0
        %v1499 = vadd.f32 %v1332, %v1498
        %v1500 = vpop.f32.mrb[0].mxu0
        %1501 = vmatprep.mubr.bf16.mxu0 0
        %1502 = vmatmul.mubr.bf16.gmra.mrb[0].mxu0 %v1366
        %v1503 = vpop.f32.mrb[0].mxu0
        %v1504 = vadd.f32 %v1332, %v1503
        %v1505 = vpop.f32.mrb[0].mxu0
        %v1506 = vpop.f32.mrb[0].mxu0
        %v1507 = vadd.f32 %v1332, %v1506
        %v1508 = vpop.f32.mrb[0].mxu0
        %1509 = vmatprep.mubr.bf16.mxu0 0
        %1510 = vmatmul.mubr.bf16.gmra.mrb[0].mxu0 %v1368
        %v1511 = vpop.f32.mrb[0].mxu0
        %v1512 = vadd.f32 %v1332, %v1511
        %v1513 = vpop.f32.mrb[0].mxu0
        %v1514 = vpop.f32.mrb[0].mxu0
        %v1515 = vadd.f32 %v1332, %v1514
        %v1516 = vpop.f32.mrb[0].mxu0
        %1517 = vmatprep.mubr.bf16.mxu0 0
        %1518 = vmatmul.mubr.bf16.gmra.mrb[0].mxu0 %v1370
        %v1519 = vpop.f32.mrb[0].mxu0
        %v1520 = vadd.f32 %v1332, %v1519
        %v1521 = vpop.f32.mrb[0].mxu0
        %v1522 = vpop.f32.mrb[0].mxu0
        %v1523 = vadd.f32 %v1332, %v1522
        %v1524 = vpop.f32.mrb[0].mxu0
        %1525 = vmatprep.mubr.bf16.mxu0 0
        %1526 = vmatmul.mubr.bf16.gmra.mrb[0].mxu0 %v1372
        %v1527 = vpop.f32.mrb[0].mxu0
        %v1528 = vadd.f32 %v1332, %v1527
        %v1529 = vpop.f32.mrb[0].mxu0
        %v1530 = vpop.f32.mrb[0].mxu0
        %v1531 = vadd.f32 %v1332, %v1530
        %v1532 = vpop.f32.mrb[0].mxu0
        %1533 = vmatprep.mubr.bf16.mxu0 0
        %1534 = vmatmul.mubr.bf16.gmra.mrb[0].mxu0 %v1374
        %v1535 = vpop.f32.mrb[0].mxu0
        %v1536 = vadd.f32 %v1332, %v1535
        %v1537 = vpop.f32.mrb[0].mxu0
        %v1538 = vpop.f32.mrb[0].mxu0
        %v1539 = vadd.f32 %v1332, %v1538
        %v1540 = vpop.f32.mrb[0].mxu0
        %1541 = vmatprep.mubr.bf16.mxu0 0
        %1542 = vmatmul.mubr.bf16.gmra.mrb[0].mxu0 %v1376
        %v1543 = vpop.f32.mrb[0].mxu0
        %v1544 = vadd.f32 %v1332, %v1543
        %v1545 = vpop.f32.mrb[0].mxu0
        %v1546 = vpop.f32.mrb[0].mxu0
        %v1547 = vadd.f32 %v1332, %v1546
        %v1548 = vpop.f32.mrb[0].mxu0
        %1549 = vmatprep.mubr.bf16.mxu0 0
        %1550 = vmatmul.mubr.bf16.gmra.mrb[0].mxu0 %v1378
        %v1551 = vpop.f32.mrb[0].mxu0
        %v1552 = vadd.f32 %v1332, %v1551
        %v1553 = vpop.f32.mrb[0].mxu0
        %v1554 = vpop.f32.mrb[0].mxu0
        %v1555 = vadd.f32 %v1332, %v1554
        %v1556 = vpop.f32.mrb[0].mxu0
        %1557 = vmatprep.mubr.bf16.mxu0 0
        %1558 = vmatmul.mubr.bf16.gmra.mrb[0].mxu0 %v1380
        %v1559 = vpop.f32.mrb[0].mxu0
        %v1560 = vadd.f32 %v1332, %v1559
        %v1561 = vpop.f32.mrb[0].mxu0
        %v1562 = vpop.f32.mrb[0].mxu0
        %v1563 = vadd.f32 %v1332, %v1562
        %v1564 = vpop.f32.mrb[0].mxu0
        %1565 = vdwg.mxu0
        %v1566 = vmax.f32 %v1424, 0.0
        %v1567 = vmax.f32 %v1427, 0.0
        %v1568 = vmax.f32 %v1432, 0.0
        %v1569 = vmax.f32 %v1435, 0.0
        %v1570 = vmax.f32 %v1440, 0.0
        %v1571 = vmax.f32 %v1443, 0.0
        %v1572 = vmax.f32 %v1448, 0.0
        %v1573 = vmax.f32 %v1451, 0.0
        %v1574 = vmax.f32 %v1456, 0.0
        %v1575 = vmax.f32 %v1459, 0.0
        %v1576 = vmax.f32 %v1464, 0.0
        %v1577 = vmax.f32 %v1467, 0.0
        %v1578 = vmax.f32 %v1472, 0.0
        %v1579 = vmax.f32 %v1475, 0.0
        %v1580 = vmax.f32 %v1480, 0.0
        %v1581 = vmax.f32 %v1483, 0.0
        %v1582 = vmax.f32 %v1488, 0.0
        %v1583 = vmax.f32 %v1491, 0.0
        %v1584 = vmax.f32 %v1496, 0.0
        %v1585 = vmax.f32 %v1499, 0.0
        %v1586 = vmax.f32 %v1504, 0.0
        %v1587 = vmax.f32 %v1507, 0.0
        %v1588 = vmax.f32 %v1512, 0.0
        %v1589 = vmax.f32 %v1515, 0.0
        %v1590 = vmax.f32 %v1520, 0.0
        %v1591 = vmax.f32 %v1523, 0.0
        %v1592 = vmax.f32 %v1528, 0.0
        %v1593 = vmax.f32 %v1531, 0.0
        %v1594 = vmax.f32 %v1536, 0.0
        %v1595 = vmax.f32 %v1539, 0.0
        %v1596 = vmax.f32 %v1544, 0.0
        %v1597 = vmax.f32 %v1547, 0.0
        %v1598 = vmax.f32 %v1552, 0.0
        %v1599 = vmax.f32 %v1555, 0.0
        %v1600 = vmax.f32 %v1560, 0.0
        %v1601 = vmax.f32 %v1563, 0.0
        %v1602 = vlaneseq
        %v1603 = vshrl.u32 %v1602, 7
        %v1604 = vadd.s32 %v1603, 8
        %v1605 = vadd.s32 %v1603, 16
        %v1606 = vadd.s32 %v1603, 24
        %v1607 = vadd.s32 %v1603, 32
        %v1608 = vadd.s32 %v1603, 40
        %v1609 = vadd.s32 %v1603, 48
        %v1610 = vadd.s32 %v1603, 56
        %v1611 = vadd.s32 %v1603, 64
        %v1612 = vadd.s32 %v1603, 72
        %v1613 = vadd.s32 %v1603, 80
        %v1614 = vadd.s32 %v1603, 88
        %v1615 = vadd.s32 %v1603, 96
        %v1616 = vadd.s32 %v1603, 104
        %v1617 = vadd.s32 %v1603, 112
        %v1618 = vadd.s32 %v1603, 120
        %v1619 = vadd.s32 %v1603, 128
        %v1620 = vadd.s32 %v1603, 136
        %v1621 = vadd.s32 %v1603, 144
        %v1622 = vadd.s32 %v1603, 152
        %v1623 = vadd.s32 %v1603, 160
        %v1624 = vadd.s32 %v1603, 168
        %v1625 = vadd.s32 %v1603, 176
        %v1626 = vadd.s32 %v1603, 184
        %v1627 = vadd.s32 %v1603, 192
        %v1628 = vadd.s32 %v1603, 200
        %v1629 = vadd.s32 %v1603, 208
        %v1630 = vadd.s32 %v1603, 216
        %v1631 = vadd.s32 %v1603, 224
        %v1632 = vadd.s32 %v1603, 232
        %v1633 = vadd.s32 %v1603, 240
        %v1634 = vadd.s32 %v1603, 248
        %v1635 = vadd.s32 %v1603, 256
        %v1636 = vadd.s32 %v1603, 264
        %v1637 = vadd.s32 %v1603, 272
        %v1638 = vadd.s32 %v1603, 280
        %vm1639 = vcmp.lt.s32.totalorder %v1603, 0
        %v1640 = vsub.s32 0, %v1603
        %v1641 = vsel %vm1639, %v1640, %v1603
        %v1642 = vmul.u32.u64.compose %v1641, 3817748708
        %v1643 = vextract.low.u32 %v1642
        %v1644 = vextract.high.u32 %v1642
        %v1645 = vshrl.u32 %v1644, 4
        %v1646 = vmul.u32 %v1645, 18
        %v1647 = vsub.s32 %v1641, %v1646
        %v1648 = vsub.s32 0, %v1647
        %v1649 = vsel %vm1639, %v1648, %v1647
        %vm1650 = vcmp.lt.s32.totalorder %v1604, 0
        %v1651 = vsub.s32 0, %v1604
        %v1652 = vsel %vm1650, %v1651, %v1604
        %v1653 = vmul.u32.u64.compose %v1652, 3817748708
        %v1654 = vextract.low.u32 %v1653
        %v1655 = vextract.high.u32 %v1653
        %v1656 = vshrl.u32 %v1655, 4
        %v1657 = vmul.u32 %v1656, 18
        %v1658 = vsub.s32 %v1652, %v1657
        %v1659 = vsub.s32 0, %v1658
        %v1660 = vsel %vm1650, %v1659, %v1658
        %vm1661 = vcmp.lt.s32.totalorder %v1605, 0
        %v1662 = vsub.s32 0, %v1605
        %v1663 = vsel %vm1661, %v1662, %v1605
        %v1664 = vmul.u32.u64.compose %v1663, 3817748708
        %v1665 = vextract.low.u32 %v1664
        %v1666 = vextract.high.u32 %v1664
        %v1667 = vshrl.u32 %v1666, 4
        %v1668 = vmul.u32 %v1667, 18
        %v1669 = vsub.s32 %v1663, %v1668
        %v1670 = vsub.s32 0, %v1669
        %v1671 = vsel %vm1661, %v1670, %v1669
        %vm1672 = vcmp.lt.s32.totalorder %v1606, 0
        %v1673 = vsub.s32 0, %v1606
        %v1674 = vsel %vm1672, %v1673, %v1606
        %v1675 = vmul.u32.u64.compose %v1674, 3817748708
        %v1676 = vextract.low.u32 %v1675
        %v1677 = vextract.high.u32 %v1675
        %v1678 = vshrl.u32 %v1677, 4
        %v1679 = vmul.u32 %v1678, 18
        %v1680 = vsub.s32 %v1674, %v1679
        %v1681 = vsub.s32 0, %v1680
        %v1682 = vsel %vm1672, %v1681, %v1680
        %vm1683 = vcmp.lt.s32.totalorder %v1607, 0
        %v1684 = vsub.s32 0, %v1607
        %v1685 = vsel %vm1683, %v1684, %v1607
        %v1686 = vmul.u32.u64.compose %v1685, 3817748708
        %v1687 = vextract.low.u32 %v1686
        %v1688 = vextract.high.u32 %v1686
        %v1689 = vshrl.u32 %v1688, 4
        %v1690 = vmul.u32 %v1689, 18
        %v1691 = vsub.s32 %v1685, %v1690
        %v1692 = vsub.s32 0, %v1691
        %v1693 = vsel %vm1683, %v1692, %v1691
        %vm1694 = vcmp.lt.s32.totalorder %v1608, 0
        %v1695 = vsub.s32 0, %v1608
        %v1696 = vsel %vm1694, %v1695, %v1608
        %v1697 = vmul.u32.u64.compose %v1696, 3817748708
        %v1698 = vextract.low.u32 %v1697
        %v1699 = vextract.high.u32 %v1697
        %v1700 = vshrl.u32 %v1699, 4
        %v1701 = vmul.u32 %v1700, 18
        %v1702 = vsub.s32 %v1696, %v1701
        %v1703 = vsub.s32 0, %v1702
        %v1704 = vsel %vm1694, %v1703, %v1702
        %vm1705 = vcmp.lt.s32.totalorder %v1609, 0
        %v1706 = vsub.s32 0, %v1609
        %v1707 = vsel %vm1705, %v1706, %v1609
        %v1708 = vmul.u32.u64.compose %v1707, 3817748708
        %v1709 = vextract.low.u32 %v1708
        %v1710 = vextract.high.u32 %v1708
        %v1711 = vshrl.u32 %v1710, 4
        %v1712 = vmul.u32 %v1711, 18
        %v1713 = vsub.s32 %v1707, %v1712
        %v1714 = vsub.s32 0, %v1713
        %v1715 = vsel %vm1705, %v1714, %v1713
        %vm1716 = vcmp.lt.s32.totalorder %v1610, 0
        %v1717 = vsub.s32 0, %v1610
        %v1718 = vsel %vm1716, %v1717, %v1610
        %v1719 = vmul.u32.u64.compose %v1718, 3817748708
        %v1720 = vextract.low.u32 %v1719
        %v1721 = vextract.high.u32 %v1719
        %v1722 = vshrl.u32 %v1721, 4
        %v1723 = vmul.u32 %v1722, 18
        %v1724 = vsub.s32 %v1718, %v1723
        %v1725 = vsub.s32 0, %v1724
        %v1726 = vsel %vm1716, %v1725, %v1724
        %vm1727 = vcmp.lt.s32.totalorder %v1611, 0
        %v1728 = vsub.s32 0, %v1611
        %v1729 = vsel %vm1727, %v1728, %v1611
        %v1730 = vmul.u32.u64.compose %v1729, 3817748708
        %v1731 = vextract.low.u32 %v1730
        %v1732 = vextract.high.u32 %v1730
        %v1733 = vshrl.u32 %v1732, 4
        %v1734 = vmul.u32 %v1733, 18
        %v1735 = vsub.s32 %v1729, %v1734
        %v1736 = vsub.s32 0, %v1735
        %v1737 = vsel %vm1727, %v1736, %v1735
        %vm1738 = vcmp.lt.s32.totalorder %v1612, 0
        %v1739 = vsub.s32 0, %v1612
        %v1740 = vsel %vm1738, %v1739, %v1612
        %v1741 = vmul.u32.u64.compose %v1740, 3817748708
        %v1742 = vextract.low.u32 %v1741
        %v1743 = vextract.high.u32 %v1741
        %v1744 = vshrl.u32 %v1743, 4
        %v1745 = vmul.u32 %v1744, 18
        %v1746 = vsub.s32 %v1740, %v1745
        %v1747 = vsub.s32 0, %v1746
        %v1748 = vsel %vm1738, %v1747, %v1746
        %vm1749 = vcmp.lt.s32.totalorder %v1613, 0
        %v1750 = vsub.s32 0, %v1613
        %v1751 = vsel %vm1749, %v1750, %v1613
        %v1752 = vmul.u32.u64.compose %v1751, 3817748708
        %v1753 = vextract.low.u32 %v1752
        %v1754 = vextract.high.u32 %v1752
        %v1755 = vshrl.u32 %v1754, 4
        %v1756 = vmul.u32 %v1755, 18
        %v1757 = vsub.s32 %v1751, %v1756
        %v1758 = vsub.s32 0, %v1757
        %v1759 = vsel %vm1749, %v1758, %v1757
        %vm1760 = vcmp.lt.s32.totalorder %v1614, 0
        %v1761 = vsub.s32 0, %v1614
        %v1762 = vsel %vm1760, %v1761, %v1614
        %v1763 = vmul.u32.u64.compose %v1762, 3817748708
        %v1764 = vextract.low.u32 %v1763
        %v1765 = vextract.high.u32 %v1763
        %v1766 = vshrl.u32 %v1765, 4
        %v1767 = vmul.u32 %v1766, 18
        %v1768 = vsub.s32 %v1762, %v1767
        %v1769 = vsub.s32 0, %v1768
        %v1770 = vsel %vm1760, %v1769, %v1768
        %vm1771 = vcmp.lt.s32.totalorder %v1615, 0
        %v1772 = vsub.s32 0, %v1615
        %v1773 = vsel %vm1771, %v1772, %v1615
        %v1774 = vmul.u32.u64.compose %v1773, 3817748708
        %v1775 = vextract.low.u32 %v1774
        %v1776 = vextract.high.u32 %v1774
        %v1777 = vshrl.u32 %v1776, 4
        %v1778 = vmul.u32 %v1777, 18
        %v1779 = vsub.s32 %v1773, %v1778
        %v1780 = vsub.s32 0, %v1779
        %v1781 = vsel %vm1771, %v1780, %v1779
        %vm1782 = vcmp.lt.s32.totalorder %v1616, 0
        %v1783 = vsub.s32 0, %v1616
        %v1784 = vsel %vm1782, %v1783, %v1616
        %v1785 = vmul.u32.u64.compose %v1784, 3817748708
        %v1786 = vextract.low.u32 %v1785
        %v1787 = vextract.high.u32 %v1785
        %v1788 = vshrl.u32 %v1787, 4
        %v1789 = vmul.u32 %v1788, 18
        %v1790 = vsub.s32 %v1784, %v1789
        %v1791 = vsub.s32 0, %v1790
        %v1792 = vsel %vm1782, %v1791, %v1790
        %vm1793 = vcmp.lt.s32.totalorder %v1617, 0
        %v1794 = vsub.s32 0, %v1617
        %v1795 = vsel %vm1793, %v1794, %v1617
        %v1796 = vmul.u32.u64.compose %v1795, 3817748708
        %v1797 = vextract.low.u32 %v1796
        %v1798 = vextract.high.u32 %v1796
        %v1799 = vshrl.u32 %v1798, 4
        %v1800 = vmul.u32 %v1799, 18
        %v1801 = vsub.s32 %v1795, %v1800
        %v1802 = vsub.s32 0, %v1801
        %v1803 = vsel %vm1793, %v1802, %v1801
        %vm1804 = vcmp.lt.s32.totalorder %v1618, 0
        %v1805 = vsub.s32 0, %v1618
        %v1806 = vsel %vm1804, %v1805, %v1618
        %v1807 = vmul.u32.u64.compose %v1806, 3817748708
        %v1808 = vextract.low.u32 %v1807
        %v1809 = vextract.high.u32 %v1807
        %v1810 = vshrl.u32 %v1809, 4
        %v1811 = vmul.u32 %v1810, 18
        %v1812 = vsub.s32 %v1806, %v1811
        %v1813 = vsub.s32 0, %v1812
        %v1814 = vsel %vm1804, %v1813, %v1812
        %vm1815 = vcmp.lt.s32.totalorder %v1619, 0
        %v1816 = vsub.s32 0, %v1619
        %v1817 = vsel %vm1815, %v1816, %v1619
        %v1818 = vmul.u32.u64.compose %v1817, 3817748708
        %v1819 = vextract.low.u32 %v1818
        %v1820 = vextract.high.u32 %v1818
        %v1821 = vshrl.u32 %v1820, 4
        %v1822 = vmul.u32 %v1821, 18
        %v1823 = vsub.s32 %v1817, %v1822
        %v1824 = vsub.s32 0, %v1823
        %v1825 = vsel %vm1815, %v1824, %v1823
        %vm1826 = vcmp.lt.s32.totalorder %v1620, 0
        %v1827 = vsub.s32 0, %v1620
        %v1828 = vsel %vm1826, %v1827, %v1620
        %v1829 = vmul.u32.u64.compose %v1828, 3817748708
        %v1830 = vextract.low.u32 %v1829
        %v1831 = vextract.high.u32 %v1829
        %v1832 = vshrl.u32 %v1831, 4
        %v1833 = vmul.u32 %v1832, 18
        %v1834 = vsub.s32 %v1828, %v1833
        %v1835 = vsub.s32 0, %v1834
        %v1836 = vsel %vm1826, %v1835, %v1834
        %vm1837 = vcmp.lt.s32.totalorder %v1621, 0
        %v1838 = vsub.s32 0, %v1621
        %v1839 = vsel %vm1837, %v1838, %v1621
        %v1840 = vmul.u32.u64.compose %v1839, 3817748708
        %v1841 = vextract.low.u32 %v1840
        %v1842 = vextract.high.u32 %v1840
        %v1843 = vshrl.u32 %v1842, 4
        %v1844 = vmul.u32 %v1843, 18
        %v1845 = vsub.s32 %v1839, %v1844
        %v1846 = vsub.s32 0, %v1845
        %v1847 = vsel %vm1837, %v1846, %v1845
        %vm1848 = vcmp.lt.s32.totalorder %v1622, 0
        %v1849 = vsub.s32 0, %v1622
        %v1850 = vsel %vm1848, %v1849, %v1622
        %v1851 = vmul.u32.u64.compose %v1850, 3817748708
        %v1852 = vextract.low.u32 %v1851
        %v1853 = vextract.high.u32 %v1851
        %v1854 = vshrl.u32 %v1853, 4
        %v1855 = vmul.u32 %v1854, 18
        %v1856 = vsub.s32 %v1850, %v1855
        %v1857 = vsub.s32 0, %v1856
        %v1858 = vsel %vm1848, %v1857, %v1856
        %vm1859 = vcmp.lt.s32.totalorder %v1623, 0
        %v1860 = vsub.s32 0, %v1623
        %v1861 = vsel %vm1859, %v1860, %v1623
        %v1862 = vmul.u32.u64.compose %v1861, 3817748708
        %v1863 = vextract.low.u32 %v1862
        %v1864 = vextract.high.u32 %v1862
        %v1865 = vshrl.u32 %v1864, 4
        %v1866 = vmul.u32 %v1865, 18
        %v1867 = vsub.s32 %v1861, %v1866
        %v1868 = vsub.s32 0, %v1867
        %v1869 = vsel %vm1859, %v1868, %v1867
        %vm1870 = vcmp.lt.s32.totalorder %v1624, 0
        %v1871 = vsub.s32 0, %v1624
        %v1872 = vsel %vm1870, %v1871, %v1624
        %v1873 = vmul.u32.u64.compose %v1872, 3817748708
        %v1874 = vextract.low.u32 %v1873
        %v1875 = vextract.high.u32 %v1873
        %v1876 = vshrl.u32 %v1875, 4
        %v1877 = vmul.u32 %v1876, 18
        %v1878 = vsub.s32 %v1872, %v1877
        %v1879 = vsub.s32 0, %v1878
        %v1880 = vsel %vm1870, %v1879, %v1878
        %vm1881 = vcmp.lt.s32.totalorder %v1625, 0
        %v1882 = vsub.s32 0, %v1625
        %v1883 = vsel %vm1881, %v1882, %v1625
        %v1884 = vmul.u32.u64.compose %v1883, 3817748708
        %v1885 = vextract.low.u32 %v1884
        %v1886 = vextract.high.u32 %v1884
        %v1887 = vshrl.u32 %v1886, 4
        %v1888 = vmul.u32 %v1887, 18
        %v1889 = vsub.s32 %v1883, %v1888
        %v1890 = vsub.s32 0, %v1889
        %v1891 = vsel %vm1881, %v1890, %v1889
        %vm1892 = vcmp.lt.s32.totalorder %v1626, 0
        %v1893 = vsub.s32 0, %v1626
        %v1894 = vsel %vm1892, %v1893, %v1626
        %v1895 = vmul.u32.u64.compose %v1894, 3817748708
        %v1896 = vextract.low.u32 %v1895
        %v1897 = vextract.high.u32 %v1895
        %v1898 = vshrl.u32 %v1897, 4
        %v1899 = vmul.u32 %v1898, 18
        %v1900 = vsub.s32 %v1894, %v1899
        %v1901 = vsub.s32 0, %v1900
        %v1902 = vsel %vm1892, %v1901, %v1900
        %vm1903 = vcmp.lt.s32.totalorder %v1627, 0
        %v1904 = vsub.s32 0, %v1627
        %v1905 = vsel %vm1903, %v1904, %v1627
        %v1906 = vmul.u32.u64.compose %v1905, 3817748708
        %v1907 = vextract.low.u32 %v1906
        %v1908 = vextract.high.u32 %v1906
        %v1909 = vshrl.u32 %v1908, 4
        %v1910 = vmul.u32 %v1909, 18
        %v1911 = vsub.s32 %v1905, %v1910
        %v1912 = vsub.s32 0, %v1911
        %v1913 = vsel %vm1903, %v1912, %v1911
        %vm1914 = vcmp.lt.s32.totalorder %v1628, 0
        %v1915 = vsub.s32 0, %v1628
        %v1916 = vsel %vm1914, %v1915, %v1628
        %v1917 = vmul.u32.u64.compose %v1916, 3817748708
        %v1918 = vextract.low.u32 %v1917
        %v1919 = vextract.high.u32 %v1917
        %v1920 = vshrl.u32 %v1919, 4
        %v1921 = vmul.u32 %v1920, 18
        %v1922 = vsub.s32 %v1916, %v1921
        %v1923 = vsub.s32 0, %v1922
        %v1924 = vsel %vm1914, %v1923, %v1922
        %vm1925 = vcmp.lt.s32.totalorder %v1629, 0
        %v1926 = vsub.s32 0, %v1629
        %v1927 = vsel %vm1925, %v1926, %v1629
        %v1928 = vmul.u32.u64.compose %v1927, 3817748708
        %v1929 = vextract.low.u32 %v1928
        %v1930 = vextract.high.u32 %v1928
        %v1931 = vshrl.u32 %v1930, 4
        %v1932 = vmul.u32 %v1931, 18
        %v1933 = vsub.s32 %v1927, %v1932
        %v1934 = vsub.s32 0, %v1933
        %v1935 = vsel %vm1925, %v1934, %v1933
        %vm1936 = vcmp.lt.s32.totalorder %v1630, 0
        %v1937 = vsub.s32 0, %v1630
        %v1938 = vsel %vm1936, %v1937, %v1630
        %v1939 = vmul.u32.u64.compose %v1938, 3817748708
        %v1940 = vextract.low.u32 %v1939
        %v1941 = vextract.high.u32 %v1939
        %v1942 = vshrl.u32 %v1941, 4
        %v1943 = vmul.u32 %v1942, 18
        %v1944 = vsub.s32 %v1938, %v1943
        %v1945 = vsub.s32 0, %v1944
        %v1946 = vsel %vm1936, %v1945, %v1944
        %vm1947 = vcmp.lt.s32.totalorder %v1631, 0
        %v1948 = vsub.s32 0, %v1631
        %v1949 = vsel %vm1947, %v1948, %v1631
        %v1950 = vmul.u32.u64.compose %v1949, 3817748708
        %v1951 = vextract.low.u32 %v1950
        %v1952 = vextract.high.u32 %v1950
        %v1953 = vshrl.u32 %v1952, 4
        %v1954 = vmul.u32 %v1953, 18
        %v1955 = vsub.s32 %v1949, %v1954
        %v1956 = vsub.s32 0, %v1955
        %v1957 = vsel %vm1947, %v1956, %v1955
        %vm1958 = vcmp.lt.s32.totalorder %v1632, 0
        %v1959 = vsub.s32 0, %v1632
        %v1960 = vsel %vm1958, %v1959, %v1632
        %v1961 = vmul.u32.u64.compose %v1960, 3817748708
        %v1962 = vextract.low.u32 %v1961
        %v1963 = vextract.high.u32 %v1961
        %v1964 = vshrl.u32 %v1963, 4
        %v1965 = vmul.u32 %v1964, 18
        %v1966 = vsub.s32 %v1960, %v1965
        %v1967 = vsub.s32 0, %v1966
        %v1968 = vsel %vm1958, %v1967, %v1966
        %vm1969 = vcmp.lt.s32.totalorder %v1633, 0
        %v1970 = vsub.s32 0, %v1633
        %v1971 = vsel %vm1969, %v1970, %v1633
        %v1972 = vmul.u32.u64.compose %v1971, 3817748708
        %v1973 = vextract.low.u32 %v1972
        %v1974 = vextract.high.u32 %v1972
        %v1975 = vshrl.u32 %v1974, 4
        %v1976 = vmul.u32 %v1975, 18
        %v1977 = vsub.s32 %v1971, %v1976
        %v1978 = vsub.s32 0, %v1977
        %v1979 = vsel %vm1969, %v1978, %v1977
        %vm1980 = vcmp.lt.s32.totalorder %v1634, 0
        %v1981 = vsub.s32 0, %v1634
        %v1982 = vsel %vm1980, %v1981, %v1634
        %v1983 = vmul.u32.u64.compose %v1982, 3817748708
        %v1984 = vextract.low.u32 %v1983
        %v1985 = vextract.high.u32 %v1983
        %v1986 = vshrl.u32 %v1985, 4
        %v1987 = vmul.u32 %v1986, 18
        %v1988 = vsub.s32 %v1982, %v1987
        %v1989 = vsub.s32 0, %v1988
        %v1990 = vsel %vm1980, %v1989, %v1988
        %vm1991 = vcmp.lt.s32.totalorder %v1635, 0
        %v1992 = vsub.s32 0, %v1635
        %v1993 = vsel %vm1991, %v1992, %v1635
        %v1994 = vmul.u32.u64.compose %v1993, 3817748708
        %v1995 = vextract.low.u32 %v1994
        %v1996 = vextract.high.u32 %v1994
        %v1997 = vshrl.u32 %v1996, 4
        %v1998 = vmul.u32 %v1997, 18
        %v1999 = vsub.s32 %v1993, %v1998
        %v2000 = vsub.s32 0, %v1999
        %v2001 = vsel %vm1991, %v2000, %v1999
        %vm2002 = vcmp.lt.s32.totalorder %v1636, 0
        %v2003 = vsub.s32 0, %v1636
        %v2004 = vsel %vm2002, %v2003, %v1636
        %v2005 = vmul.u32.u64.compose %v2004, 3817748708
        %v2006 = vextract.low.u32 %v2005
        %v2007 = vextract.high.u32 %v2005
        %v2008 = vshrl.u32 %v2007, 4
        %v2009 = vmul.u32 %v2008, 18
        %v2010 = vsub.s32 %v2004, %v2009
        %v2011 = vsub.s32 0, %v2010
        %v2012 = vsel %vm2002, %v2011, %v2010
        %vm2013 = vcmp.lt.s32.totalorder %v1637, 0
        %v2014 = vsub.s32 0, %v1637
        %v2015 = vsel %vm2013, %v2014, %v1637
        %v2016 = vmul.u32.u64.compose %v2015, 3817748708
        %v2017 = vextract.low.u32 %v2016
        %v2018 = vextract.high.u32 %v2016
        %v2019 = vshrl.u32 %v2018, 4
        %v2020 = vmul.u32 %v2019, 18
        %v2021 = vsub.s32 %v2015, %v2020
        %v2022 = vsub.s32 0, %v2021
        %v2023 = vsel %vm2013, %v2022, %v2021
        %vm2024 = vcmp.lt.s32.totalorder %v1638, 0
        %v2025 = vsub.s32 0, %v1638
        %v2026 = vsel %vm2024, %v2025, %v1638
        %v2027 = vmul.u32.u64.compose %v2026, 3817748708
        %v2028 = vextract.low.u32 %v2027
        %v2029 = vextract.high.u32 %v2027
        %v2030 = vshrl.u32 %v2029, 4
        %v2031 = vmul.u32 %v2030, 18
        %v2032 = vsub.s32 %v2026, %v2031
        %v2033 = vsub.s32 0, %v2032
        %v2034 = vsel %vm2024, %v2033, %v2032
        %vm2035 = vcmp.ne.s32.totalorder %v1649, 0
        %vm2036 = vcmp.ne.s32.totalorder %v1660, 0
        %vm2037 = vcmp.ne.s32.totalorder %v1671, 0
        %vm2038 = vcmp.ne.s32.totalorder %v1682, 0
        %vm2039 = vcmp.ne.s32.totalorder %v1693, 0
        %vm2040 = vcmp.ne.s32.totalorder %v1704, 0
        %vm2041 = vcmp.ne.s32.totalorder %v1715, 0
        %vm2042 = vcmp.ne.s32.totalorder %v1726, 0
        %vm2043 = vcmp.ne.s32.totalorder %v1737, 0
        %vm2044 = vcmp.ne.s32.totalorder %v1748, 0
        %vm2045 = vcmp.ne.s32.totalorder %v1759, 0
        %vm2046 = vcmp.ne.s32.totalorder %v1770, 0
        %vm2047 = vcmp.ne.s32.totalorder %v1781, 0
        %vm2048 = vcmp.ne.s32.totalorder %v1792, 0
        %vm2049 = vcmp.ne.s32.totalorder %v1803, 0
        %vm2050 = vcmp.ne.s32.totalorder %v1814, 0
        %vm2051 = vcmp.ne.s32.totalorder %v1825, 0
        %vm2052 = vcmp.ne.s32.totalorder %v1836, 0
        %vm2053 = vcmp.ne.s32.totalorder %v1847, 0
        %vm2054 = vcmp.ne.s32.totalorder %v1858, 0
        %vm2055 = vcmp.ne.s32.totalorder %v1869, 0
        %vm2056 = vcmp.ne.s32.totalorder %v1880, 0
        %vm2057 = vcmp.ne.s32.totalorder %v1891, 0
        %vm2058 = vcmp.ne.s32.totalorder %v1902, 0
        %vm2059 = vcmp.ne.s32.totalorder %v1913, 0
        %vm2060 = vcmp.ne.s32.totalorder %v1924, 0
        %vm2061 = vcmp.ne.s32.totalorder %v1935, 0
        %vm2062 = vcmp.ne.s32.totalorder %v1946, 0
        %vm2063 = vcmp.ne.s32.totalorder %v1957, 0
        %vm2064 = vcmp.ne.s32.totalorder %v1968, 0
        %vm2065 = vcmp.ne.s32.totalorder %v1979, 0
        %vm2066 = vcmp.ne.s32.totalorder %v1990, 0
        %vm2067 = vcmp.ne.s32.totalorder %v2001, 0
        %vm2068 = vcmp.ne.s32.totalorder %v2012, 0
        %vm2069 = vcmp.ne.s32.totalorder %v2023, 0
        %vm2070 = vcmp.ne.s32.totalorder %v2034, 0
        %vm2071 = vcmp.lt.s32.totalorder %v1649, 0
        %vm2072 = vcmp.lt.s32.totalorder %v1660, 0
        %vm2073 = vcmp.lt.s32.totalorder %v1671, 0
        %vm2074 = vcmp.lt.s32.totalorder %v1682, 0
        %vm2075 = vcmp.lt.s32.totalorder %v1693, 0
        %vm2076 = vcmp.lt.s32.totalorder %v1704, 0
        %vm2077 = vcmp.lt.s32.totalorder %v1715, 0
        %vm2078 = vcmp.lt.s32.totalorder %v1726, 0
        %vm2079 = vcmp.lt.s32.totalorder %v1737, 0
        %vm2080 = vcmp.lt.s32.totalorder %v1748, 0
        %vm2081 = vcmp.lt.s32.totalorder %v1759, 0
        %vm2082 = vcmp.lt.s32.totalorder %v1770, 0
        %vm2083 = vcmp.lt.s32.totalorder %v1781, 0
        %vm2084 = vcmp.lt.s32.totalorder %v1792, 0
        %vm2085 = vcmp.lt.s32.totalorder %v1803, 0
        %vm2086 = vcmp.lt.s32.totalorder %v1814, 0
        %vm2087 = vcmp.lt.s32.totalorder %v1825, 0
        %vm2088 = vcmp.lt.s32.totalorder %v1836, 0
        %vm2089 = vcmp.lt.s32.totalorder %v1847, 0
        %vm2090 = vcmp.lt.s32.totalorder %v1858, 0
        %vm2091 = vcmp.lt.s32.totalorder %v1869, 0
        %vm2092 = vcmp.lt.s32.totalorder %v1880, 0
        %vm2093 = vcmp.lt.s32.totalorder %v1891, 0
        %vm2094 = vcmp.lt.s32.totalorder %v1902, 0
        %vm2095 = vcmp.lt.s32.totalorder %v1913, 0
        %vm2096 = vcmp.lt.s32.totalorder %v1924, 0
        %vm2097 = vcmp.lt.s32.totalorder %v1935, 0
        %vm2098 = vcmp.lt.s32.totalorder %v1946, 0
        %vm2099 = vcmp.lt.s32.totalorder %v1957, 0
        %vm2100 = vcmp.lt.s32.totalorder %v1968, 0
        %vm2101 = vcmp.lt.s32.totalorder %v1979, 0
        %vm2102 = vcmp.lt.s32.totalorder %v1990, 0
        %vm2103 = vcmp.lt.s32.totalorder %v2001, 0
        %vm2104 = vcmp.lt.s32.totalorder %v2012, 0
        %vm2105 = vcmp.lt.s32.totalorder %v2023, 0
        %vm2106 = vcmp.lt.s32.totalorder %v2034, 0
        %vm2107 = vmand %vm2071, %vm2035
        %vm2108 = vmand %vm2072, %vm2036
        %vm2109 = vmand %vm2073, %vm2037
        %vm2110 = vmand %vm2074, %vm2038
        %vm2111 = vmand %vm2075, %vm2039
        %vm2112 = vmand %vm2076, %vm2040
        %vm2113 = vmand %vm2077, %vm2041
        %vm2114 = vmand %vm2078, %vm2042
        %vm2115 = vmand %vm2079, %vm2043
        %vm2116 = vmand %vm2080, %vm2044
        %vm2117 = vmand %vm2081, %vm2045
        %vm2118 = vmand %vm2082, %vm2046
        %vm2119 = vmand %vm2083, %vm2047
        %vm2120 = vmand %vm2084, %vm2048
        %vm2121 = vmand %vm2085, %vm2049
        %vm2122 = vmand %vm2086, %vm2050
        %vm2123 = vmand %vm2087, %vm2051
        %vm2124 = vmand %vm2088, %vm2052
        %vm2125 = vmand %vm2089, %vm2053
        %vm2126 = vmand %vm2090, %vm2054
        %vm2127 = vmand %vm2091, %vm2055
        %vm2128 = vmand %vm2092, %vm2056
        %vm2129 = vmand %vm2093, %vm2057
        %vm2130 = vmand %vm2094, %vm2058
        %vm2131 = vmand %vm2095, %vm2059
        %vm2132 = vmand %vm2096, %vm2060
        %vm2133 = vmand %vm2097, %vm2061
        %vm2134 = vmand %vm2098, %vm2062
        %vm2135 = vmand %vm2099, %vm2063
        %vm2136 = vmand %vm2100, %vm2064
        %vm2137 = vmand %vm2101, %vm2065
        %vm2138 = vmand %vm2102, %vm2066
        %vm2139 = vmand %vm2103, %vm2067
        %vm2140 = vmand %vm2104, %vm2068
        %vm2141 = vmand %vm2105, %vm2069
        %vm2142 = vmand %vm2106, %vm2070
        %v2143 = vadd.s32 %v1649, 18
        %v2144 = vadd.s32 %v1660, 18
        %v2145 = vadd.s32 %v1671, 18
        %v2146 = vadd.s32 %v1682, 18
        %v2147 = vadd.s32 %v1693, 18
        %v2148 = vadd.s32 %v1704, 18
        %v2149 = vadd.s32 %v1715, 18
        %v2150 = vadd.s32 %v1726, 18
        %v2151 = vadd.s32 %v1737, 18
        %v2152 = vadd.s32 %v1748, 18
        %v2153 = vadd.s32 %v1759, 18
        %v2154 = vadd.s32 %v1770, 18
        %v2155 = vadd.s32 %v1781, 18
        %v2156 = vadd.s32 %v1792, 18
        %v2157 = vadd.s32 %v1803, 18
        %v2158 = vadd.s32 %v1814, 18
        %v2159 = vadd.s32 %v1825, 18
        %v2160 = vadd.s32 %v1836, 18
        %v2161 = vadd.s32 %v1847, 18
        %v2162 = vadd.s32 %v1858, 18
        %v2163 = vadd.s32 %v1869, 18
        %v2164 = vadd.s32 %v1880, 18
        %v2165 = vadd.s32 %v1891, 18
        %v2166 = vadd.s32 %v1902, 18
        %v2167 = vadd.s32 %v1913, 18
        %v2168 = vadd.s32 %v1924, 18
        %v2169 = vadd.s32 %v1935, 18
        %v2170 = vadd.s32 %v1946, 18
        %v2171 = vadd.s32 %v1957, 18
        %v2172 = vadd.s32 %v1968, 18
        %v2173 = vadd.s32 %v1979, 18
        %v2174 = vadd.s32 %v1990, 18
        %v2175 = vadd.s32 %v2001, 18
        %v2176 = vadd.s32 %v2012, 18
        %v2177 = vadd.s32 %v2023, 18
        %v2178 = vadd.s32 %v2034, 18
        %v2179 = vsel %vm2107, %v2143, %v1649
        %v2180 = vsel %vm2108, %v2144, %v1660
        %v2181 = vsel %vm2109, %v2145, %v1671
        %v2182 = vsel %vm2110, %v2146, %v1682
        %v2183 = vsel %vm2111, %v2147, %v1693
        %v2184 = vsel %vm2112, %v2148, %v1704
        %v2185 = vsel %vm2113, %v2149, %v1715
        %v2186 = vsel %vm2114, %v2150, %v1726
        %v2187 = vsel %vm2115, %v2151, %v1737
        %v2188 = vsel %vm2116, %v2152, %v1748
        %v2189 = vsel %vm2117, %v2153, %v1759
        %v2190 = vsel %vm2118, %v2154, %v1770
        %v2191 = vsel %vm2119, %v2155, %v1781
        %v2192 = vsel %vm2120, %v2156, %v1792
        %v2193 = vsel %vm2121, %v2157, %v1803
        %v2194 = vsel %vm2122, %v2158, %v1814
        %v2195 = vsel %vm2123, %v2159, %v1825
        %v2196 = vsel %vm2124, %v2160, %v1836
        %v2197 = vsel %vm2125, %v2161, %v1847
        %v2198 = vsel %vm2126, %v2162, %v1858
        %v2199 = vsel %vm2127, %v2163, %v1869
        %v2200 = vsel %vm2128, %v2164, %v1880
        %v2201 = vsel %vm2129, %v2165, %v1891
        %v2202 = vsel %vm2130, %v2166, %v1902
        %v2203 = vsel %vm2131, %v2167, %v1913
        %v2204 = vsel %vm2132, %v2168, %v1924
        %v2205 = vsel %vm2133, %v2169, %v1935
        %v2206 = vsel %vm2134, %v2170, %v1946
        %v2207 = vsel %vm2135, %v2171, %v1957
        %v2208 = vsel %vm2136, %v2172, %v1968
        %v2209 = vsel %vm2137, %v2173, %v1979
        %v2210 = vsel %vm2138, %v2174, %v1990
        %v2211 = vsel %vm2139, %v2175, %v2001
        %v2212 = vsel %vm2140, %v2176, %v2012
        %v2213 = vsel %vm2141, %v2177, %v2023
        %v2214 = vsel %vm2142, %v2178, %v2034
        %vm2215 = vcmp.lt.s32.totalorder %v2179, 16
        %vm2216 = vcmp.lt.s32.totalorder %v2180, 16
        %vm2217 = vcmp.lt.s32.totalorder %v2181, 16
        %vm2218 = vcmp.lt.s32.totalorder %v2182, 16
        %vm2219 = vcmp.lt.s32.totalorder %v2183, 16
        %vm2220 = vcmp.lt.s32.totalorder %v2184, 16
        %vm2221 = vcmp.lt.s32.totalorder %v2185, 16
        %vm2222 = vcmp.lt.s32.totalorder %v2186, 16
        %vm2223 = vcmp.lt.s32.totalorder %v2187, 16
        %vm2224 = vcmp.lt.s32.totalorder %v2188, 16
        %vm2225 = vcmp.lt.s32.totalorder %v2189, 16
        %vm2226 = vcmp.lt.s32.totalorder %v2190, 16
        %vm2227 = vcmp.lt.s32.totalorder %v2191, 16
        %vm2228 = vcmp.lt.s32.totalorder %v2192, 16
        %vm2229 = vcmp.lt.s32.totalorder %v2193, 16
        %vm2230 = vcmp.lt.s32.totalorder %v2194, 16
        %vm2231 = vcmp.lt.s32.totalorder %v2195, 16
        %vm2232 = vcmp.lt.s32.totalorder %v2196, 16
        %vm2233 = vcmp.lt.s32.totalorder %v2197, 16
        %vm2234 = vcmp.lt.s32.totalorder %v2198, 16
        %vm2235 = vcmp.lt.s32.totalorder %v2199, 16
        %vm2236 = vcmp.lt.s32.totalorder %v2200, 16
        %vm2237 = vcmp.lt.s32.totalorder %v2201, 16
        %vm2238 = vcmp.lt.s32.totalorder %v2202, 16
        %vm2239 = vcmp.lt.s32.totalorder %v2203, 16
        %vm2240 = vcmp.lt.s32.totalorder %v2204, 16
        %vm2241 = vcmp.lt.s32.totalorder %v2205, 16
        %vm2242 = vcmp.lt.s32.totalorder %v2206, 16
        %vm2243 = vcmp.lt.s32.totalorder %v2207, 16
        %vm2244 = vcmp.lt.s32.totalorder %v2208, 16
        %vm2245 = vcmp.lt.s32.totalorder %v2209, 16
        %vm2246 = vcmp.lt.s32.totalorder %v2210, 16
        %vm2247 = vcmp.lt.s32.totalorder %v2211, 16
        %vm2248 = vcmp.lt.s32.totalorder %v2212, 16
        %vm2249 = vcmp.lt.s32.totalorder %v2213, 16
        %vm2250 = vcmp.lt.s32.totalorder %v2214, 16
        %v2251 = vsel %vm2215, 1, 0
        %v2252 = vsel %vm2216, 1, 0
        %v2253 = vsel %vm2217, 1, 0
        %v2254 = vsel %vm2218, 1, 0
        %v2255 = vsel %vm2219, 1, 0
        %v2256 = vsel %vm2220, 1, 0
        %v2257 = vsel %vm2221, 1, 0
        %v2258 = vsel %vm2222, 1, 0
        %v2259 = vsel %vm2223, 1, 0
        %v2260 = vsel %vm2224, 1, 0
        %v2261 = vsel %vm2225, 1, 0
        %v2262 = vsel %vm2226, 1, 0
        %v2263 = vsel %vm2227, 1, 0
        %v2264 = vsel %vm2228, 1, 0
        %v2265 = vsel %vm2229, 1, 0
        %v2266 = vsel %vm2230, 1, 0
        %v2267 = vsel %vm2231, 1, 0
        %v2268 = vsel %vm2232, 1, 0
        %v2269 = vsel %vm2233, 1, 0
        %v2270 = vsel %vm2234, 1, 0
        %v2271 = vsel %vm2235, 1, 0
        %v2272 = vsel %vm2236, 1, 0
        %v2273 = vsel %vm2237, 1, 0
        %v2274 = vsel %vm2238, 1, 0
        %v2275 = vsel %vm2239, 1, 0
        %v2276 = vsel %vm2240, 1, 0
        %v2277 = vsel %vm2241, 1, 0
        %v2278 = vsel %vm2242, 1, 0
        %v2279 = vsel %vm2243, 1, 0
        %v2280 = vsel %vm2244, 1, 0
        %v2281 = vsel %vm2245, 1, 0
        %v2282 = vsel %vm2246, 1, 0
        %v2283 = vsel %vm2247, 1, 0
        %v2284 = vsel %vm2248, 1, 0
        %v2285 = vsel %vm2249, 1, 0
        %v2286 = vsel %vm2250, 1, 0
        %vm2287 = vcmp.eq.s32.totalorder %v2251, 1
        %vm2288 = vcmp.eq.s32.totalorder %v2252, 1
        %vm2289 = vcmp.eq.s32.totalorder %v2253, 1
        %vm2290 = vcmp.eq.s32.totalorder %v2254, 1
        %vm2291 = vcmp.eq.s32.totalorder %v2255, 1
        %vm2292 = vcmp.eq.s32.totalorder %v2256, 1
        %vm2293 = vcmp.eq.s32.totalorder %v2257, 1
        %vm2294 = vcmp.eq.s32.totalorder %v2258, 1
        %vm2295 = vcmp.eq.s32.totalorder %v2259, 1
        %vm2296 = vcmp.eq.s32.totalorder %v2260, 1
        %vm2297 = vcmp.eq.s32.totalorder %v2261, 1
        %vm2298 = vcmp.eq.s32.totalorder %v2262, 1
        %vm2299 = vcmp.eq.s32.totalorder %v2263, 1
        %vm2300 = vcmp.eq.s32.totalorder %v2264, 1
        %vm2301 = vcmp.eq.s32.totalorder %v2265, 1
        %vm2302 = vcmp.eq.s32.totalorder %v2266, 1
        %vm2303 = vcmp.eq.s32.totalorder %v2267, 1
        %vm2304 = vcmp.eq.s32.totalorder %v2268, 1
        %vm2305 = vcmp.eq.s32.totalorder %v2269, 1
        %vm2306 = vcmp.eq.s32.totalorder %v2270, 1
        %vm2307 = vcmp.eq.s32.totalorder %v2271, 1
        %vm2308 = vcmp.eq.s32.totalorder %v2272, 1
        %vm2309 = vcmp.eq.s32.totalorder %v2273, 1
        %vm2310 = vcmp.eq.s32.totalorder %v2274, 1
        %vm2311 = vcmp.eq.s32.totalorder %v2275, 1
        %vm2312 = vcmp.eq.s32.totalorder %v2276, 1
        %vm2313 = vcmp.eq.s32.totalorder %v2277, 1
        %vm2314 = vcmp.eq.s32.totalorder %v2278, 1
        %vm2315 = vcmp.eq.s32.totalorder %v2279, 1
        %vm2316 = vcmp.eq.s32.totalorder %v2280, 1
        %vm2317 = vcmp.eq.s32.totalorder %v2281, 1
        %vm2318 = vcmp.eq.s32.totalorder %v2282, 1
        %vm2319 = vcmp.eq.s32.totalorder %v2283, 1
        %vm2320 = vcmp.eq.s32.totalorder %v2284, 1
        %vm2321 = vcmp.eq.s32.totalorder %v2285, 1
        %vm2322 = vcmp.eq.s32.totalorder %v2286, 1
        %v2323 = vsel %vm2287, %v1566, 0.0
        %v2324 = vsel %vm2288, %v1567, 0.0
        %v2325 = vsel %vm2289, %v1568, 0.0
        %v2326 = vsel %vm2290, %v1569, 0.0
        %v2327 = vsel %vm2291, %v1570, 0.0
        %v2328 = vsel %vm2292, %v1571, 0.0
        %v2329 = vsel %vm2293, %v1572, 0.0
        %v2330 = vsel %vm2294, %v1573, 0.0
        %v2331 = vsel %vm2295, %v1574, 0.0
        %v2332 = vsel %vm2296, %v1575, 0.0
        %v2333 = vsel %vm2297, %v1576, 0.0
        %v2334 = vsel %vm2298, %v1577, 0.0
        %v2335 = vsel %vm2299, %v1578, 0.0
        %v2336 = vsel %vm2300, %v1579, 0.0
        %v2337 = vsel %vm2301, %v1580, 0.0
        %v2338 = vsel %vm2302, %v1581, 0.0
        %v2339 = vsel %vm2303, %v1582, 0.0
        %v2340 = vsel %vm2304, %v1583, 0.0
        %v2341 = vsel %vm2305, %v1584, 0.0
        %v2342 = vsel %vm2306, %v1585, 0.0
        %v2343 = vsel %vm2307, %v1586, 0.0
        %v2344 = vsel %vm2308, %v1587, 0.0
        %v2345 = vsel %vm2309, %v1588, 0.0
        %v2346 = vsel %vm2310, %v1589, 0.0
        %v2347 = vsel %vm2311, %v1590, 0.0
        %v2348 = vsel %vm2312, %v1591, 0.0
        %v2349 = vsel %vm2313, %v1592, 0.0
        %v2350 = vsel %vm2314, %v1593, 0.0
        %v2351 = vsel %vm2315, %v1594, 0.0
        %v2352 = vsel %vm2316, %v1595, 0.0
        %v2353 = vsel %vm2317, %v1596, 0.0
        %v2354 = vsel %vm2318, %v1597, 0.0
        %v2355 = vsel %vm2319, %v1598, 0.0
        %v2356 = vsel %vm2320, %v1599, 0.0
        %v2357 = vsel %vm2321, %v1600, 0.0
        %v2358 = vsel %vm2322, %v1601, 0.0
        %vm2359 = vcmask 261120
        %2360 = vst.msk [vmem:[#allocation2] sm:$0xff] %vm2359, 0.0
        %2361 = vst.msk [vmem:[#allocation2 + $0x8] sm:$0xff] %vm2359, 0.0
        %vm2362 = vcmask 256000
        %2363 = vst.msk [vmem:[#allocation2 + $0x10] sm:$0x7] %vm2362, 0.0
        %2364 = vst.msk [vmem:[#allocation2 + $0x133] sm:$0xff] %vm2359, 0.0
        %2365 = vst.msk [vmem:[#allocation2 + $0x13b] sm:$0xff] %vm2359, 0.0
        %2366 = vst.msk [vmem:[#allocation2 + $0x143] sm:$0xff] %vm2359, 0.0
        %2367 = vst.msk [vmem:[#allocation2 + $0x14b] sm:$0xff] %vm2359, 0.0
        %2368 = vst.msk [vmem:[#allocation2 + $0x153] sm:$0x7] %vm2362, 0.0
        %2369 = vst.msk [vmem:[#allocation2 + $0x13] sm:$0xff] %vm2359, %v2323
        %2370 = vst.msk [vmem:[#allocation2 + $0x1b] sm:$0xff] %vm2359, %v2324
        %2371 = vst.msk [vmem:[#allocation2 + $0x23] sm:$0xff] %vm2359, %v2325
        %2372 = vst.msk [vmem:[#allocation2 + $0x2b] sm:$0xff] %vm2359, %v2326
        %2373 = vst.msk [vmem:[#allocation2 + $0x33] sm:$0xff] %vm2359, %v2327
        %2374 = vst.msk [vmem:[#allocation2 + $0x3b] sm:$0xff] %vm2359, %v2328
        %2375 = vst.msk [vmem:[#allocation2 + $0x43] sm:$0xff] %vm2359, %v2329
        %2376 = vst.msk [vmem:[#allocation2 + $0x4b] sm:$0xff] %vm2359, %v2330
        %2377 = vst.msk [vmem:[#allocation2 + $0x53] sm:$0xff] %vm2359, %v2331
        %2378 = vst.msk [vmem:[#allocation2 + $0x5b] sm:$0xff] %vm2359, %v2332
        %2379 = vst.msk [vmem:[#allocation2 + $0x63] sm:$0xff] %vm2359, %v2333
        %2380 = vst.msk [vmem:[#allocation2 + $0x6b] sm:$0xff] %vm2359, %v2334
        %2381 = vst.msk [vmem:[#allocation2 + $0x73] sm:$0xff] %vm2359, %v2335
        %2382 = vst.msk [vmem:[#allocation2 + $0x7b] sm:$0xff] %vm2359, %v2336
        %2383 = vst.msk [vmem:[#allocation2 + $0x83] sm:$0xff] %vm2359, %v2337
        %2384 = vst.msk [vmem:[#allocation2 + $0x8b] sm:$0xff] %vm2359, %v2338
        %2385 = vst.msk [vmem:[#allocation2 + $0x93] sm:$0xff] %vm2359, %v2339
        %2386 = vst.msk [vmem:[#allocation2 + $0x9b] sm:$0xff] %vm2359, %v2340
        %2387 = vst.msk [vmem:[#allocation2 + $0xa3] sm:$0xff] %vm2359, %v2341
        %2388 = vst.msk [vmem:[#allocation2 + $0xab] sm:$0xff] %vm2359, %v2342
        %2389 = vst.msk [vmem:[#allocation2 + $0xb3] sm:$0xff] %vm2359, %v2343
        %2390 = vst.msk [vmem:[#allocation2 + $0xbb] sm:$0xff] %vm2359, %v2344
        %2391 = vst.msk [vmem:[#allocation2 + $0xc3] sm:$0xff] %vm2359, %v2345
        %2392 = vst.msk [vmem:[#allocation2 + $0xcb] sm:$0xff] %vm2359, %v2346
        %2393 = vst.msk [vmem:[#allocation2 + $0xd3] sm:$0xff] %vm2359, %v2347
        %2394 = vst.msk [vmem:[#allocation2 + $0xdb] sm:$0xff] %vm2359, %v2348
        %2395 = vst.msk [vmem:[#allocation2 + $0xe3] sm:$0xff] %vm2359, %v2349
        %2396 = vst.msk [vmem:[#allocation2 + $0xeb] sm:$0xff] %vm2359, %v2350
        %2397 = vst.msk [vmem:[#allocation2 + $0xf3] sm:$0xff] %vm2359, %v2351
        %2398 = vst.msk [vmem:[#allocation2 + $0xfb] sm:$0xff] %vm2359, %v2352
        %2399 = vst.msk [vmem:[#allocation2 + $0x103] sm:$0xff] %vm2359, %v2353
        %2400 = vst.msk [vmem:[#allocation2 + $0x10b] sm:$0xff] %vm2359, %v2354
        %2401 = vst.msk [vmem:[#allocation2 + $0x113] sm:$0xff] %vm2359, %v2355
        %2402 = vst.msk [vmem:[#allocation2 + $0x11b] sm:$0xff] %vm2359, %v2356
        %2403 = vst.msk [vmem:[#allocation2 + $0x123] sm:$0xff] %vm2359, %v2357
        %2404 = vst.msk [vmem:[#allocation2 + $0x12b] sm:$0xff] %vm2359, %v2358
        %v2405 = vld [vmem:[#allocation2] sm:$0xff]
        %v2406 = vld [vmem:[#allocation2 + $0x8] sm:$0xff]
        %v2407 = vld [vmem:[#allocation2 + $0x10] sm:$0xff]
        %v2408 = vld [vmem:[#allocation2 + $0x18] sm:$0xff]
        %v2409 = vld [vmem:[#allocation2 + $0x20] sm:$0xff]
        %v2410 = vld [vmem:[#allocation2 + $0x28] sm:$0xff]
        %v2411 = vld [vmem:[#allocation2 + $0x30] sm:$0xff]
        %v2412 = vld [vmem:[#allocation2 + $0x38] sm:$0xff]
        %v2413 = vld [vmem:[#allocation2 + $0x40] sm:$0xff]
        %v2414 = vld [vmem:[#allocation2 + $0x48] sm:$0xff]
        %v2415 = vld [vmem:[#allocation2 + $0x50] sm:$0xff]
        %v2416 = vld [vmem:[#allocation2 + $0x58] sm:$0xff]
        %v2417 = vld [vmem:[#allocation2 + $0x60] sm:$0xff]
        %v2418 = vld [vmem:[#allocation2 + $0x68] sm:$0xff]
        %v2419 = vld [vmem:[#allocation2 + $0x70] sm:$0xff]
        %v2420 = vld [vmem:[#allocation2 + $0x78] sm:$0xff]
        %v2421 = vld [vmem:[#allocation2 + $0x80] sm:$0xff]
        %v2422 = vld [vmem:[#allocation2 + $0x88] sm:$0xff]
        %v2423 = vld [vmem:[#allocation2 + $0x90] sm:$0xff]
        %v2424 = vld [vmem:[#allocation2 + $0x98] sm:$0xff]
        %v2425 = vld [vmem:[#allocation2 + $0xa0] sm:$0xff]
        %v2426 = vld [vmem:[#allocation2 + $0xa8] sm:$0xff]
        %v2427 = vld [vmem:[#allocation2 + $0xb0] sm:$0xff]
        %v2428 = vld [vmem:[#allocation2 + $0xb8] sm:$0xff]
        %v2429 = vld [vmem:[#allocation2 + $0xc0] sm:$0xff]
        %v2430 = vld [vmem:[#allocation2 + $0xc8] sm:$0xff]
        %v2431 = vld [vmem:[#allocation2 + $0xd0] sm:$0xff]
        %v2432 = vld [vmem:[#allocation2 + $0xd8] sm:$0xff]
        %v2433 = vld [vmem:[#allocation2 + $0xe0] sm:$0xff]
        %v2434 = vld [vmem:[#allocation2 + $0xe8] sm:$0xff]
        %v2435 = vld [vmem:[#allocation2 + $0xf0] sm:$0xff]
        %v2436 = vld [vmem:[#allocation2 + $0xf8] sm:$0xff]
        %v2437 = vld [vmem:[#allocation2 + $0x100] sm:$0xff]
        %v2438 = vld [vmem:[#allocation2 + $0x108] sm:$0xff]
        %v2439 = vld [vmem:[#allocation2 + $0x110] sm:$0xff]
        %v2440 = vld [vmem:[#allocation2 + $0x118] sm:$0xff]
        %v2441 = vld [vmem:[#allocation2 + $0x120] sm:$0xff]
        %v2442 = vld [vmem:[#allocation2 + $0x128] sm:$0xff]
        %v2443 = vld [vmem:[#allocation2 + $0x130] sm:$0xff]
        %v2444 = vld [vmem:[#allocation2 + $0x138] sm:$0xff]
        %v2445 = vld [vmem:[#allocation2 + $0x140] sm:$0xff]
        %v2446 = vld [vmem:[#allocation2 + $0x148] sm:$0xff]
        %v2447 = vpack.c.bf16 %v2406, %v2405
        %v2448 = vpack.c.bf16 %v2408, %v2407
        %v2449 = vpack.c.bf16 %v2410, %v2409
        %v2450 = vpack.c.bf16 %v2412, %v2411
        %v2451 = vpack.c.bf16 %v2414, %v2413
        %v2452 = vpack.c.bf16 %v2416, %v2415
        %v2453 = vpack.c.bf16 %v2418, %v2417
        %v2454 = vpack.c.bf16 %v2420, %v2419
        %v2455 = vpack.c.bf16 %v2422, %v2421
        %v2456 = vpack.c.bf16 %v2424, %v2423
        %v2457 = vpack.c.bf16 %v2426, %v2425
        %v2458 = vpack.c.bf16 %v2428, %v2427
        %v2459 = vpack.c.bf16 %v2430, %v2429
        %v2460 = vpack.c.bf16 %v2432, %v2431
        %v2461 = vpack.c.bf16 %v2434, %v2433
        %v2462 = vpack.c.bf16 %v2436, %v2435
        %v2463 = vpack.c.bf16 %v2438, %v2437
        %v2464 = vpack.c.bf16 %v2440, %v2439
        %v2465 = vpack.c.bf16 %v2442, %v2441
        %v2466 = vpack.c.bf16 %v2444, %v2443
        %v2467 = vpack.c.bf16 %v2446, %v2445
        %v2469 = vshrl.u32 %v2447, 16
        %v2471 = vshll.u32 %v2447, 16
        %v2473 = vrot.slane %v2471, 1
        %v2474 = vor.u32 %v2469, %v2473
        %v2476 = vshll.u32 %v2448, 16
        %v2478 = vrot.slane %v2476, 1
        %v2479 = vsel %vm287, %v2474, %v2478
        %v2480 = vshrl.u32 %v2448, 16
        %v2482 = vor.u32 %v2480, %v2478
        %v2484 = vshll.u32 %v2449, 16
        %v2486 = vrot.slane %v2484, 1
        %v2487 = vsel %vm287, %v2482, %v2486
        %v2488 = vshrl.u32 %v2449, 16
        %v2490 = vor.u32 %v2488, %v2486
        %v2492 = vshll.u32 %v2450, 16
        %v2494 = vrot.slane %v2492, 1
        %v2495 = vsel %vm287, %v2490, %v2494
        %v2496 = vshrl.u32 %v2450, 16
        %v2498 = vor.u32 %v2496, %v2494
        %v2500 = vshll.u32 %v2451, 16
        %v2502 = vrot.slane %v2500, 1
        %v2503 = vsel %vm287, %v2498, %v2502
        %v2504 = vshrl.u32 %v2451, 16
        %v2506 = vor.u32 %v2504, %v2502
        %v2508 = vshll.u32 %v2452, 16
        %v2510 = vrot.slane %v2508, 1
        %v2511 = vsel %vm287, %v2506, %v2510
        %v2512 = vshrl.u32 %v2452, 16
        %v2514 = vor.u32 %v2512, %v2510
        %v2516 = vshll.u32 %v2453, 16
        %v2518 = vrot.slane %v2516, 1
        %v2519 = vsel %vm287, %v2514, %v2518
        %v2520 = vshrl.u32 %v2453, 16
        %v2522 = vor.u32 %v2520, %v2518
        %v2524 = vshll.u32 %v2454, 16
        %v2526 = vrot.slane %v2524, 1
        %v2527 = vsel %vm287, %v2522, %v2526
        %v2528 = vshrl.u32 %v2454, 16
        %v2530 = vor.u32 %v2528, %v2526
        %v2532 = vshll.u32 %v2455, 16
        %v2534 = vrot.slane %v2532, 1
        %v2535 = vsel %vm287, %v2530, %v2534
        %v2536 = vshrl.u32 %v2455, 16
        %v2538 = vor.u32 %v2536, %v2534
        %v2540 = vshll.u32 %v2456, 16
        %v2542 = vrot.slane %v2540, 1
        %v2543 = vsel %vm287, %v2538, %v2542
        %v2544 = vshrl.u32 %v2456, 16
        %v2546 = vor.u32 %v2544, %v2542
        %v2548 = vshll.u32 %v2457, 16
        %v2550 = vrot.slane %v2548, 1
        %v2551 = vsel %vm287, %v2546, %v2550
        %v2552 = vshrl.u32 %v2457, 16
        %v2554 = vor.u32 %v2552, %v2550
        %v2556 = vshll.u32 %v2458, 16
        %v2558 = vrot.slane %v2556, 1
        %v2559 = vsel %vm287, %v2554, %v2558
        %v2560 = vshrl.u32 %v2458, 16
        %v2562 = vor.u32 %v2560, %v2558
        %v2564 = vshll.u32 %v2459, 16
        %v2566 = vrot.slane %v2564, 1
        %v2567 = vsel %vm287, %v2562, %v2566
        %v2568 = vshrl.u32 %v2459, 16
        %v2570 = vor.u32 %v2568, %v2566
        %v2572 = vshll.u32 %v2460, 16
        %v2574 = vrot.slane %v2572, 1
        %v2575 = vsel %vm287, %v2570, %v2574
        %v2576 = vshrl.u32 %v2460, 16
        %v2578 = vor.u32 %v2576, %v2574
        %v2580 = vshll.u32 %v2461, 16
        %v2582 = vrot.slane %v2580, 1
        %v2583 = vsel %vm287, %v2578, %v2582
        %v2584 = vshrl.u32 %v2461, 16
        %v2586 = vor.u32 %v2584, %v2582
        %v2588 = vshll.u32 %v2462, 16
        %v2590 = vrot.slane %v2588, 1
        %v2591 = vsel %vm287, %v2586, %v2590
        %v2592 = vshrl.u32 %v2462, 16
        %v2594 = vor.u32 %v2592, %v2590
        %v2596 = vshll.u32 %v2463, 16
        %v2598 = vrot.slane %v2596, 1
        %v2599 = vsel %vm287, %v2594, %v2598
        %v2600 = vshrl.u32 %v2463, 16
        %v2602 = vor.u32 %v2600, %v2598
        %v2604 = vshll.u32 %v2464, 16
        %v2606 = vrot.slane %v2604, 1
        %v2607 = vsel %vm287, %v2602, %v2606
        %v2608 = vshrl.u32 %v2464, 16
        %v2610 = vor.u32 %v2608, %v2606
        %v2612 = vshll.u32 %v2465, 16
        %v2614 = vrot.slane %v2612, 1
        %v2615 = vsel %vm287, %v2610, %v2614
        %2616 = vrot.lane.b32.xlu0 %v2479, 32
        %v2617 = vpop.permute.xlu0 %2616
        %2618 = vrot.lane.b32.xlu0 %v2487, 32
        %v2619 = vpop.permute.xlu0 %2618
        %2620 = vrot.lane.b32.xlu0 %v2495, 32
        %v2621 = vpop.permute.xlu0 %2620
        %2622 = vrot.lane.b32.xlu0 %v2503, 32
        %v2623 = vpop.permute.xlu0 %2622
        %2624 = vrot.lane.b32.xlu0 %v2511, 32
        %v2625 = vpop.permute.xlu0 %2624
        %2626 = vrot.lane.b32.xlu0 %v2519, 32
        %v2627 = vpop.permute.xlu0 %2626
        %2628 = vrot.lane.b32.xlu0 %v2527, 32
        %v2629 = vpop.permute.xlu0 %2628
        %2630 = vrot.lane.b32.xlu0 %v2535, 32
        %v2631 = vpop.permute.xlu0 %2630
        %2632 = vrot.lane.b32.xlu0 %v2543, 32
        %v2633 = vpop.permute.xlu0 %2632
        %2634 = vrot.lane.b32.xlu0 %v2551, 32
        %v2635 = vpop.permute.xlu0 %2634
        %2636 = vrot.lane.b32.xlu0 %v2559, 32
        %v2637 = vpop.permute.xlu0 %2636
        %2638 = vrot.lane.b32.xlu0 %v2567, 32
        %v2639 = vpop.permute.xlu0 %2638
        %2640 = vrot.lane.b32.xlu0 %v2575, 32
        %v2641 = vpop.permute.xlu0 %2640
        %2642 = vrot.lane.b32.xlu0 %v2583, 32
        %v2643 = vpop.permute.xlu0 %2642
        %2644 = vrot.lane.b32.xlu0 %v2591, 32
        %v2645 = vpop.permute.xlu0 %2644
        %2646 = vrot.lane.b32.xlu0 %v2599, 32
        %v2647 = vpop.permute.xlu0 %2646
        %2648 = vrot.lane.b32.xlu0 %v2607, 32
        %v2649 = vpop.permute.xlu0 %2648
        %2650 = vrot.lane.b32.xlu0 %v2615, 32
        %v2651 = vpop.permute.xlu0 %2650
        %v2671 = vrot.slane %v2447, 1
        %v2672 = vrot.slane %v2448, 1
        %v2673 = vsel %vm491, %v2671, %v2672
        %v2674 = vrot.slane %v2449, 1
        %v2675 = vsel %vm491, %v2672, %v2674
        %v2676 = vrot.slane %v2450, 1
        %v2677 = vsel %vm491, %v2674, %v2676
        %v2678 = vrot.slane %v2451, 1
        %v2679 = vsel %vm491, %v2676, %v2678
        %v2680 = vrot.slane %v2452, 1
        %v2681 = vsel %vm491, %v2678, %v2680
        %v2682 = vrot.slane %v2453, 1
        %v2683 = vsel %vm491, %v2680, %v2682
        %v2684 = vrot.slane %v2454, 1
        %v2685 = vsel %vm491, %v2682, %v2684
        %v2686 = vrot.slane %v2455, 1
        %v2687 = vsel %vm491, %v2684, %v2686
        %v2688 = vrot.slane %v2456, 1
        %v2689 = vsel %vm491, %v2686, %v2688
        %v2690 = vrot.slane %v2457, 1
        %v2691 = vsel %vm491, %v2688, %v2690
        %v2692 = vrot.slane %v2458, 1
        %v2693 = vsel %vm491, %v2690, %v2692
        %v2694 = vrot.slane %v2459, 1
        %v2695 = vsel %vm491, %v2692, %v2694
        %v2696 = vrot.slane %v2460, 1
        %v2697 = vsel %vm491, %v2694, %v2696
        %v2698 = vrot.slane %v2461, 1
        %v2699 = vsel %vm491, %v2696, %v2698
        %v2700 = vrot.slane %v2462, 1
        %v2701 = vsel %vm491, %v2698, %v2700
        %v2702 = vrot.slane %v2463, 1
        %v2703 = vsel %vm491, %v2700, %v2702
        %v2704 = vrot.slane %v2464, 1
        %v2705 = vsel %vm491, %v2702, %v2704
        %v2706 = vrot.slane %v2465, 1
        %v2707 = vsel %vm491, %v2704, %v2706
        %2708 = vrot.lane.b32.xlu0 %v2673, 64
        %v2709 = vpop.permute.xlu0 %2708
        %2710 = vrot.lane.b32.xlu0 %v2675, 64
        %v2711 = vpop.permute.xlu0 %2710
        %2712 = vrot.lane.b32.xlu0 %v2677, 64
        %v2713 = vpop.permute.xlu0 %2712
        %2714 = vrot.lane.b32.xlu0 %v2679, 64
        %v2715 = vpop.permute.xlu0 %2714
        %2716 = vrot.lane.b32.xlu0 %v2681, 64
        %v2717 = vpop.permute.xlu0 %2716
        %2718 = vrot.lane.b32.xlu0 %v2683, 64
        %v2719 = vpop.permute.xlu0 %2718
        %2720 = vrot.lane.b32.xlu0 %v2685, 64
        %v2721 = vpop.permute.xlu0 %2720
        %2722 = vrot.lane.b32.xlu0 %v2687, 64
        %v2723 = vpop.permute.xlu0 %2722
        %2724 = vrot.lane.b32.xlu0 %v2689, 64
        %v2725 = vpop.permute.xlu0 %2724
        %2726 = vrot.lane.b32.xlu0 %v2691, 64
        %v2727 = vpop.permute.xlu0 %2726
        %2728 = vrot.lane.b32.xlu0 %v2693, 64
        %v2729 = vpop.permute.xlu0 %2728
        %2730 = vrot.lane.b32.xlu0 %v2695, 64
        %v2731 = vpop.permute.xlu0 %2730
        %2732 = vrot.lane.b32.xlu0 %v2697, 64
        %v2733 = vpop.permute.xlu0 %2732
        %2734 = vrot.lane.b32.xlu0 %v2699, 64
        %v2735 = vpop.permute.xlu0 %2734
        %2736 = vrot.lane.b32.xlu0 %v2701, 64
        %v2737 = vpop.permute.xlu0 %2736
        %2738 = vrot.lane.b32.xlu0 %v2703, 64
        %v2739 = vpop.permute.xlu0 %2738
        %2740 = vrot.lane.b32.xlu0 %v2705, 64
        %v2741 = vpop.permute.xlu0 %2740
        %2742 = vrot.lane.b32.xlu0 %v2707, 64
        %v2743 = vpop.permute.xlu0 %2742
        %v2745 = vrot.slane %v2466, 1
        %v2746 = vsel %vm491, %v2706, %v2745
        %2747 = vrot.lane.b32.xlu0 %v2675, 96
        %v2748 = vpop.permute.xlu0 %2747
        %2749 = vrot.lane.b32.xlu0 %v2677, 96
        %v2750 = vpop.permute.xlu0 %2749
        %2751 = vrot.lane.b32.xlu0 %v2679, 96
        %v2752 = vpop.permute.xlu0 %2751
        %2753 = vrot.lane.b32.xlu0 %v2681, 96
        %v2754 = vpop.permute.xlu0 %2753
        %2755 = vrot.lane.b32.xlu0 %v2683, 96
        %v2756 = vpop.permute.xlu0 %2755
        %2757 = vrot.lane.b32.xlu0 %v2685, 96
        %v2758 = vpop.permute.xlu0 %2757
        %2759 = vrot.lane.b32.xlu0 %v2687, 96
        %v2760 = vpop.permute.xlu0 %2759
        %2761 = vrot.lane.b32.xlu0 %v2689, 96
        %v2762 = vpop.permute.xlu0 %2761
        %2763 = vrot.lane.b32.xlu0 %v2691, 96
        %v2764 = vpop.permute.xlu0 %2763
        %2765 = vrot.lane.b32.xlu0 %v2693, 96
        %v2766 = vpop.permute.xlu0 %2765
        %2767 = vrot.lane.b32.xlu0 %v2695, 96
        %v2768 = vpop.permute.xlu0 %2767
        %2769 = vrot.lane.b32.xlu0 %v2697, 96
        %v2770 = vpop.permute.xlu0 %2769
        %2771 = vrot.lane.b32.xlu0 %v2699, 96
        %v2772 = vpop.permute.xlu0 %2771
        %2773 = vrot.lane.b32.xlu0 %v2701, 96
        %v2774 = vpop.permute.xlu0 %2773
        %2775 = vrot.lane.b32.xlu0 %v2703, 96
        %v2776 = vpop.permute.xlu0 %2775
        %2777 = vrot.lane.b32.xlu0 %v2705, 96
        %v2778 = vpop.permute.xlu0 %2777
        %2779 = vrot.lane.b32.xlu0 %v2707, 96
        %v2780 = vpop.permute.xlu0 %2779
        %2781 = vrot.lane.b32.xlu0 %v2746, 96
        %v2782 = vpop.permute.xlu0 %2781
        %v2783 = vrot.slane %v2480, 1
        %v2784 = vrot.slane %v2476, 2
        %v2785 = vor.u32 %v2783, %v2784
        %v2786 = vrot.slane %v2488, 1
        %v2787 = vrot.slane %v2484, 2
        %v2788 = vor.u32 %v2786, %v2787
        %v2789 = vsel %vm604, %v2785, %v2788
        %v2790 = vrot.slane %v2496, 1
        %v2791 = vrot.slane %v2492, 2
        %v2792 = vor.u32 %v2790, %v2791
        %v2793 = vsel %vm604, %v2788, %v2792
        %v2794 = vrot.slane %v2504, 1
        %v2795 = vrot.slane %v2500, 2
        %v2796 = vor.u32 %v2794, %v2795
        %v2797 = vsel %vm604, %v2792, %v2796
        %v2798 = vrot.slane %v2512, 1
        %v2799 = vrot.slane %v2508, 2
        %v2800 = vor.u32 %v2798, %v2799
        %v2801 = vsel %vm604, %v2796, %v2800
        %v2802 = vrot.slane %v2520, 1
        %v2803 = vrot.slane %v2516, 2
        %v2804 = vor.u32 %v2802, %v2803
        %v2805 = vsel %vm604, %v2800, %v2804
        %v2806 = vrot.slane %v2528, 1
        %v2807 = vrot.slane %v2524, 2
        %v2808 = vor.u32 %v2806, %v2807
        %v2809 = vsel %vm604, %v2804, %v2808
        %v2810 = vrot.slane %v2536, 1
        %v2811 = vrot.slane %v2532, 2
        %v2812 = vor.u32 %v2810, %v2811
        %v2813 = vsel %vm604, %v2808, %v2812
        %v2814 = vrot.slane %v2544, 1
        %v2815 = vrot.slane %v2540, 2
        %v2816 = vor.u32 %v2814, %v2815
        %v2817 = vsel %vm604, %v2812, %v2816
        %v2818 = vrot.slane %v2552, 1
        %v2819 = vrot.slane %v2548, 2
        %v2820 = vor.u32 %v2818, %v2819
        %v2821 = vsel %vm604, %v2816, %v2820
        %v2822 = vrot.slane %v2560, 1
        %v2823 = vrot.slane %v2556, 2
        %v2824 = vor.u32 %v2822, %v2823
        %v2825 = vsel %vm604, %v2820, %v2824
        %v2826 = vrot.slane %v2568, 1
        %v2827 = vrot.slane %v2564, 2
        %v2828 = vor.u32 %v2826, %v2827
        %v2829 = vsel %vm604, %v2824, %v2828
        %v2830 = vrot.slane %v2576, 1
        %v2831 = vrot.slane %v2572, 2
        %v2832 = vor.u32 %v2830, %v2831
        %v2833 = vsel %vm604, %v2828, %v2832
        %v2834 = vrot.slane %v2584, 1
        %v2835 = vrot.slane %v2580, 2
        %v2836 = vor.u32 %v2834, %v2835
        %v2837 = vsel %vm604, %v2832, %v2836
        %v2838 = vrot.slane %v2592, 1
        %v2839 = vrot.slane %v2588, 2
        %v2840 = vor.u32 %v2838, %v2839
        %v2841 = vsel %vm604, %v2836, %v2840
        %v2842 = vrot.slane %v2600, 1
        %v2843 = vrot.slane %v2596, 2
        %v2844 = vor.u32 %v2842, %v2843
        %v2845 = vsel %vm604, %v2840, %v2844
        %v2846 = vrot.slane %v2608, 1
        %v2847 = vrot.slane %v2604, 2
        %v2848 = vor.u32 %v2846, %v2847
        %v2849 = vsel %vm604, %v2844, %v2848
        %v2850 = vshrl.u32 %v2465, 16
        %v2852 = vrot.slane %v2850, 1
        %v2853 = vrot.slane %v2612, 2
        %v2854 = vor.u32 %v2852, %v2853
        %v2855 = vsel %vm604, %v2848, %v2854
        %v2857 = vshrl.u32 %v2466, 16
        %v2859 = vrot.slane %v2857, 1
        %v2860 = vshll.u32 %v2466, 16
        %v2862 = vrot.slane %v2860, 2
        %v2863 = vor.u32 %v2859, %v2862
        %v2864 = vsel %vm604, %v2854, %v2863
        %v2865 = vrot.slane %v2448, 2
        %v2866 = vrot.slane %v2449, 2
        %v2867 = vsel %vm723, %v2865, %v2866
        %v2868 = vrot.slane %v2450, 2
        %v2869 = vsel %vm723, %v2866, %v2868
        %v2870 = vrot.slane %v2451, 2
        %v2871 = vsel %vm723, %v2868, %v2870
        %v2872 = vrot.slane %v2452, 2
        %v2873 = vsel %vm723, %v2870, %v2872
        %v2874 = vrot.slane %v2453, 2
        %v2875 = vsel %vm723, %v2872, %v2874
        %v2876 = vrot.slane %v2454, 2
        %v2877 = vsel %vm723, %v2874, %v2876
        %v2878 = vrot.slane %v2455, 2
        %v2879 = vsel %vm723, %v2876, %v2878
        %v2880 = vrot.slane %v2456, 2
        %v2881 = vsel %vm723, %v2878, %v2880
        %v2882 = vrot.slane %v2457, 2
        %v2883 = vsel %vm723, %v2880, %v2882
        %v2884 = vrot.slane %v2458, 2
        %v2885 = vsel %vm723, %v2882, %v2884
        %v2886 = vrot.slane %v2459, 2
        %v2887 = vsel %vm723, %v2884, %v2886
        %v2888 = vrot.slane %v2460, 2
        %v2889 = vsel %vm723, %v2886, %v2888
        %v2890 = vrot.slane %v2461, 2
        %v2891 = vsel %vm723, %v2888, %v2890
        %v2892 = vrot.slane %v2462, 2
        %v2893 = vsel %vm723, %v2890, %v2892
        %v2894 = vrot.slane %v2463, 2
        %v2895 = vsel %vm723, %v2892, %v2894
        %v2896 = vrot.slane %v2464, 2
        %v2897 = vsel %vm723, %v2894, %v2896
        %v2898 = vrot.slane %v2465, 2
        %v2899 = vsel %vm723, %v2896, %v2898
        %v2900 = vrot.slane %v2466, 2
        %v2901 = vsel %vm723, %v2898, %v2900
        %2902 = vrot.lane.b32.xlu0 %v2867, 32
        %v2903 = vpop.permute.xlu0 %2902
        %2904 = vrot.lane.b32.xlu0 %v2869, 32
        %v2905 = vpop.permute.xlu0 %2904
        %2906 = vrot.lane.b32.xlu0 %v2871, 32
        %v2907 = vpop.permute.xlu0 %2906
        %2908 = vrot.lane.b32.xlu0 %v2873, 32
        %v2909 = vpop.permute.xlu0 %2908
        %2910 = vrot.lane.b32.xlu0 %v2875, 32
        %v2911 = vpop.permute.xlu0 %2910
        %2912 = vrot.lane.b32.xlu0 %v2877, 32
        %v2913 = vpop.permute.xlu0 %2912
        %2914 = vrot.lane.b32.xlu0 %v2879, 32
        %v2915 = vpop.permute.xlu0 %2914
        %2916 = vrot.lane.b32.xlu0 %v2881, 32
        %v2917 = vpop.permute.xlu0 %2916
        %2918 = vrot.lane.b32.xlu0 %v2883, 32
        %v2919 = vpop.permute.xlu0 %2918
        %2920 = vrot.lane.b32.xlu0 %v2885, 32
        %v2921 = vpop.permute.xlu0 %2920
        %2922 = vrot.lane.b32.xlu0 %v2887, 32
        %v2923 = vpop.permute.xlu0 %2922
        %2924 = vrot.lane.b32.xlu0 %v2889, 32
        %v2925 = vpop.permute.xlu0 %2924
        %2926 = vrot.lane.b32.xlu0 %v2891, 32
        %v2927 = vpop.permute.xlu0 %2926
        %2928 = vrot.lane.b32.xlu0 %v2893, 32
        %v2929 = vpop.permute.xlu0 %2928
        %2930 = vrot.lane.b32.xlu0 %v2895, 32
        %v2931 = vpop.permute.xlu0 %2930
        %2932 = vrot.lane.b32.xlu0 %v2897, 32
        %v2933 = vpop.permute.xlu0 %2932
        %2934 = vrot.lane.b32.xlu0 %v2899, 32
        %v2935 = vpop.permute.xlu0 %2934
        %2936 = vrot.lane.b32.xlu0 %v2901, 32
        %v2937 = vpop.permute.xlu0 %2936
        %v2939 = vrot.slane %v2467, 2
        %v2940 = vsel %vm723, %v2900, %v2939
        %2941 = vrot.lane.b32.xlu0 %v2869, 64
        %v2942 = vpop.permute.xlu0 %2941
        %2943 = vrot.lane.b32.xlu0 %v2871, 64
        %v2944 = vpop.permute.xlu0 %2943
        %2945 = vrot.lane.b32.xlu0 %v2873, 64
        %v2946 = vpop.permute.xlu0 %2945
        %2947 = vrot.lane.b32.xlu0 %v2875, 64
        %v2948 = vpop.permute.xlu0 %2947
        %2949 = vrot.lane.b32.xlu0 %v2877, 64
        %v2950 = vpop.permute.xlu0 %2949
        %2951 = vrot.lane.b32.xlu0 %v2879, 64
        %v2952 = vpop.permute.xlu0 %2951
        %2953 = vrot.lane.b32.xlu0 %v2881, 64
        %v2954 = vpop.permute.xlu0 %2953
        %2955 = vrot.lane.b32.xlu0 %v2883, 64
        %v2956 = vpop.permute.xlu0 %2955
        %2957 = vrot.lane.b32.xlu0 %v2885, 64
        %v2958 = vpop.permute.xlu0 %2957
        %2959 = vrot.lane.b32.xlu0 %v2887, 64
        %v2960 = vpop.permute.xlu0 %2959
        %2961 = vrot.lane.b32.xlu0 %v2889, 64
        %v2962 = vpop.permute.xlu0 %2961
        %2963 = vrot.lane.b32.xlu0 %v2891, 64
        %v2964 = vpop.permute.xlu0 %2963
        %2965 = vrot.lane.b32.xlu0 %v2893, 64
        %v2966 = vpop.permute.xlu0 %2965
        %2967 = vrot.lane.b32.xlu0 %v2895, 64
        %v2968 = vpop.permute.xlu0 %2967
        %2969 = vrot.lane.b32.xlu0 %v2897, 64
        %v2970 = vpop.permute.xlu0 %2969
        %2971 = vrot.lane.b32.xlu0 %v2899, 64
        %v2972 = vpop.permute.xlu0 %2971
        %2973 = vrot.lane.b32.xlu0 %v2901, 64
        %v2974 = vpop.permute.xlu0 %2973
        %2975 = vrot.lane.b32.xlu0 %v2940, 64
        %v2976 = vpop.permute.xlu0 %2975
        %v2977 = vrot.slane %v2488, 2
        %v2978 = vrot.slane %v2484, 3
        %v2979 = vor.u32 %v2977, %v2978
        %v2980 = vrot.slane %v2496, 2
        %v2981 = vrot.slane %v2492, 3
        %v2982 = vor.u32 %v2980, %v2981
        %v2983 = vsel %vm836, %v2979, %v2982
        %v2984 = vrot.slane %v2504, 2
        %v2985 = vrot.slane %v2500, 3
        %v2986 = vor.u32 %v2984, %v2985
        %v2987 = vsel %vm836, %v2982, %v2986
        %v2988 = vrot.slane %v2512, 2
        %v2989 = vrot.slane %v2508, 3
        %v2990 = vor.u32 %v2988, %v2989
        %v2991 = vsel %vm836, %v2986, %v2990
        %v2992 = vrot.slane %v2520, 2
        %v2993 = vrot.slane %v2516, 3
        %v2994 = vor.u32 %v2992, %v2993
        %v2995 = vsel %vm836, %v2990, %v2994
        %v2996 = vrot.slane %v2528, 2
        %v2997 = vrot.slane %v2524, 3
        %v2998 = vor.u32 %v2996, %v2997
        %v2999 = vsel %vm836, %v2994, %v2998
        %v3000 = vrot.slane %v2536, 2
        %v3001 = vrot.slane %v2532, 3
        %v3002 = vor.u32 %v3000, %v3001
        %v3003 = vsel %vm836, %v2998, %v3002
        %v3004 = vrot.slane %v2544, 2
        %v3005 = vrot.slane %v2540, 3
        %v3006 = vor.u32 %v3004, %v3005
        %v3007 = vsel %vm836, %v3002, %v3006
        %v3008 = vrot.slane %v2552, 2
        %v3009 = vrot.slane %v2548, 3
        %v3010 = vor.u32 %v3008, %v3009
        %v3011 = vsel %vm836, %v3006, %v3010
        %v3012 = vrot.slane %v2560, 2
        %v3013 = vrot.slane %v2556, 3
        %v3014 = vor.u32 %v3012, %v3013
        %v3015 = vsel %vm836, %v3010, %v3014
        %v3016 = vrot.slane %v2568, 2
        %v3017 = vrot.slane %v2564, 3
        %v3018 = vor.u32 %v3016, %v3017
        %v3019 = vsel %vm836, %v3014, %v3018
        %v3020 = vrot.slane %v2576, 2
        %v3021 = vrot.slane %v2572, 3
        %v3022 = vor.u32 %v3020, %v3021
        %v3023 = vsel %vm836, %v3018, %v3022
        %v3024 = vrot.slane %v2584, 2
        %v3025 = vrot.slane %v2580, 3
        %v3026 = vor.u32 %v3024, %v3025
        %v3027 = vsel %vm836, %v3022, %v3026
        %v3028 = vrot.slane %v2592, 2
        %v3029 = vrot.slane %v2588, 3
        %v3030 = vor.u32 %v3028, %v3029
        %v3031 = vsel %vm836, %v3026, %v3030
        %v3032 = vrot.slane %v2600, 2
        %v3033 = vrot.slane %v2596, 3
        %v3034 = vor.u32 %v3032, %v3033
        %v3035 = vsel %vm836, %v3030, %v3034
        %v3036 = vrot.slane %v2608, 2
        %v3037 = vrot.slane %v2604, 3
        %v3038 = vor.u32 %v3036, %v3037
        %v3039 = vsel %vm836, %v3034, %v3038
        %v3040 = vrot.slane %v2850, 2
        %v3041 = vrot.slane %v2612, 3
        %v3042 = vor.u32 %v3040, %v3041
        %v3043 = vsel %vm836, %v3038, %v3042
        %v3044 = vrot.slane %v2857, 2
        %v3045 = vrot.slane %v2860, 3
        %v3046 = vor.u32 %v3044, %v3045
        %v3047 = vsel %vm836, %v3042, %v3046
        %v3049 = vshrl.u32 %v2467, 16
        %v3051 = vrot.slane %v3049, 2
        %v3052 = vshll.u32 %v2467, 16
        %v3054 = vrot.slane %v3052, 3
        %v3055 = vor.u32 %v3051, %v3054
        %v3056 = vsel %vm836, %v3046, %v3055
        %3057 = vrot.lane.b32.xlu0 %v2983, 96
        %v3058 = vpop.permute.xlu0 %3057
        %3059 = vrot.lane.b32.xlu0 %v2987, 96
        %v3060 = vpop.permute.xlu0 %3059
        %3061 = vrot.lane.b32.xlu0 %v2991, 96
        %v3062 = vpop.permute.xlu0 %3061
        %3063 = vrot.lane.b32.xlu0 %v2995, 96
        %v3064 = vpop.permute.xlu0 %3063
        %3065 = vrot.lane.b32.xlu0 %v2999, 96
        %v3066 = vpop.permute.xlu0 %3065
        %3067 = vrot.lane.b32.xlu0 %v3003, 96
        %v3068 = vpop.permute.xlu0 %3067
        %3069 = vrot.lane.b32.xlu0 %v3007, 96
        %v3070 = vpop.permute.xlu0 %3069
        %3071 = vrot.lane.b32.xlu0 %v3011, 96
        %v3072 = vpop.permute.xlu0 %3071
        %3073 = vrot.lane.b32.xlu0 %v3015, 96
        %v3074 = vpop.permute.xlu0 %3073
        %3075 = vrot.lane.b32.xlu0 %v3019, 96
        %v3076 = vpop.permute.xlu0 %3075
        %3077 = vrot.lane.b32.xlu0 %v3023, 96
        %v3078 = vpop.permute.xlu0 %3077
        %3079 = vrot.lane.b32.xlu0 %v3027, 96
        %v3080 = vpop.permute.xlu0 %3079
        %3081 = vrot.lane.b32.xlu0 %v3031, 96
        %v3082 = vpop.permute.xlu0 %3081
        %3083 = vrot.lane.b32.xlu0 %v3035, 96
        %v3084 = vpop.permute.xlu0 %3083
        %3085 = vrot.lane.b32.xlu0 %v3039, 96
        %v3086 = vpop.permute.xlu0 %3085
        %3087 = vrot.lane.b32.xlu0 %v3043, 96
        %v3088 = vpop.permute.xlu0 %3087
        %3089 = vrot.lane.b32.xlu0 %v3047, 96
        %v3090 = vpop.permute.xlu0 %3089
        %3091 = vrot.lane.b32.xlu0 %v3056, 96
        %v3092 = vpop.permute.xlu0 %3091
        %v3093 = vrot.slane %v2449, 3
        %v3094 = vrot.slane %v2450, 3
        %v3095 = vsel %vm953, %v3093, %v3094
        %v3096 = vrot.slane %v2451, 3
        %v3097 = vsel %vm953, %v3094, %v3096
        %v3098 = vrot.slane %v2452, 3
        %v3099 = vsel %vm953, %v3096, %v3098
        %v3100 = vrot.slane %v2453, 3
        %v3101 = vsel %vm953, %v3098, %v3100
        %v3102 = vrot.slane %v2454, 3
        %v3103 = vsel %vm953, %v3100, %v3102
        %v3104 = vrot.slane %v2455, 3
        %v3105 = vsel %vm953, %v3102, %v3104
        %v3106 = vrot.slane %v2456, 3
        %v3107 = vsel %vm953, %v3104, %v3106
        %v3108 = vrot.slane %v2457, 3
        %v3109 = vsel %vm953, %v3106, %v3108
        %v3110 = vrot.slane %v2458, 3
        %v3111 = vsel %vm953, %v3108, %v3110
        %v3112 = vrot.slane %v2459, 3
        %v3113 = vsel %vm953, %v3110, %v3112
        %v3114 = vrot.slane %v2460, 3
        %v3115 = vsel %vm953, %v3112, %v3114
        %v3116 = vrot.slane %v2461, 3
        %v3117 = vsel %vm953, %v3114, %v3116
        %v3118 = vrot.slane %v2462, 3
        %v3119 = vsel %vm953, %v3116, %v3118
        %v3120 = vrot.slane %v2463, 3
        %v3121 = vsel %vm953, %v3118, %v3120
        %v3122 = vrot.slane %v2464, 3
        %v3123 = vsel %vm953, %v3120, %v3122
        %v3124 = vrot.slane %v2465, 3
        %v3125 = vsel %vm953, %v3122, %v3124
        %v3126 = vrot.slane %v2466, 3
        %v3127 = vsel %vm953, %v3124, %v3126
        %v3128 = vrot.slane %v2467, 3
        %v3129 = vsel %vm953, %v3126, %v3128
        %v3131 = vsel %vm2359, %v2447, %v2617
        %v3133 = vsel %vm2359, %v2448, %v2619
        %v3135 = vsel %vm2359, %v2449, %v2621
        %v3137 = vsel %vm2359, %v2450, %v2623
        %v3139 = vsel %vm2359, %v2451, %v2625
        %v3141 = vsel %vm2359, %v2452, %v2627
        %v3143 = vsel %vm2359, %v2453, %v2629
        %v3145 = vsel %vm2359, %v2454, %v2631
        %v3147 = vsel %vm2359, %v2455, %v2633
        %v3149 = vsel %vm2359, %v2456, %v2635
        %v3151 = vsel %vm2359, %v2457, %v2637
        %v3153 = vsel %vm2359, %v2458, %v2639
        %v3155 = vsel %vm2359, %v2459, %v2641
        %v3157 = vsel %vm2359, %v2460, %v2643
        %v3159 = vsel %vm2359, %v2461, %v2645
        %v3161 = vsel %vm2359, %v2462, %v2647
        %v3163 = vsel %vm2359, %v2463, %v2649
        %v3165 = vsel %vm2359, %v2464, %v2651
        %vm3166 = vcmask 523264
        %v3168 = vsel %vm3166, %v3131, %v2709
        %v3170 = vsel %vm3166, %v3133, %v2711
        %v3172 = vsel %vm3166, %v3135, %v2713
        %v3174 = vsel %vm3166, %v3137, %v2715
        %v3176 = vsel %vm3166, %v3139, %v2717
        %v3178 = vsel %vm3166, %v3141, %v2719
        %v3180 = vsel %vm3166, %v3143, %v2721
        %v3182 = vsel %vm3166, %v3145, %v2723
        %v3184 = vsel %vm3166, %v3147, %v2725
        %v3186 = vsel %vm3166, %v3149, %v2727
        %v3188 = vsel %vm3166, %v3151, %v2729
        %v3190 = vsel %vm3166, %v3153, %v2731
        %v3192 = vsel %vm3166, %v3155, %v2733
        %v3194 = vsel %vm3166, %v3157, %v2735
        %v3196 = vsel %vm3166, %v3159, %v2737
        %v3198 = vsel %vm3166, %v3161, %v2739
        %v3200 = vsel %vm3166, %v3163, %v2741
        %v3202 = vsel %vm3166, %v3165, %v2743
        %vm3203 = vcmask 785408
        %v3205 = vsel %vm3203, %v3168, %v2748
        %v3208 = vsel %vm3203, %v3170, %v2750
        %v3211 = vsel %vm3203, %v3172, %v2752
        %v3214 = vsel %vm3203, %v3174, %v2754
        %v3217 = vsel %vm3203, %v3176, %v2756
        %v3220 = vsel %vm3203, %v3178, %v2758
        %v3223 = vsel %vm3203, %v3180, %v2760
        %v3226 = vsel %vm3203, %v3182, %v2762
        %v3229 = vsel %vm3203, %v3184, %v2764
        %v3232 = vsel %vm3203, %v3186, %v2766
        %v3235 = vsel %vm3203, %v3188, %v2768
        %v3238 = vsel %vm3203, %v3190, %v2770
        %v3241 = vsel %vm3203, %v3192, %v2772
        %v3244 = vsel %vm3203, %v3194, %v2774
        %v3247 = vsel %vm3203, %v3196, %v2776
        %v3250 = vsel %vm3203, %v3198, %v2778
        %v3253 = vsel %vm3203, %v3200, %v2780
        %v3256 = vsel %vm3203, %v3202, %v2782
        %v3260 = vsel %vm2359, %v2789, %v2903
        %v3263 = vsel %vm2359, %v2793, %v2905
        %v3266 = vsel %vm2359, %v2797, %v2907
        %v3269 = vsel %vm2359, %v2801, %v2909
        %v3272 = vsel %vm2359, %v2805, %v2911
        %v3275 = vsel %vm2359, %v2809, %v2913
        %v3278 = vsel %vm2359, %v2813, %v2915
        %v3281 = vsel %vm2359, %v2817, %v2917
        %v3284 = vsel %vm2359, %v2821, %v2919
        %v3287 = vsel %vm2359, %v2825, %v2921
        %v3290 = vsel %vm2359, %v2829, %v2923
        %v3293 = vsel %vm2359, %v2833, %v2925
        %v3296 = vsel %vm2359, %v2837, %v2927
        %v3299 = vsel %vm2359, %v2841, %v2929
        %v3302 = vsel %vm2359, %v2845, %v2931
        %v3305 = vsel %vm2359, %v2849, %v2933
        %v3308 = vsel %vm2359, %v2855, %v2935
        %v3311 = vsel %vm2359, %v2864, %v2937
        %v3313 = vsel %vm3166, %v3260, %v2942
        %v3315 = vsel %vm3166, %v3263, %v2944
        %v3317 = vsel %vm3166, %v3266, %v2946
        %v3319 = vsel %vm3166, %v3269, %v2948
        %v3321 = vsel %vm3166, %v3272, %v2950
        %v3323 = vsel %vm3166, %v3275, %v2952
        %v3325 = vsel %vm3166, %v3278, %v2954
        %v3327 = vsel %vm3166, %v3281, %v2956
        %v3329 = vsel %vm3166, %v3284, %v2958
        %v3331 = vsel %vm3166, %v3287, %v2960
        %v3333 = vsel %vm3166, %v3290, %v2962
        %v3335 = vsel %vm3166, %v3293, %v2964
        %v3337 = vsel %vm3166, %v3296, %v2966
        %v3339 = vsel %vm3166, %v3299, %v2968
        %v3341 = vsel %vm3166, %v3302, %v2970
        %v3343 = vsel %vm3166, %v3305, %v2972
        %v3345 = vsel %vm3166, %v3308, %v2974
        %v3347 = vsel %vm3166, %v3311, %v2976
        %v3349 = vsel %vm3203, %v3313, %v3058
        %v3352 = vsel %vm3203, %v3315, %v3060
        %v3355 = vsel %vm3203, %v3317, %v3062
        %v3358 = vsel %vm3203, %v3319, %v3064
        %v3361 = vsel %vm3203, %v3321, %v3066
        %v3364 = vsel %vm3203, %v3323, %v3068
        %v3367 = vsel %vm3203, %v3325, %v3070
        %v3370 = vsel %vm3203, %v3327, %v3072
        %v3373 = vsel %vm3203, %v3329, %v3074
        %v3376 = vsel %vm3203, %v3331, %v3076
        %v3379 = vsel %vm3203, %v3333, %v3078
        %v3382 = vsel %vm3203, %v3335, %v3080
        %v3385 = vsel %vm3203, %v3337, %v3082
        %v3388 = vsel %vm3203, %v3339, %v3084
        %v3391 = vsel %vm3203, %v3341, %v3086
        %v3394 = vsel %vm3203, %v3343, %v3088
        %v3397 = vsel %vm3203, %v3345, %v3090
        %v3400 = vsel %vm3203, %v3347, %v3092
        %v3402 = vld [vmem:[%s3] sm:$0xf]
        %v3403 = vld [vmem:[%s3 + $0x4] sm:$0xf]
        %v3404 = vld [vmem:[%s3 + $0x8] sm:$0xf]
        %v3405 = vld [vmem:[%s3 + $0xc] sm:$0xf]
        %v3406 = vld [vmem:[%s3 + $0x10] sm:$0xf]
        %v3407 = vld [vmem:[%s3 + $0x14] sm:$0xf]
        %v3408 = vld [vmem:[%s3 + $0x18] sm:$0xf]
        %v3409 = vld [vmem:[%s3 + $0x1c] sm:$0xf]
        %v3410 = vld [vmem:[%s3 + $0x20] sm:$0xf]
        %v3411 = vld [vmem:[%s3 + $0x24] sm:$0xf]
        %v3412 = vld [vmem:[%s3 + $0x28] sm:$0xf]
        %v3413 = vld [vmem:[%s3 + $0x2c] sm:$0xf]
        %v3414 = vld [vmem:[%s3 + $0x30] sm:$0xf]
        %v3415 = vld [vmem:[%s3 + $0x34] sm:$0xf]
        %v3416 = vld [vmem:[%s3 + $0x38] sm:$0xf]
        %v3417 = vld [vmem:[%s3 + $0x3c] sm:$0xf]
        %v3418 = vld [vmem:[%s3 + $0x40] sm:$0xf]
        %v3419 = vld [vmem:[%s3 + $0x44] sm:$0xf]
        %v3420 = vld [vmem:[%s3 + $0x48] sm:$0xf]
        %v3421 = vld [vmem:[%s3 + $0x4c] sm:$0xf]
        %v3422 = vld [vmem:[%s3 + $0x50] sm:$0xf]
        %v3423 = vld [vmem:[%s3 + $0x54] sm:$0xf]
        %v3424 = vld [vmem:[%s3 + $0x58] sm:$0xf]
        %v3425 = vld [vmem:[%s3 + $0x5c] sm:$0xf]
        %v3426 = vld [vmem:[%s3 + $0x60] sm:$0xf]
        %v3427 = vld [vmem:[%s3 + $0x64] sm:$0xf]
        %v3428 = vld [vmem:[%s3 + $0x68] sm:$0xf]
        %v3429 = vld [vmem:[%s3 + $0x6c] sm:$0xf]
        %v3430 = vld [vmem:[%s3 + $0x70] sm:$0xf]
        %v3431 = vld [vmem:[%s3 + $0x74] sm:$0xf]
        %v3432 = vld [vmem:[%s3 + $0x78] sm:$0xf]
        %v3433 = vld [vmem:[%s3 + $0x7c] sm:$0xf]
        %v3434 = vld [vmem:[%s3 + $0x80] sm:$0xf]
        %v3435 = vld [vmem:[%s3 + $0x84] sm:$0xf]
        %v3436 = vld [vmem:[%s3 + $0x88] sm:$0xf]
        %v3437 = vld [vmem:[%s3 + $0x8c] sm:$0xf]
        %v3438 = vld [vmem:[%s4] sm:$0x1]
        %v3440 = vlaneseq
        %v3441 = vshrl.u32 %v3440, 7
        %v3442 = vsub.s32 0, %v3441
        %v3443 = vrot.slane %v3438, %v3442
        %v3481 = vunpack.c.l.b16 %v3402
        %v3482 = vunpack.c.l.b16 %v3403
        %v3483 = vunpack.c.l.b16 %v3404
        %v3484 = vunpack.c.l.b16 %v3405
        %v3485 = vunpack.c.l.b16 %v3406
        %v3486 = vunpack.c.l.b16 %v3407
        %v3487 = vunpack.c.l.b16 %v3408
        %v3488 = vunpack.c.l.b16 %v3409
        %v3489 = vunpack.c.l.b16 %v3410
        %v3490 = vunpack.c.l.b16 %v3411
        %v3491 = vunpack.c.l.b16 %v3412
        %v3492 = vunpack.c.l.b16 %v3413
        %v3493 = vunpack.c.l.b16 %v3414
        %v3494 = vunpack.c.l.b16 %v3415
        %v3495 = vunpack.c.l.b16 %v3416
        %v3496 = vunpack.c.l.b16 %v3417
        %v3497 = vunpack.c.l.b16 %v3418
        %v3498 = vunpack.c.l.b16 %v3419
        %v3499 = vunpack.c.l.b16 %v3420
        %v3500 = vunpack.c.l.b16 %v3421
        %v3501 = vunpack.c.l.b16 %v3422
        %v3502 = vunpack.c.l.b16 %v3423
        %v3503 = vunpack.c.l.b16 %v3424
        %v3504 = vunpack.c.l.b16 %v3425
        %v3505 = vunpack.c.l.b16 %v3426
        %v3506 = vunpack.c.l.b16 %v3427
        %v3507 = vunpack.c.l.b16 %v3428
        %v3508 = vunpack.c.l.b16 %v3429
        %v3509 = vunpack.c.l.b16 %v3430
        %v3510 = vunpack.c.l.b16 %v3431
        %v3511 = vunpack.c.l.b16 %v3432
        %v3512 = vunpack.c.l.b16 %v3433
        %v3513 = vunpack.c.l.b16 %v3434
        %v3514 = vunpack.c.l.b16 %v3435
        %v3515 = vunpack.c.l.b16 %v3436
        %v3516 = vunpack.c.l.b16 %v3437
        %v3517 = vpack.c.b16 %v3482, %v3481
        %v3518 = vpack.c.b16 %v3484, %v3483
        %v3519 = vpack.c.b16 %v3486, %v3485
        %v3520 = vpack.c.b16 %v3488, %v3487
        %v3521 = vpack.c.b16 %v3490, %v3489
        %v3522 = vpack.c.b16 %v3492, %v3491
        %v3523 = vpack.c.b16 %v3494, %v3493
        %v3524 = vpack.c.b16 %v3496, %v3495
        %v3525 = vpack.c.b16 %v3498, %v3497
        %v3526 = vpack.c.b16 %v3500, %v3499
        %v3527 = vpack.c.b16 %v3502, %v3501
        %v3528 = vpack.c.b16 %v3504, %v3503
        %v3529 = vpack.c.b16 %v3506, %v3505
        %v3530 = vpack.c.b16 %v3508, %v3507
        %v3531 = vpack.c.b16 %v3510, %v3509
        %v3532 = vpack.c.b16 %v3512, %v3511
        %v3533 = vpack.c.b16 %v3514, %v3513
        %v3534 = vpack.c.b16 %v3516, %v3515
        %v3554 = vsel %vm2359, %v3095, 0
        %v3557 = vsel %vm2359, %v3097, 0
        %v3560 = vsel %vm2359, %v3099, 0
        %v3563 = vsel %vm2359, %v3101, 0
        %v3566 = vsel %vm2359, %v3103, 0
        %v3569 = vsel %vm2359, %v3105, 0
        %v3572 = vsel %vm2359, %v3107, 0
        %v3575 = vsel %vm2359, %v3109, 0
        %v3578 = vsel %vm2359, %v3111, 0
        %v3581 = vsel %vm2359, %v3113, 0
        %v3584 = vsel %vm2359, %v3115, 0
        %v3587 = vsel %vm2359, %v3117, 0
        %v3590 = vsel %vm2359, %v3119, 0
        %v3593 = vsel %vm2359, %v3121, 0
        %v3596 = vsel %vm2359, %v3123, 0
        %v3599 = vsel %vm2359, %v3125, 0
        %v3602 = vsel %vm2359, %v3127, 0
        %v3605 = vsel %vm2359, %v3129, 0
        %3607 = vmatprep.subr.bf16.mxu0 0
        %3608 = vmatpush1.bf16.msra.mxu0 %v3517
        %3609 = vmatprep.subr.bf16.mxu0 0
        %3610 = vmatpush1.bf16.msra.mxu0 %v3518
        %3611 = vmatprep.subr.bf16.mxu0 0
        %3612 = vmatpush1.bf16.msra.mxu0 %v3519
        %3613 = vmatprep.subr.bf16.mxu0 0
        %3614 = vmatpush1.bf16.msra.mxu0 %v3520
        %3615 = vmatprep.subr.bf16.mxu0 0
        %3616 = vmatpush1.bf16.msra.mxu0 %v3521
        %3617 = vmatprep.subr.bf16.mxu0 0
        %3618 = vmatpush1.bf16.msra.mxu0 %v3522
        %3619 = vmatprep.subr.bf16.mxu0 0
        %3620 = vmatpush1.bf16.msra.mxu0 %v3523
        %3621 = vmatprep.subr.bf16.mxu0 0
        %3622 = vmatpush1.bf16.msra.mxu0 %v3524
        %3623 = vmatprep.subr.bf16.mxu0 0
        %3624 = vmatpush1.bf16.msra.mxu0 %v3525
        %3625 = vmatprep.subr.bf16.mxu0 0
        %3626 = vmatpush1.bf16.msra.mxu0 %v3526
        %3627 = vmatprep.subr.bf16.mxu0 0
        %3628 = vmatpush1.bf16.msra.mxu0 %v3527
        %3629 = vmatprep.subr.bf16.mxu0 0
        %3630 = vmatpush1.bf16.msra.mxu0 %v3528
        %3631 = vmatprep.subr.bf16.mxu0 0
        %3632 = vmatpush1.bf16.msra.mxu0 %v3529
        %3633 = vmatprep.subr.bf16.mxu0 0
        %3634 = vmatpush1.bf16.msra.mxu0 %v3530
        %3635 = vmatprep.subr.bf16.mxu0 0
        %3636 = vmatpush1.bf16.msra.mxu0 %v3531
        %3637 = vmatprep.subr.bf16.mxu0 0
        %3638 = vmatpush1.bf16.msra.mxu0 %v3532
        %3639 = vmatprep.mubr.bf16.mxu0 %v3349
        %3640 = vmatmul.mubr.bf16.gmra.mrb[0].mxu0 %v3205
        %v3641 = vpop.f32.mrb[0].mxu0
        %v3642 = vadd.f32 %v3443, %v3641
        %v3643 = vpop.f32.mrb[0].mxu0
        %v3644 = vpop.f32.mrb[0].mxu0
        %v3645 = vadd.f32 %v3443, %v3644
        %v3646 = vpop.f32.mrb[0].mxu0
        %3647 = vmatprep.mubr.bf16.mxu0 %v3352
        %3648 = vmatmul.mubr.bf16.gmra.mrb[0].mxu0 %v3208
        %v3649 = vpop.f32.mrb[0].mxu0
        %v3650 = vadd.f32 %v3443, %v3649
        %v3651 = vpop.f32.mrb[0].mxu0
        %v3652 = vpop.f32.mrb[0].mxu0
        %v3653 = vadd.f32 %v3443, %v3652
        %v3654 = vpop.f32.mrb[0].mxu0
        %3655 = vmatprep.mubr.bf16.mxu0 %v3355
        %3656 = vmatmul.mubr.bf16.gmra.mrb[0].mxu0 %v3211
        %v3657 = vpop.f32.mrb[0].mxu0
        %v3658 = vadd.f32 %v3443, %v3657
        %v3659 = vpop.f32.mrb[0].mxu0
        %v3660 = vpop.f32.mrb[0].mxu0
        %v3661 = vadd.f32 %v3443, %v3660
        %v3662 = vpop.f32.mrb[0].mxu0
        %3663 = vmatprep.mubr.bf16.mxu0 %v3358
        %3664 = vmatmul.mubr.bf16.gmra.mrb[0].mxu0 %v3214
        %v3665 = vpop.f32.mrb[0].mxu0
        %v3666 = vadd.f32 %v3443, %v3665
        %v3667 = vpop.f32.mrb[0].mxu0
        %v3668 = vpop.f32.mrb[0].mxu0
        %v3669 = vadd.f32 %v3443, %v3668
        %v3670 = vpop.f32.mrb[0].mxu0
        %3671 = vmatprep.mubr.bf16.mxu0 %v3361
        %3672 = vmatmul.mubr.bf16.gmra.mrb[0].mxu0 %v3217
        %v3673 = vpop.f32.mrb[0].mxu0
        %v3674 = vadd.f32 %v3443, %v3673
        %v3675 = vpop.f32.mrb[0].mxu0
        %v3676 = vpop.f32.mrb[0].mxu0
        %v3677 = vadd.f32 %v3443, %v3676
        %v3678 = vpop.f32.mrb[0].mxu0
        %3679 = vmatprep.mubr.bf16.mxu0 %v3364
        %3680 = vmatmul.mubr.bf16.gmra.mrb[0].mxu0 %v3220
        %v3681 = vpop.f32.mrb[0].mxu0
        %v3682 = vadd.f32 %v3443, %v3681
        %v3683 = vpop.f32.mrb[0].mxu0
        %v3684 = vpop.f32.mrb[0].mxu0
        %v3685 = vadd.f32 %v3443, %v3684
        %v3686 = vpop.f32.mrb[0].mxu0
        %3687 = vmatprep.mubr.bf16.mxu0 %v3367
        %3688 = vmatmul.mubr.bf16.gmra.mrb[0].mxu0 %v3223
        %v3689 = vpop.f32.mrb[0].mxu0
        %v3690 = vadd.f32 %v3443, %v3689
        %v3691 = vpop.f32.mrb[0].mxu0
        %v3692 = vpop.f32.mrb[0].mxu0
        %v3693 = vadd.f32 %v3443, %v3692
        %v3694 = vpop.f32.mrb[0].mxu0
        %3695 = vmatprep.mubr.bf16.mxu0 %v3370
        %3696 = vmatmul.mubr.bf16.gmra.mrb[0].mxu0 %v3226
        %v3697 = vpop.f32.mrb[0].mxu0
        %v3698 = vadd.f32 %v3443, %v3697
        %v3699 = vpop.f32.mrb[0].mxu0
        %v3700 = vpop.f32.mrb[0].mxu0
        %v3701 = vadd.f32 %v3443, %v3700
        %v3702 = vpop.f32.mrb[0].mxu0
        %3703 = vmatprep.mubr.bf16.mxu0 %v3373
        %3704 = vmatmul.mubr.bf16.gmra.mrb[0].mxu0 %v3229
        %v3705 = vpop.f32.mrb[0].mxu0
        %v3706 = vadd.f32 %v3443, %v3705
        %v3707 = vpop.f32.mrb[0].mxu0
        %v3708 = vpop.f32.mrb[0].mxu0
        %v3709 = vadd.f32 %v3443, %v3708
        %v3710 = vpop.f32.mrb[0].mxu0
        %3711 = vmatprep.mubr.bf16.mxu0 %v3376
        %3712 = vmatmul.mubr.bf16.gmra.mrb[0].mxu0 %v3232
        %v3713 = vpop.f32.mrb[0].mxu0
        %v3714 = vadd.f32 %v3443, %v3713
        %v3715 = vpop.f32.mrb[0].mxu0
        %v3716 = vpop.f32.mrb[0].mxu0
        %v3717 = vadd.f32 %v3443, %v3716
        %v3718 = vpop.f32.mrb[0].mxu0
        %3719 = vmatprep.mubr.bf16.mxu0 %v3379
        %3720 = vmatmul.mubr.bf16.gmra.mrb[0].mxu0 %v3235
        %v3721 = vpop.f32.mrb[0].mxu0
        %v3722 = vadd.f32 %v3443, %v3721
        %v3723 = vpop.f32.mrb[0].mxu0
        %v3724 = vpop.f32.mrb[0].mxu0
        %v3725 = vadd.f32 %v3443, %v3724
        %v3726 = vpop.f32.mrb[0].mxu0
        %3727 = vmatprep.mubr.bf16.mxu0 %v3382
        %3728 = vmatmul.mubr.bf16.gmra.mrb[0].mxu0 %v3238
        %v3729 = vpop.f32.mrb[0].mxu0
        %v3730 = vadd.f32 %v3443, %v3729
        %v3731 = vpop.f32.mrb[0].mxu0
        %v3732 = vpop.f32.mrb[0].mxu0
        %v3733 = vadd.f32 %v3443, %v3732
        %v3734 = vpop.f32.mrb[0].mxu0
        %3735 = vmatprep.mubr.bf16.mxu0 %v3385
        %3736 = vmatmul.mubr.bf16.gmra.mrb[0].mxu0 %v3241
        %v3737 = vpop.f32.mrb[0].mxu0
        %v3738 = vadd.f32 %v3443, %v3737
        %v3739 = vpop.f32.mrb[0].mxu0
        %v3740 = vpop.f32.mrb[0].mxu0
        %v3741 = vadd.f32 %v3443, %v3740
        %v3742 = vpop.f32.mrb[0].mxu0
        %3743 = vmatprep.mubr.bf16.mxu0 %v3388
        %3744 = vmatmul.mubr.bf16.gmra.mrb[0].mxu0 %v3244
        %v3745 = vpop.f32.mrb[0].mxu0
        %v3746 = vadd.f32 %v3443, %v3745
        %v3747 = vpop.f32.mrb[0].mxu0
        %v3748 = vpop.f32.mrb[0].mxu0
        %v3749 = vadd.f32 %v3443, %v3748
        %v3750 = vpop.f32.mrb[0].mxu0
        %3751 = vmatprep.mubr.bf16.mxu0 %v3391
        %3752 = vmatmul.mubr.bf16.gmra.mrb[0].mxu0 %v3247
        %v3753 = vpop.f32.mrb[0].mxu0
        %v3754 = vadd.f32 %v3443, %v3753
        %v3755 = vpop.f32.mrb[0].mxu0
        %v3756 = vpop.f32.mrb[0].mxu0
        %v3757 = vadd.f32 %v3443, %v3756
        %v3758 = vpop.f32.mrb[0].mxu0
        %3759 = vmatprep.mubr.bf16.mxu0 %v3394
        %3760 = vmatmul.mubr.bf16.gmra.mrb[0].mxu0 %v3250
        %v3761 = vpop.f32.mrb[0].mxu0
        %v3762 = vadd.f32 %v3443, %v3761
        %v3763 = vpop.f32.mrb[0].mxu0
        %v3764 = vpop.f32.mrb[0].mxu0
        %v3765 = vadd.f32 %v3443, %v3764
        %v3766 = vpop.f32.mrb[0].mxu0
        %3767 = vmatprep.mubr.bf16.mxu0 %v3397
        %3768 = vmatmul.mubr.bf16.gmra.mrb[0].mxu0 %v3253
        %v3769 = vpop.f32.mrb[0].mxu0
        %v3770 = vadd.f32 %v3443, %v3769
        %v3771 = vpop.f32.mrb[0].mxu0
        %v3772 = vpop.f32.mrb[0].mxu0
        %v3773 = vadd.f32 %v3443, %v3772
        %v3774 = vpop.f32.mrb[0].mxu0
        %3775 = vmatprep.mubr.bf16.mxu0 %v3400
        %3776 = vmatmul.mubr.bf16.gmra.mrb[0].mxu0 %v3256
        %v3777 = vpop.f32.mrb[0].mxu0
        %v3778 = vadd.f32 %v3443, %v3777
        %v3779 = vpop.f32.mrb[0].mxu0
        %v3780 = vpop.f32.mrb[0].mxu0
        %v3781 = vadd.f32 %v3443, %v3780
        %v3782 = vpop.f32.mrb[0].mxu0
        %3783 = vdwg.mxu0
        %3784 = vmatprep.subr.bf16.mxu0 0
        %3785 = vmatpush1.bf16.msra.mxu0 %v3533
        %3786 = vmatprep.subr.bf16.mxu0 0
        %3787 = vmatpush1.bf16.msra.mxu0 %v3534
        %3788 = vmatprep.subr.bf16.mxu0 0
        %3789 = vmatpush1.bf16.msra.mxu0 0
        %3790 = vmatprep.subr.bf16.mxu0 0
        %3791 = vmatpush1.bf16.msra.mxu0 0
        %3792 = vmatprep.subr.bf16.mxu0 0
        %3793 = vmatpush1.bf16.msra.mxu0 0
        %3794 = vmatprep.subr.bf16.mxu0 0
        %3795 = vmatpush1.bf16.msra.mxu0 0
        %3796 = vmatprep.subr.bf16.mxu0 0
        %3797 = vmatpush1.bf16.msra.mxu0 0
        %3798 = vmatprep.subr.bf16.mxu0 0
        %3799 = vmatpush1.bf16.msra.mxu0 0
        %3800 = vmatprep.subr.bf16.mxu0 0
        %3801 = vmatpush1.bf16.msra.mxu0 0
        %3802 = vmatprep.subr.bf16.mxu0 0
        %3803 = vmatpush1.bf16.msra.mxu0 0
        %3804 = vmatprep.subr.bf16.mxu0 0
        %3805 = vmatpush1.bf16.msra.mxu0 0
        %3806 = vmatprep.subr.bf16.mxu0 0
        %3807 = vmatpush1.bf16.msra.mxu0 0
        %3808 = vmatprep.subr.bf16.mxu0 0
        %3809 = vmatpush1.bf16.msra.mxu0 0
        %3810 = vmatprep.subr.bf16.mxu0 0
        %3811 = vmatpush1.bf16.msra.mxu0 0
        %3812 = vmatprep.subr.bf16.mxu0 0
        %3813 = vmatpush1.bf16.msra.mxu0 0
        %3814 = vmatprep.subr.bf16.mxu0 0
        %3815 = vmatpush1.bf16.msra.mxu0 0
        %3816 = vmatprep.mubr.bf16.mxu0 0
        %3817 = vmatmul.mubr.bf16.gmra.mrb[0].mxu0 %v3554
        %v3818 = vpop.f32.mrb[0].mxu0
        %v3819 = vadd.f32 %v3642, %v3818
        %v3820 = vpop.f32.mrb[0].mxu0
        %v3821 = vpop.f32.mrb[0].mxu0
        %v3822 = vadd.f32 %v3645, %v3821
        %v3823 = vpop.f32.mrb[0].mxu0
        %3824 = vmatprep.mubr.bf16.mxu0 0
        %3825 = vmatmul.mubr.bf16.gmra.mrb[0].mxu0 %v3557
        %v3826 = vpop.f32.mrb[0].mxu0
        %v3827 = vadd.f32 %v3650, %v3826
        %v3828 = vpop.f32.mrb[0].mxu0
        %v3829 = vpop.f32.mrb[0].mxu0
        %v3830 = vadd.f32 %v3653, %v3829
        %v3831 = vpop.f32.mrb[0].mxu0
        %3832 = vmatprep.mubr.bf16.mxu0 0
        %3833 = vmatmul.mubr.bf16.gmra.mrb[0].mxu0 %v3560
        %v3834 = vpop.f32.mrb[0].mxu0
        %v3835 = vadd.f32 %v3658, %v3834
        %v3836 = vpop.f32.mrb[0].mxu0
        %v3837 = vpop.f32.mrb[0].mxu0
        %v3838 = vadd.f32 %v3661, %v3837
        %v3839 = vpop.f32.mrb[0].mxu0
        %3840 = vmatprep.mubr.bf16.mxu0 0
        %3841 = vmatmul.mubr.bf16.gmra.mrb[0].mxu0 %v3563
        %v3842 = vpop.f32.mrb[0].mxu0
        %v3843 = vadd.f32 %v3666, %v3842
        %v3844 = vpop.f32.mrb[0].mxu0
        %v3845 = vpop.f32.mrb[0].mxu0
        %v3846 = vadd.f32 %v3669, %v3845
        %v3847 = vpop.f32.mrb[0].mxu0
        %3848 = vmatprep.mubr.bf16.mxu0 0
        %3849 = vmatmul.mubr.bf16.gmra.mrb[0].mxu0 %v3566
        %v3850 = vpop.f32.mrb[0].mxu0
        %v3851 = vadd.f32 %v3674, %v3850
        %v3852 = vpop.f32.mrb[0].mxu0
        %v3853 = vpop.f32.mrb[0].mxu0
        %v3854 = vadd.f32 %v3677, %v3853
        %v3855 = vpop.f32.mrb[0].mxu0
        %3856 = vmatprep.mubr.bf16.mxu0 0
        %3857 = vmatmul.mubr.bf16.gmra.mrb[0].mxu0 %v3569
        %v3858 = vpop.f32.mrb[0].mxu0
        %v3859 = vadd.f32 %v3682, %v3858
        %v3860 = vpop.f32.mrb[0].mxu0
        %v3861 = vpop.f32.mrb[0].mxu0
        %v3862 = vadd.f32 %v3685, %v3861
        %v3863 = vpop.f32.mrb[0].mxu0
        %3864 = vmatprep.mubr.bf16.mxu0 0
        %3865 = vmatmul.mubr.bf16.gmra.mrb[0].mxu0 %v3572
        %v3866 = vpop.f32.mrb[0].mxu0
        %v3867 = vadd.f32 %v3690, %v3866
        %v3868 = vpop.f32.mrb[0].mxu0
        %v3869 = vpop.f32.mrb[0].mxu0
        %v3870 = vadd.f32 %v3693, %v3869
        %v3871 = vpop.f32.mrb[0].mxu0
        %3872 = vmatprep.mubr.bf16.mxu0 0
        %3873 = vmatmul.mubr.bf16.gmra.mrb[0].mxu0 %v3575
        %v3874 = vpop.f32.mrb[0].mxu0
        %v3875 = vadd.f32 %v3698, %v3874
        %v3876 = vpop.f32.mrb[0].mxu0
        %v3877 = vpop.f32.mrb[0].mxu0
        %v3878 = vadd.f32 %v3701, %v3877
        %v3879 = vpop.f32.mrb[0].mxu0
        %3880 = vmatprep.mubr.bf16.mxu0 0
        %3881 = vmatmul.mubr.bf16.gmra.mrb[0].mxu0 %v3578
        %v3882 = vpop.f32.mrb[0].mxu0
        %v3883 = vadd.f32 %v3706, %v3882
        %v3884 = vpop.f32.mrb[0].mxu0
        %v3885 = vpop.f32.mrb[0].mxu0
        %v3886 = vadd.f32 %v3709, %v3885
        %v3887 = vpop.f32.mrb[0].mxu0
        %3888 = vmatprep.mubr.bf16.mxu0 0
        %3889 = vmatmul.mubr.bf16.gmra.mrb[0].mxu0 %v3581
        %v3890 = vpop.f32.mrb[0].mxu0
        %v3891 = vadd.f32 %v3714, %v3890
        %v3892 = vpop.f32.mrb[0].mxu0
        %v3893 = vpop.f32.mrb[0].mxu0
        %v3894 = vadd.f32 %v3717, %v3893
        %v3895 = vpop.f32.mrb[0].mxu0
        %3896 = vmatprep.mubr.bf16.mxu0 0
        %3897 = vmatmul.mubr.bf16.gmra.mrb[0].mxu0 %v3584
        %v3898 = vpop.f32.mrb[0].mxu0
        %v3899 = vadd.f32 %v3722, %v3898
        %v3900 = vpop.f32.mrb[0].mxu0
        %v3901 = vpop.f32.mrb[0].mxu0
        %v3902 = vadd.f32 %v3725, %v3901
        %v3903 = vpop.f32.mrb[0].mxu0
        %3904 = vmatprep.mubr.bf16.mxu0 0
        %3905 = vmatmul.mubr.bf16.gmra.mrb[0].mxu0 %v3587
        %v3906 = vpop.f32.mrb[0].mxu0
        %v3907 = vadd.f32 %v3730, %v3906
        %v3908 = vpop.f32.mrb[0].mxu0
        %v3909 = vpop.f32.mrb[0].mxu0
        %v3910 = vadd.f32 %v3733, %v3909
        %v3911 = vpop.f32.mrb[0].mxu0
        %3912 = vmatprep.mubr.bf16.mxu0 0
        %3913 = vmatmul.mubr.bf16.gmra.mrb[0].mxu0 %v3590
        %v3914 = vpop.f32.mrb[0].mxu0
        %v3915 = vadd.f32 %v3738, %v3914
        %v3916 = vpop.f32.mrb[0].mxu0
        %v3917 = vpop.f32.mrb[0].mxu0
        %v3918 = vadd.f32 %v3741, %v3917
        %v3919 = vpop.f32.mrb[0].mxu0
        %3920 = vmatprep.mubr.bf16.mxu0 0
        %3921 = vmatmul.mubr.bf16.gmra.mrb[0].mxu0 %v3593
        %v3922 = vpop.f32.mrb[0].mxu0
        %v3923 = vadd.f32 %v3746, %v3922
        %v3924 = vpop.f32.mrb[0].mxu0
        %v3925 = vpop.f32.mrb[0].mxu0
        %v3926 = vadd.f32 %v3749, %v3925
        %v3927 = vpop.f32.mrb[0].mxu0
        %3928 = vmatprep.mubr.bf16.mxu0 0
        %3929 = vmatmul.mubr.bf16.gmra.mrb[0].mxu0 %v3596
        %v3930 = vpop.f32.mrb[0].mxu0
        %v3931 = vadd.f32 %v3754, %v3930
        %v3932 = vpop.f32.mrb[0].mxu0
        %v3933 = vpop.f32.mrb[0].mxu0
        %v3934 = vadd.f32 %v3757, %v3933
        %v3935 = vpop.f32.mrb[0].mxu0
        %3936 = vmatprep.mubr.bf16.mxu0 0
        %3937 = vmatmul.mubr.bf16.gmra.mrb[0].mxu0 %v3599
        %v3938 = vpop.f32.mrb[0].mxu0
        %v3939 = vadd.f32 %v3762, %v3938
        %v3940 = vpop.f32.mrb[0].mxu0
        %v3941 = vpop.f32.mrb[0].mxu0
        %v3942 = vadd.f32 %v3765, %v3941
        %v3943 = vpop.f32.mrb[0].mxu0
        %3944 = vmatprep.mubr.bf16.mxu0 0
        %3945 = vmatmul.mubr.bf16.gmra.mrb[0].mxu0 %v3602
        %v3946 = vpop.f32.mrb[0].mxu0
        %v3947 = vadd.f32 %v3770, %v3946
        %v3948 = vpop.f32.mrb[0].mxu0
        %v3949 = vpop.f32.mrb[0].mxu0
        %v3950 = vadd.f32 %v3773, %v3949
        %v3951 = vpop.f32.mrb[0].mxu0
        %3952 = vmatprep.mubr.bf16.mxu0 0
        %3953 = vmatmul.mubr.bf16.gmra.mrb[0].mxu0 %v3605
        %v3954 = vpop.f32.mrb[0].mxu0
        %v3955 = vadd.f32 %v3778, %v3954
        %v3956 = vpop.f32.mrb[0].mxu0
        %v3957 = vpop.f32.mrb[0].mxu0
        %v3958 = vadd.f32 %v3781, %v3957
        %v3959 = vpop.f32.mrb[0].mxu0
        %3960 = vdwg.mxu0
        %v3961 = vmax.f32 %v3819, 0.0
        %v3962 = vmax.f32 %v3822, 0.0
        %v3963 = vmax.f32 %v3827, 0.0
        %v3964 = vmax.f32 %v3830, 0.0
        %v3965 = vmax.f32 %v3835, 0.0
        %v3966 = vmax.f32 %v3838, 0.0
        %v3967 = vmax.f32 %v3843, 0.0
        %v3968 = vmax.f32 %v3846, 0.0
        %v3969 = vmax.f32 %v3851, 0.0
        %v3970 = vmax.f32 %v3854, 0.0
        %v3971 = vmax.f32 %v3859, 0.0
        %v3972 = vmax.f32 %v3862, 0.0
        %v3973 = vmax.f32 %v3867, 0.0
        %v3974 = vmax.f32 %v3870, 0.0
        %v3975 = vmax.f32 %v3875, 0.0
        %v3976 = vmax.f32 %v3878, 0.0
        %v3977 = vmax.f32 %v3883, 0.0
        %v3978 = vmax.f32 %v3886, 0.0
        %v3979 = vmax.f32 %v3891, 0.0
        %v3980 = vmax.f32 %v3894, 0.0
        %v3981 = vmax.f32 %v3899, 0.0
        %v3982 = vmax.f32 %v3902, 0.0
        %v3983 = vmax.f32 %v3907, 0.0
        %v3984 = vmax.f32 %v3910, 0.0
        %v3985 = vmax.f32 %v3915, 0.0
        %v3986 = vmax.f32 %v3918, 0.0
        %v3987 = vmax.f32 %v3923, 0.0
        %v3988 = vmax.f32 %v3926, 0.0
        %v3989 = vmax.f32 %v3931, 0.0
        %v3990 = vmax.f32 %v3934, 0.0
        %v3991 = vmax.f32 %v3939, 0.0
        %v3992 = vmax.f32 %v3942, 0.0
        %v3993 = vmax.f32 %v3947, 0.0
        %v3994 = vmax.f32 %v3950, 0.0
        %v3995 = vmax.f32 %v3955, 0.0
        %v3996 = vmax.f32 %v3958, 0.0
        %3997 = vxpose.xlu0.b32.start [1/16] %v3961, 128
        %3998 = vxpose.xlu0.b32.cont [2/16] %v3962, 128
        %3999 = vxpose.xlu0.b32.cont [3/16] %v3963, 128
        %4000 = vxpose.xlu0.b32.cont [4/16] %v3964, 128
        %4001 = vxpose.xlu0.b32.cont [5/16] %v3965, 128
        %4002 = vxpose.xlu0.b32.cont [6/16] %v3966, 128
        %4003 = vxpose.xlu0.b32.cont [7/16] %v3967, 128
        %4004 = vxpose.xlu0.b32.cont [8/16] %v3968, 128
        %4005 = vxpose.xlu0.b32.cont [9/16] %v3969, 128
        %4006 = vxpose.xlu0.b32.cont [10/16] %v3970, 128
        %4007 = vxpose.xlu0.b32.cont [11/16] %v3971, 128
        %4008 = vxpose.xlu0.b32.cont [12/16] %v3972, 128
        %4009 = vxpose.xlu0.b32.cont [13/16] %v3973, 128
        %4010 = vxpose.xlu0.b32.cont [14/16] %v3974, 128
        %4011 = vxpose.xlu0.b32.cont [15/16] %v3975, 128
        %4012 = vxpose.xlu0.b32.end [16/16] %v3976, 128
        %v4013 = vpop.trf.xlu0
        %v4014 = vpop.trf.xlu0
        %v4015 = vpop.trf.xlu0
        %v4016 = vpop.trf.xlu0
        %v4017 = vpop.trf.xlu0
        %v4018 = vpop.trf.xlu0
        %v4019 = vpop.trf.xlu0
        %v4020 = vpop.trf.xlu0
        %v4021 = vpop.trf.xlu0
        %v4022 = vpop.trf.xlu0
        %v4023 = vpop.trf.xlu0
        %v4024 = vpop.trf.xlu0
        %v4025 = vpop.trf.xlu0
        %v4026 = vpop.trf.xlu0
        %v4027 = vpop.trf.xlu0
        %v4028 = vpop.trf.xlu0
        %4029 = vxpose.xlu0.b32.start [1/16] %v3977, 128
        %4030 = vxpose.xlu0.b32.cont [2/16] %v3978, 128
        %4031 = vxpose.xlu0.b32.cont [3/16] %v3979, 128
        %4032 = vxpose.xlu0.b32.cont [4/16] %v3980, 128
        %4033 = vxpose.xlu0.b32.cont [5/16] %v3981, 128
        %4034 = vxpose.xlu0.b32.cont [6/16] %v3982, 128
        %4035 = vxpose.xlu0.b32.cont [7/16] %v3983, 128
        %4036 = vxpose.xlu0.b32.cont [8/16] %v3984, 128
        %4037 = vxpose.xlu0.b32.cont [9/16] %v3985, 128
        %4038 = vxpose.xlu0.b32.cont [10/16] %v3986, 128
        %4039 = vxpose.xlu0.b32.cont [11/16] %v3987, 128
        %4040 = vxpose.xlu0.b32.cont [12/16] %v3988, 128
        %4041 = vxpose.xlu0.b32.cont [13/16] %v3989, 128
        %4042 = vxpose.xlu0.b32.cont [14/16] %v3990, 128
        %4043 = vxpose.xlu0.b32.cont [15/16] %v3991, 128
        %4044 = vxpose.xlu0.b32.end [16/16] %v3992, 128
        %v4045 = vpop.trf.xlu0
        %v4046 = vpop.trf.xlu0
        %v4047 = vpop.trf.xlu0
        %v4048 = vpop.trf.xlu0
        %v4049 = vpop.trf.xlu0
        %v4050 = vpop.trf.xlu0
        %v4051 = vpop.trf.xlu0
        %v4052 = vpop.trf.xlu0
        %v4053 = vpop.trf.xlu0
        %v4054 = vpop.trf.xlu0
        %v4055 = vpop.trf.xlu0
        %v4056 = vpop.trf.xlu0
        %v4057 = vpop.trf.xlu0
        %v4058 = vpop.trf.xlu0
        %v4059 = vpop.trf.xlu0
        %v4060 = vpop.trf.xlu0
        %4061 = vxpose.xlu0.b32.start [1/16] %v3993, 128
        %4062 = vxpose.xlu0.b32.cont [2/16] %v3994, 128
        %4063 = vxpose.xlu0.b32.cont [3/16] %v3995, 128
        %4064 = vxpose.xlu0.b32.cont [4/16] %v3996, 128
        %4065 = vxpose.xlu0.b32.cont [5/16] 0.0, 128
        %4066 = vxpose.xlu0.b32.cont [6/16] 0.0, 128
        %4067 = vxpose.xlu0.b32.cont [7/16] 0.0, 128
        %4068 = vxpose.xlu0.b32.cont [8/16] 0.0, 128
        %4069 = vxpose.xlu0.b32.cont [9/16] 0.0, 128
        %4070 = vxpose.xlu0.b32.cont [10/16] 0.0, 128
        %4071 = vxpose.xlu0.b32.cont [11/16] 0.0, 128
        %4072 = vxpose.xlu0.b32.cont [12/16] 0.0, 128
        %4073 = vxpose.xlu0.b32.cont [13/16] 0.0, 128
        %4074 = vxpose.xlu0.b32.cont [14/16] 0.0, 128
        %4075 = vxpose.xlu0.b32.cont [15/16] 0.0, 128
        %4076 = vxpose.xlu0.b32.end [16/16] 0.0, 128
        %v4077 = vpop.trf.xlu0
        %v4078 = vpop.trf.xlu0
        %v4079 = vpop.trf.xlu0
        %v4080 = vpop.trf.xlu0
        %v4081 = vpop.trf.xlu0
        %v4082 = vpop.trf.xlu0
        %v4083 = vpop.trf.xlu0
        %v4084 = vpop.trf.xlu0
        %v4085 = vpop.trf.xlu0
        %v4086 = vpop.trf.xlu0
        %v4087 = vpop.trf.xlu0
        %v4088 = vpop.trf.xlu0
        %v4089 = vpop.trf.xlu0
        %v4090 = vpop.trf.xlu0
        %v4091 = vpop.trf.xlu0
        %v4092 = vpop.trf.xlu0
        %4093 = vst [vmem:[%s217] sm:$0xff] %v4013
        %4094 = vst [vmem:[%s217 + $0x8] sm:$0xff] %v4045
        %4095 = vst.msk [vmem:[%s217 + $0x10] sm:$0xff] %vm2359, %v4077
        %4096 = vst [vmem:[%s217 + $0x18] sm:$0xff] %v4014
        %4097 = vst [vmem:[%s217 + $0x20] sm:$0xff] %v4046
        %4098 = vst.msk [vmem:[%s217 + $0x28] sm:$0xff] %vm2359, %v4078
        %4099 = vst [vmem:[%s217 + $0x30] sm:$0xff] %v4015
        %4100 = vst [vmem:[%s217 + $0x38] sm:$0xff] %v4047
        %4101 = vst.msk [vmem:[%s217 + $0x40] sm:$0xff] %vm2359, %v4079
        %4102 = vst [vmem:[%s217 + $0x48] sm:$0xff] %v4016
        %4103 = vst [vmem:[%s217 + $0x50] sm:$0xff] %v4048
        %4104 = vst.msk [vmem:[%s217 + $0x58] sm:$0xff] %vm2359, %v4080
        %s4105 = sand.u32 %s137, 1
        %s4106 = scalar_lea.sflag [#allocation4], %s4105
        %s4107 = sand.u32 %s137, 1
        %s4108 = smul.addr %s4107, 96
        %s4109 = scalar_lea.vmem [#allocation3], %s4108
        // Predicated region
        $region41: #{tpu_custom_call.1} parent=39 // pred_check
          %p4110 = pneg %p147
        $region42: #{tpu_custom_call.1} parent=39 // pred_check_branch
          %4112 = sbr.rel (%p4110) target = $region44
        $region43: #{tpu_custom_call.1} parent=39 // pred_region
          %s4114 = ssub.s32 1536, 1536
          %4115 = vsyncadd %s4106, %s4114
          %s4116 = smul.addr %s19, 12
          %s4117 = smul.addr %s4116, 128
          %s4118 = scalar_lea.hbm %s5, %s4117
          %s4119 = sshll.u32 %s4109, 4
          %s4120 = int_to_ptr.vmem [resolvable:$true] %s4119
          %4125 = dma.vmem_to_hbm [thread:$0]  %s4120, 1536, %s4118, %s4106, 384, 384, 24
        $region44: #{tpu_custom_call.1} parent=39 // pred_fallthru
          _
      $region40: #{tpu_custom_call.1} parent=5 // pred_fallthru
        _
      %p4126 = scmp.le.s32.totalorder 2, %s14
      // Predicated region
      $region45: #{tpu_custom_call.1} parent=5 // pred_check
        %p4127 = pneg %p4126
      $region46: #{tpu_custom_call.1} parent=5 // pred_check_branch
        %4129 = sbr.rel (%p4127) target = $region48
      $region47: #{tpu_custom_call.1} parent=5 // pred_region
        %s4130 = ssub.s32 %s14, 2
        // Predicated region
        $region49: #{tpu_custom_call.1} parent=47 // pred_check
          %p4131 = pneg %p153
        $region50: #{tpu_custom_call.1} parent=47 // pred_check_branch
          %4133 = sbr.rel (%p4131) target = $region52
        $region51: #{tpu_custom_call.1} parent=47 // pred_region
          %s4134 = sand.u32 %s138, 1
          %s4135 = scalar_lea.sflag [#allocation4], %s4134
          %s4136 = sand.u32 %s138, 1
          %s4137 = smul.addr %s4136, 96
          %s4138 = scalar_lea.vmem [#allocation3], %s4137
          %4139 = dma.done %s4135, 1536
        $region52: #{tpu_custom_call.1} parent=47 // pred_fallthru
          _
      $region48: #{tpu_custom_call.1} parent=5 // pred_fallthru
        _
    $region6: #{tpu_custom_call.1} parent=1 // loop_footer
      %s18 = sadd.s32 1, %s14
    $region7: #{tpu_custom_call.1} parent=1 // loop_footer_branch
      %13 = sbr.rel target = $region3
    $region8: #{tpu_custom_call.1} parent=1 // loop_exit
      _
    %4140 = vsyncpa [#allocation4], 1
    %s4141 = scalar_lea.sflag [#allocation4], 1
    %4142 = vsyncpa %s4141, 1

</llo_original>
